<compile_context>
chip_gen: v5e
topology: v5e:2x2
jax: 0.10.0
libtpu: 0.0.40
codegen_flags: <defaults>
</compile_context>

<pallas_src>
import functools
import math

import jax
import jax.numpy as jnp
from jax.experimental import pallas as pl
from jax.experimental.pallas import tpu as pltpu

NUM_HEADS = 8
LN_EPS = 1e-5

SIZE_SETTING = {
    '1024_small': [1024, 512, 256], '1024_big': [1024, 512, 384],
    '1024_min': [1024, 256, 128], 'dino': [384, 256, 128],
    'dino_b': [384, 300, 256], 'dino_ss': [384, 64, 32],
    'dino_s': [384, 128, 64], 'hipt': [192, 128, 64],
    'hipt_att': [192, 192, 192],
}

PARAM_ORDER = ["wqkv", "bqkv", "wo", "bo", "g1", "be1",
               "w1", "b1", "w2", "b2", "g2", "be2"]


def _stacked_layers_kernel(x_ref,
                           wqkv_ref, bqkv_ref, wo_ref, bo_ref,
                           g1_ref, be1_ref, w1_ref, b1_ref,
                           w2_ref, b2_ref, g2_ref, be2_ref,
                           o_ref, act_ref, *, attend, num_heads):
    """One grid step = (one batch tile) x (one encoder layer).

    grid = (num_batch_tiles, num_layers); the layer axis is innermost ("arbitrary").
    The batch-tile activation stays resident in `act_ref` across layers; per-layer
    weights are pipelined in from HBM via their BlockSpec index map (l, 0, 0).
    """
    layer = pl.program_id(1)

    @pl.when(layer == 0)
    def _():
        act_ref[...] = x_ref[...]

    x3 = act_ref[...]                               # (Bt, S, E) fp32
    Bt, S, E = x3.shape
    M = Bt * S
    x2 = x3.reshape(M, E)

    # --- fused QKV projection: one (M,E)@(E,3E) MXU matmul, bf16 in / f32 acc ---
    qkv = jnp.dot(x2.astype(jnp.bfloat16), wqkv_ref[0],
                  preferred_element_type=jnp.float32) + bqkv_ref[0]   # (M, 3E)

    if attend:
        # --- multi-head self attention (full, no mask); softmax in fp32 ---
        # TODO(synk): for very long S replace the (Bt,S,S) per-head score tile with an
        # online-softmax (flash) formulation; fine for the sequence sizes here.
        Dh = E // num_heads
        scale = 1.0 / math.sqrt(Dh)
        head_outs = []
        for h in range(num_heads):                  # static unroll over 8 heads
            lo = h * Dh
            q = (qkv[:, lo:lo + Dh] * scale).reshape(Bt, S, Dh).astype(jnp.bfloat16)
            k = qkv[:, E + lo:E + lo + Dh].reshape(Bt, S, Dh).astype(jnp.bfloat16)
            v = qkv[:, 2 * E + lo:2 * E + lo + Dh].reshape(Bt, S, Dh).astype(jnp.bfloat16)
            s = jnp.einsum('bqd,bkd->bqk', q, k,
                           preferred_element_type=jnp.float32)        # (Bt,S,S) f32
            s = s - jnp.max(s, axis=-1, keepdims=True)
            p = jnp.exp(s)
            p = p * pl.reciprocal(jnp.sum(p, axis=-1, keepdims=True), approx=True)
            oh = jnp.einsum('bqk,bkd->bqd', p.astype(jnp.bfloat16), v,
                            preferred_element_type=jnp.float32)       # (Bt,S,Dh)
            head_outs.append(oh.reshape(M, Dh))
        attn = jnp.concatenate(head_outs, axis=-1)                    # (M, E)
    else:
        # Sequence length 1 (torch 2-D input, batch_first=False): softmax over a
        # single key is identically 1, so the attention output is exactly V.
        attn = qkv[:, 2 * E:3 * E]                                    # (M, E)

    # --- fused output projection: one (M,E)@(E,E) matmul ---
    attn = jnp.dot(attn.astype(jnp.bfloat16), wo_ref[0],
                   preferred_element_type=jnp.float32) + bo_ref[0]

    # --- residual + post-LayerNorm 1 (fp32) ---
    y = x2 + attn
    mu = jnp.mean(y, axis=-1, keepdims=True)
    var = jnp.mean((y - mu) * (y - mu), axis=-1, keepdims=True)
    y = (y - mu) * jax.lax.rsqrt(var + LN_EPS) * g1_ref[0] + be1_ref[0]

    # --- feed-forward: relu(y @ W1 + b1) @ W2 + b2 (bf16 matmuls, f32 acc) ---
    ff = jnp.dot(y.astype(jnp.bfloat16), w1_ref[0],
                 preferred_element_type=jnp.float32) + b1_ref[0]
    ff = jnp.maximum(ff, 0.0)
    ff = jnp.dot(ff.astype(jnp.bfloat16), w2_ref[0],
                 preferred_element_type=jnp.float32) + b2_ref[0]

    # --- residual + post-LayerNorm 2 (fp32) ---
    z = y + ff
    mu2 = jnp.mean(z, axis=-1, keepdims=True)
    var2 = jnp.mean((z - mu2) * (z - mu2), axis=-1, keepdims=True)
    z = (z - mu2) * jax.lax.rsqrt(var2 + LN_EPS) * g2_ref[0] + be2_ref[0]
    z3 = z.reshape(Bt, S, E)

    act_ref[...] = z3                                # stays resident for layer l+1

    @pl.when(layer == pl.num_programs(1) - 1)
    def _():
        o_ref[...] = z3                              # HBM writeback once per batch tile


def _run_stack(x_bse, params, num_layers, bt, attend):
    """x_bse: (B, S, E) fp32, B divisible by bt. Runs all layers in one pallas_call."""
    B, S, E = x_bse.shape
    assert B % bt == 0
    ordered = [params[name] for name in PARAM_ORDER]

    in_specs = [pl.BlockSpec((bt, S, E), lambda b, l: (b, 0, 0))]
    for p in ordered:                                 # stacked (L, d0, d1) params
        in_specs.append(pl.BlockSpec((1,) + p.shape[1:], lambda b, l: (l, 0, 0)))

    kernel = functools.partial(_stacked_layers_kernel,
                               attend=attend, num_heads=NUM_HEADS)

    return pl.pallas_call(
        kernel,
        out_shape=jax.ShapeDtypeStruct((B, S, E), jnp.float32),
        grid=(B // bt, num_layers),
        in_specs=in_specs,
        out_specs=pl.BlockSpec((bt, S, E), lambda b, l: (b, 0, 0)),
        scratch_shapes=[pltpu.VMEM((bt, S, E), jnp.float32)],
        compiler_params=pltpu.CompilerParams(
            dimension_semantics=("parallel", "arbitrary"),
            vmem_limit_bytes=64 << 20),
    )(x_bse, *ordered)


def _init_layer_params(key, E):
    """Deterministic synthetic torch-equivalent parameters for one encoder layer."""
    F = 4 * E
    ks = jax.random.split(key, 8)
    std = 0.02
    w_in = jax.random.normal(ks[0], (3 * E, E), jnp.float32) * std   # in_proj_weight
    b_in = jax.random.normal(ks[1], (3 * E,), jnp.float32) * std     # in_proj_bias
    wo_t = jax.random.normal(ks[2], (E, E), jnp.float32) * std       # out_proj.weight
    bo_t = jax.random.normal(ks[3], (E,), jnp.float32) * std
    w1_t = jax.random.normal(ks[4], (F, E), jnp.float32) * std       # linear1.weight
    b1_t = jax.random.normal(ks[5], (F,), jnp.float32) * std
    w2_t = jax.random.normal(ks[6], (E, F), jnp.float32) * std       # linear2.weight
    b2_t = jax.random.normal(ks[7], (E,), jnp.float32) * std

    return dict(
        # matmul weights in bf16 (halved HBM/VMEM traffic, full-rate MXU); f32 acc.
        wqkv=w_in.T.astype(jnp.bfloat16),            # (E, 3E) columns = [q | k | v]
        bqkv=b_in.reshape(1, 3 * E),
        wo=wo_t.T.astype(jnp.bfloat16),              # (E, E)
        bo=bo_t.reshape(1, E),
        g1=jnp.ones((1, E), jnp.float32), be1=jnp.zeros((1, E), jnp.float32),
        w1=w1_t.T.astype(jnp.bfloat16), b1=b1_t.reshape(1, F),   # (E,4E),(1,4E)
        w2=w2_t.T.astype(jnp.bfloat16), b2=b2_t.reshape(1, E),   # (4E,E),(1,E)
        g2=jnp.ones((1, E), jnp.float32), be2=jnp.zeros((1, E), jnp.float32),
    )


def _ln_ref(x, g, b):
    mu = jnp.mean(x, axis=-1, keepdims=True)
    var = jnp.mean((x - mu) ** 2, axis=-1, keepdims=True)
    return (x - mu) * jax.lax.rsqrt(var + LN_EPS) * g + b


def _ref_stack(x_bse, params, num_layers):
    """Pure-JAX fp32 reference of the torch TransformerEncoderLayer stack."""
    B, S, E = x_bse.shape
    Dh = E // NUM_HEADS
    x = x_bse.astype(jnp.float32)
    for l in range(num_layers):
        qkv = x @ params['wqkv'][l].astype(jnp.float32) + params['bqkv'][l][0]
        q, k, v = qkv[..., :E], qkv[..., E:2 * E], qkv[..., 2 * E:]
        split = lambda t: t.reshape(B, S, NUM_HEADS, Dh).transpose(0, 2, 1, 3)
        q, k, v = split(q) / math.sqrt(Dh), split(k), split(v)
        p = jax.nn.softmax(jnp.einsum('bhqd,bhkd->bhqk', q, k), axis=-1)
        o = jnp.einsum('bhqk,bhkd->bhqd', p, v).transpose(0, 2, 1, 3).reshape(B, S, E)
        attn = o @ params['wo'][l].astype(jnp.float32) + params['bo'][l][0]
        y = _ln_ref(x + attn, params['g1'][l][0], params['be1'][l][0])
        ff = jnp.maximum(y @ params['w1'][l].astype(jnp.float32) + params['b1'][l][0], 0.0)
        ff = ff @ params['w2'][l].astype(jnp.float32) + params['b2'][l][0]
        x = _ln_ref(y + ff, params['g2'][l][0], params['be2'][l][0])
    return x


class TransformerFCPallas:
    """Pallas equivalent of transformer_FC (dropout ignored: inference mode)."""

    def __init__(self, num_layer, size_arg, dropout_rate, key):
        del dropout_rate                     # identity at inference
        self.d_model = SIZE_SETTING[size_arg][0]
        assert self.d_model % NUM_HEADS == 0
        self.num_layers = num_layer
        keys = jax.random.split(key, num_layer)
        per_layer = [_init_layer_params(k, self.d_model) for k in keys]
        # stack all layers' params with a leading L axis -> single pipelined call
        self.params = {name: jnp.stack([p[name] for p in per_layer], axis=0)
                       for name in PARAM_ORDER}

    def _run(self, x_bse, attend):
        B, S, E = x_bse.shape
        # batch tile: aim for ~512 matmul rows (Bt*S) per grid program (fewer
        # weight re-streams over the batch axis); smaller for very wide models.
        rows_target = 512 if E <= 512 else 256
        bt = max(1, min(B, max(1, rows_target // max(S, 1))))
        b_pad = (-B) % bt
        if b_pad:                                    # pad batch (rows independent)
            x_bse = jnp.concatenate(
                [x_bse, jnp.zeros((b_pad, S, E), jnp.float32)], axis=0)
        out = _run_stack(x_bse, self.params, self.num_layers, bt, attend)
        return out[:B]

    def __call__(self, x):
        E = self.d_model
        if x.ndim == 2:
            # torch: (N, E) -> unsqueeze(0) -> (S=1, batch=N, E) with batch_first=False,
            # so each instance attends only to itself; attention == V exactly.  The
            # computation is purely row-wise, so pack 8 rows per pseudo-sequence for
            # sublane-dense tiles and run with attend=False.
            N = x.shape[0]
            x32 = x.astype(jnp.float32)
            SP = 8
            n_pad = (-N) % SP
            if n_pad:
                x32 = jnp.concatenate([x32, jnp.zeros((n_pad, E), jnp.float32)], 0)
            x_bse = x32.reshape(-1, SP, E)
            out = self._run(x_bse, attend=False)
            out = out.reshape(-1, E)[:N]
            return out[None]                          # (1, N, E): torch output layout
        # 3-D torch seq-first layout (S, N, E) -> (B=N, S, E)
        x_bse = jnp.transpose(x, (1, 0, 2)).astype(jnp.float32)
        S = x_bse.shape[1]
        out = self._run(x_bse, attend=(S > 1))
        return jnp.transpose(out, (1, 0, 2))          # back to (S, N, E)


if __name__ == "__main__":
    key = jax.random.PRNGKey(0)
    k_param, k_x3, k_x2 = jax.random.split(key, 3)

    num_layer = 2
    size_arg = "hipt"          # d_model = 192 preset, nhead = 8, ffn = 4*192
    model = TransformerFCPallas(num_layer, size_arg, dropout_rate=0.1, key=k_param)

    # 3-D torch layout (seq, batch, embed): full multi-head attention path
    S, N, E = 8, 2, model.d_model
    x3 = jax.random.normal(k_x3, (S, N, E), jnp.float32)
    out3 = jax.block_until_ready(model(x3))
    assert out3.shape == (S, N, E)
    assert bool(jnp.all(jnp.isfinite(out3)))
    ref3 = jnp.transpose(
        _ref_stack(jnp.transpose(x3, (1, 0, 2)), model.params, num_layer), (1, 0, 2))
    assert float(jnp.max(jnp.abs(out3 - ref3))) < 1e-1

    # 2-D MIL-bag layout (instances, embed): the path transformer_decoder exercises
    x2 = jax.random.normal(k_x2, (16, E), jnp.float32)
    out2 = jax.block_until_ready(model(x2))
    assert out2.shape == (1, 16, E)
    assert bool(jnp.all(jnp.isfinite(out2)))
    ref2 = _ref_stack(x2[:, None, :], model.params, num_layer)[:, 0, :]
    assert float(jnp.max(jnp.abs(out2[0] - ref2))) < 1e-1

    print("KERNEL_OK")
</pallas_src>

<mosaic_0001>
module attributes {stable_mosaic.version = 11 : i64} {
  func.func @_stacked_layers_kernel(%arg0: i32, %arg1: i32, %arg2: memref<2x8x192xf32, #tpu.memory_space<vmem>>, %arg3: memref<1x192x576xbf16, #tpu.memory_space<vmem>>, %arg4: memref<1x1x576xf32, #tpu.memory_space<vmem>>, %arg5: memref<1x192x192xbf16, #tpu.memory_space<vmem>>, %arg6: memref<1x1x192xf32, #tpu.memory_space<vmem>>, %arg7: memref<1x1x192xf32, #tpu.memory_space<vmem>>, %arg8: memref<1x1x192xf32, #tpu.memory_space<vmem>>, %arg9: memref<1x192x768xbf16, #tpu.memory_space<vmem>>, %arg10: memref<1x1x768xf32, #tpu.memory_space<vmem>>, %arg11: memref<1x768x192xbf16, #tpu.memory_space<vmem>>, %arg12: memref<1x1x192xf32, #tpu.memory_space<vmem>>, %arg13: memref<1x1x192xf32, #tpu.memory_space<vmem>>, %arg14: memref<1x1x192xf32, #tpu.memory_space<vmem>>, %arg15: memref<2x8x192xf32, #tpu.memory_space<vmem>>, %arg16: memref<2x8x192xf32, #tpu.memory_space<vmem>>) attributes {dimension_semantics = [#tpu.dimension_semantics<parallel>, #tpu.dimension_semantics<arbitrary>], iteration_bounds = array<i64: 1, 2>, scalar_prefetch = 0 : i64, scratch_operands = 1 : i64, tpu.core_type = #tpu.core_type<tc>, window_params = [{transform_indices = @transform_0, window_bounds = array<i64: 2, 8, 192>}, {transform_indices = @transform_1, window_bounds = array<i64: 1, 192, 576>}, {transform_indices = @transform_2, window_bounds = array<i64: 1, 1, 576>}, {transform_indices = @transform_3, window_bounds = array<i64: 1, 192, 192>}, {transform_indices = @transform_4, window_bounds = array<i64: 1, 1, 192>}, {transform_indices = @transform_5, window_bounds = array<i64: 1, 1, 192>}, {transform_indices = @transform_6, window_bounds = array<i64: 1, 1, 192>}, {transform_indices = @transform_7, window_bounds = array<i64: 1, 192, 768>}, {transform_indices = @transform_8, window_bounds = array<i64: 1, 1, 768>}, {transform_indices = @transform_9, window_bounds = array<i64: 1, 768, 192>}, {transform_indices = @transform_10, window_bounds = array<i64: 1, 1, 192>}, {transform_indices = @transform_11, window_bounds = array<i64: 1, 1, 192>}, {transform_indices = @transform_12, window_bounds = array<i64: 1, 1, 192>}, {transform_indices = @transform_13, window_bounds = array<i64: 2, 8, 192>}]} {
    %c0_i32 = arith.constant 0 : i32
    %0 = arith.cmpi eq, %arg1, %c0_i32 : i32
    %1 = arith.extui %0 : i1 to i32
    %c0_i32_0 = arith.constant 0 : i32
    %2 = arith.cmpi ne, %1, %c0_i32_0 : i32
    scf.if %2 {
      %c0_97 = arith.constant 0 : index
      %c0_98 = arith.constant 0 : index
      %c0_99 = arith.constant 0 : index
      %303 = vector.load %arg2[%c0_97, %c0_98, %c0_99] : memref<2x8x192xf32, #tpu.memory_space<vmem>>, vector<2x8x192xf32>
      %c0_100 = arith.constant 0 : index
      %c0_101 = arith.constant 0 : index
      %c0_102 = arith.constant 0 : index
      %304 = vector.load %arg16[%c0_100, %c0_101, %c0_102] : memref<2x8x192xf32, #tpu.memory_space<vmem>>, vector<2x8x192xf32>
      tpu.vector_store %arg16[%c0_100, %c0_101, %c0_102], %303 {strides = array<i32>} : memref<2x8x192xf32, #tpu.memory_space<vmem>>, vector<2x8x192xf32>,
    } else {
    }
    %c0 = arith.constant 0 : index
    %c0_1 = arith.constant 0 : index
    %c0_2 = arith.constant 0 : index
    %3 = vector.load %arg16[%c0, %c0_1, %c0_2] : memref<2x8x192xf32, #tpu.memory_space<vmem>>, vector<2x8x192xf32>
    %4 = vector.shape_cast %3 : vector<2x8x192xf32> to vector<16x192xf32>
    %5 = arith.truncf %4 : vector<16x192xf32> to vector<16x192xbf16>
    %c0_3 = arith.constant 0 : index
    %c0_4 = arith.constant 0 : index
    %c0_5 = arith.constant 0 : index
    %6 = vector.load %arg3[%c0_3, %c0_4, %c0_5] : memref<1x192x576xbf16, #tpu.memory_space<vmem>>, vector<1x192x576xbf16>
    %7 = vector.shape_cast %6 : vector<1x192x576xbf16> to vector<192x576xbf16>
    %cst = arith.constant dense<0.000000e+00> : vector<16x576xf32>
    %8 = tpu.matmul %5, %7, %cst {dimension_numbers = #tpu.dot_dimension_numbers<[1], [0], [0], [1], [0, 0, 1, 1], [], []>} : vector<16x192xbf16>, vector<192x576xbf16>, vector<16x576xf32> -> vector<16x576xf32>
    %c0_6 = arith.constant 0 : index
    %c0_7 = arith.constant 0 : index
    %c0_8 = arith.constant 0 : index
    %9 = vector.load %arg4[%c0_6, %c0_7, %c0_8] : memref<1x1x576xf32, #tpu.memory_space<vmem>>, vector<1x1x576xf32>
    %10 = vector.shape_cast %9 : vector<1x1x576xf32> to vector<1x576xf32>
    %11 = vector.broadcast %10 : vector<1x576xf32> to vector<16x576xf32>
    %12 = arith.addf %8, %11 : vector<16x576xf32>
    %13 = vector.extract_strided_slice %12 {offsets = [0, 0], sizes = [16, 24], strides = [1, 1]} : vector<16x576xf32> to vector<16x24xf32>
    %cst_9 = arith.constant 0.204124153 : f32
    %14 = vector.broadcast %cst_9 : f32 to vector<16x24xf32>
    %15 = arith.mulf %13, %14 : vector<16x24xf32>
    %16 = vector.shape_cast %15 : vector<16x24xf32> to vector<2x8x24xf32>
    %17 = arith.truncf %16 : vector<2x8x24xf32> to vector<2x8x24xbf16>
    %18 = vector.extract_strided_slice %12 {offsets = [0, 192], sizes = [16, 24], strides = [1, 1]} : vector<16x576xf32> to vector<16x24xf32>
    %19 = vector.shape_cast %18 : vector<16x24xf32> to vector<2x8x24xf32>
    %20 = arith.truncf %19 : vector<2x8x24xf32> to vector<2x8x24xbf16>
    %21 = vector.extract_strided_slice %12 {offsets = [0, 384], sizes = [16, 24], strides = [1, 1]} : vector<16x576xf32> to vector<16x24xf32>
    %22 = vector.shape_cast %21 : vector<16x24xf32> to vector<2x8x24xf32>
    %23 = arith.truncf %22 : vector<2x8x24xf32> to vector<2x8x24xbf16>
    "tpu.trace_start"() <{level = 10 : i32, message = "bqd,bkd->bqk"}> : () -> ()
    %cst_10 = arith.constant dense<0.000000e+00> : vector<2x8x8xf32>
    %24 = tpu.matmul %17, %20, %cst_10 {dimension_numbers = #tpu.dot_dimension_numbers<[2], [2], [1], [1], [0, 0, 0, 1, 1, 1], [0], [0]>} : vector<2x8x24xbf16>, vector<2x8x24xbf16>, vector<2x8x8xf32> -> vector<2x8x8xf32>
    "tpu.trace_stop"() : () -> ()
    %cst_11 = arith.constant dense<0xFF800000> : vector<2x8xf32>
    %25 = vector.multi_reduction <maximumf>, %24, %cst_11 [2] : vector<2x8x8xf32> to vector<2x8xf32>
    %26 = vector.shape_cast %25 : vector<2x8xf32> to vector<2x8x1xf32>
    %27 = vector.broadcast %26 : vector<2x8x1xf32> to vector<2x8x8xf32>
    %28 = arith.subf %24, %27 : vector<2x8x8xf32>
    %29 = math.exp %28 : vector<2x8x8xf32>
    %cst_12 = arith.constant dense<0.000000e+00> : vector<2x8xf32>
    %30 = vector.multi_reduction <add>, %29, %cst_12 [2] : vector<2x8x8xf32> to vector<2x8xf32>
    %31 = vector.shape_cast %30 : vector<2x8xf32> to vector<2x8x1xf32>
    %32 = tpu.reciprocal %31 {approx = true} : vector<2x8x1xf32> -> vector<2x8x1xf32>
    %33 = vector.broadcast %32 : vector<2x8x1xf32> to vector<2x8x8xf32>
    %34 = arith.mulf %29, %33 : vector<2x8x8xf32>
    %35 = arith.truncf %34 : vector<2x8x8xf32> to vector<2x8x8xbf16>
    "tpu.trace_start"() <{level = 10 : i32, message = "bqk,bkd->bqd"}> : () -> ()
    %cst_13 = arith.constant dense<0.000000e+00> : vector<2x8x24xf32>
    %36 = tpu.matmul %35, %23, %cst_13 {dimension_numbers = #tpu.dot_dimension_numbers<[2], [1], [1], [2], [0, 0, 0, 1, 1, 2], [0], [0]>} : vector<2x8x8xbf16>, vector<2x8x24xbf16>, vector<2x8x24xf32> -> vector<2x8x24xf32>
    "tpu.trace_stop"() : () -> ()
    %37 = vector.shape_cast %36 : vector<2x8x24xf32> to vector<16x24xf32>
    %38 = vector.extract_strided_slice %12 {offsets = [0, 24], sizes = [16, 24], strides = [1, 1]} : vector<16x576xf32> to vector<16x24xf32>
    %cst_14 = arith.constant 0.204124153 : f32
    %39 = vector.broadcast %cst_14 : f32 to vector<16x24xf32>
    %40 = arith.mulf %38, %39 : vector<16x24xf32>
    %41 = vector.shape_cast %40 : vector<16x24xf32> to vector<2x8x24xf32>
    %42 = arith.truncf %41 : vector<2x8x24xf32> to vector<2x8x24xbf16>
    %43 = vector.extract_strided_slice %12 {offsets = [0, 216], sizes = [16, 24], strides = [1, 1]} : vector<16x576xf32> to vector<16x24xf32>
    %44 = vector.shape_cast %43 : vector<16x24xf32> to vector<2x8x24xf32>
    %45 = arith.truncf %44 : vector<2x8x24xf32> to vector<2x8x24xbf16>
    %46 = vector.extract_strided_slice %12 {offsets = [0, 408], sizes = [16, 24], strides = [1, 1]} : vector<16x576xf32> to vector<16x24xf32>
    %47 = vector.shape_cast %46 : vector<16x24xf32> to vector<2x8x24xf32>
    %48 = arith.truncf %47 : vector<2x8x24xf32> to vector<2x8x24xbf16>
    "tpu.trace_start"() <{level = 10 : i32, message = "bqd,bkd->bqk"}> : () -> ()
    %cst_15 = arith.constant dense<0.000000e+00> : vector<2x8x8xf32>
    %49 = tpu.matmul %42, %45, %cst_15 {dimension_numbers = #tpu.dot_dimension_numbers<[2], [2], [1], [1], [0, 0, 0, 1, 1, 1], [0], [0]>} : vector<2x8x24xbf16>, vector<2x8x24xbf16>, vector<2x8x8xf32> -> vector<2x8x8xf32>
    "tpu.trace_stop"() : () -> ()
    %cst_16 = arith.constant dense<0xFF800000> : vector<2x8xf32>
    %50 = vector.multi_reduction <maximumf>, %49, %cst_16 [2] : vector<2x8x8xf32> to vector<2x8xf32>
    %51 = vector.shape_cast %50 : vector<2x8xf32> to vector<2x8x1xf32>
    %52 = vector.broadcast %51 : vector<2x8x1xf32> to vector<2x8x8xf32>
    %53 = arith.subf %49, %52 : vector<2x8x8xf32>
    %54 = math.exp %53 : vector<2x8x8xf32>
    %cst_17 = arith.constant dense<0.000000e+00> : vector<2x8xf32>
    %55 = vector.multi_reduction <add>, %54, %cst_17 [2] : vector<2x8x8xf32> to vector<2x8xf32>
    %56 = vector.shape_cast %55 : vector<2x8xf32> to vector<2x8x1xf32>
    %57 = tpu.reciprocal %56 {approx = true} : vector<2x8x1xf32> -> vector<2x8x1xf32>
    %58 = vector.broadcast %57 : vector<2x8x1xf32> to vector<2x8x8xf32>
    %59 = arith.mulf %54, %58 : vector<2x8x8xf32>
    %60 = arith.truncf %59 : vector<2x8x8xf32> to vector<2x8x8xbf16>
    "tpu.trace_start"() <{level = 10 : i32, message = "bqk,bkd->bqd"}> : () -> ()
    %cst_18 = arith.constant dense<0.000000e+00> : vector<2x8x24xf32>
    %61 = tpu.matmul %60, %48, %cst_18 {dimension_numbers = #tpu.dot_dimension_numbers<[2], [1], [1], [2], [0, 0, 0, 1, 1, 2], [0], [0]>} : vector<2x8x8xbf16>, vector<2x8x24xbf16>, vector<2x8x24xf32> -> vector<2x8x24xf32>
    "tpu.trace_stop"() : () -> ()
    %62 = vector.shape_cast %61 : vector<2x8x24xf32> to vector<16x24xf32>
    %63 = vector.extract_strided_slice %12 {offsets = [0, 48], sizes = [16, 24], strides = [1, 1]} : vector<16x576xf32> to vector<16x24xf32>
    %cst_19 = arith.constant 0.204124153 : f32
    %64 = vector.broadcast %cst_19 : f32 to vector<16x24xf32>
    %65 = arith.mulf %63, %64 : vector<16x24xf32>
    %66 = vector.shape_cast %65 : vector<16x24xf32> to vector<2x8x24xf32>
    %67 = arith.truncf %66 : vector<2x8x24xf32> to vector<2x8x24xbf16>
    %68 = vector.extract_strided_slice %12 {offsets = [0, 240], sizes = [16, 24], strides = [1, 1]} : vector<16x576xf32> to vector<16x24xf32>
    %69 = vector.shape_cast %68 : vector<16x24xf32> to vector<2x8x24xf32>
    %70 = arith.truncf %69 : vector<2x8x24xf32> to vector<2x8x24xbf16>
    %71 = vector.extract_strided_slice %12 {offsets = [0, 432], sizes = [16, 24], strides = [1, 1]} : vector<16x576xf32> to vector<16x24xf32>
    %72 = vector.shape_cast %71 : vector<16x24xf32> to vector<2x8x24xf32>
    %73 = arith.truncf %72 : vector<2x8x24xf32> to vector<2x8x24xbf16>
    "tpu.trace_start"() <{level = 10 : i32, message = "bqd,bkd->bqk"}> : () -> ()
    %cst_20 = arith.constant dense<0.000000e+00> : vector<2x8x8xf32>
    %74 = tpu.matmul %67, %70, %cst_20 {dimension_numbers = #tpu.dot_dimension_numbers<[2], [2], [1], [1], [0, 0, 0, 1, 1, 1], [0], [0]>} : vector<2x8x24xbf16>, vector<2x8x24xbf16>, vector<2x8x8xf32> -> vector<2x8x8xf32>
    "tpu.trace_stop"() : () -> ()
    %cst_21 = arith.constant dense<0xFF800000> : vector<2x8xf32>
    %75 = vector.multi_reduction <maximumf>, %74, %cst_21 [2] : vector<2x8x8xf32> to vector<2x8xf32>
    %76 = vector.shape_cast %75 : vector<2x8xf32> to vector<2x8x1xf32>
    %77 = vector.broadcast %76 : vector<2x8x1xf32> to vector<2x8x8xf32>
    %78 = arith.subf %74, %77 : vector<2x8x8xf32>
    %79 = math.exp %78 : vector<2x8x8xf32>
    %cst_22 = arith.constant dense<0.000000e+00> : vector<2x8xf32>
    %80 = vector.multi_reduction <add>, %79, %cst_22 [2] : vector<2x8x8xf32> to vector<2x8xf32>
    %81 = vector.shape_cast %80 : vector<2x8xf32> to vector<2x8x1xf32>
    %82 = tpu.reciprocal %81 {approx = true} : vector<2x8x1xf32> -> vector<2x8x1xf32>
    %83 = vector.broadcast %82 : vector<2x8x1xf32> to vector<2x8x8xf32>
    %84 = arith.mulf %79, %83 : vector<2x8x8xf32>
    %85 = arith.truncf %84 : vector<2x8x8xf32> to vector<2x8x8xbf16>
    "tpu.trace_start"() <{level = 10 : i32, message = "bqk,bkd->bqd"}> : () -> ()
    %cst_23 = arith.constant dense<0.000000e+00> : vector<2x8x24xf32>
    %86 = tpu.matmul %85, %73, %cst_23 {dimension_numbers = #tpu.dot_dimension_numbers<[2], [1], [1], [2], [0, 0, 0, 1, 1, 2], [0], [0]>} : vector<2x8x8xbf16>, vector<2x8x24xbf16>, vector<2x8x24xf32> -> vector<2x8x24xf32>
    "tpu.trace_stop"() : () -> ()
    %87 = vector.shape_cast %86 : vector<2x8x24xf32> to vector<16x24xf32>
    %88 = vector.extract_strided_slice %12 {offsets = [0, 72], sizes = [16, 24], strides = [1, 1]} : vector<16x576xf32> to vector<16x24xf32>
    %cst_24 = arith.constant 0.204124153 : f32
    %89 = vector.broadcast %cst_24 : f32 to vector<16x24xf32>
    %90 = arith.mulf %88, %89 : vector<16x24xf32>
    %91 = vector.shape_cast %90 : vector<16x24xf32> to vector<2x8x24xf32>
    %92 = arith.truncf %91 : vector<2x8x24xf32> to vector<2x8x24xbf16>
    %93 = vector.extract_strided_slice %12 {offsets = [0, 264], sizes = [16, 24], strides = [1, 1]} : vector<16x576xf32> to vector<16x24xf32>
    %94 = vector.shape_cast %93 : vector<16x24xf32> to vector<2x8x24xf32>
    %95 = arith.truncf %94 : vector<2x8x24xf32> to vector<2x8x24xbf16>
    %96 = vector.extract_strided_slice %12 {offsets = [0, 456], sizes = [16, 24], strides = [1, 1]} : vector<16x576xf32> to vector<16x24xf32>
    %97 = vector.shape_cast %96 : vector<16x24xf32> to vector<2x8x24xf32>
    %98 = arith.truncf %97 : vector<2x8x24xf32> to vector<2x8x24xbf16>
    "tpu.trace_start"() <{level = 10 : i32, message = "bqd,bkd->bqk"}> : () -> ()
    %cst_25 = arith.constant dense<0.000000e+00> : vector<2x8x8xf32>
    %99 = tpu.matmul %92, %95, %cst_25 {dimension_numbers = #tpu.dot_dimension_numbers<[2], [2], [1], [1], [0, 0, 0, 1, 1, 1], [0], [0]>} : vector<2x8x24xbf16>, vector<2x8x24xbf16>, vector<2x8x8xf32> -> vector<2x8x8xf32>
    "tpu.trace_stop"() : () -> ()
    %cst_26 = arith.constant dense<0xFF800000> : vector<2x8xf32>
    %100 = vector.multi_reduction <maximumf>, %99, %cst_26 [2] : vector<2x8x8xf32> to vector<2x8xf32>
    %101 = vector.shape_cast %100 : vector<2x8xf32> to vector<2x8x1xf32>
    %102 = vector.broadcast %101 : vector<2x8x1xf32> to vector<2x8x8xf32>
    %103 = arith.subf %99, %102 : vector<2x8x8xf32>
    %104 = math.exp %103 : vector<2x8x8xf32>
    %cst_27 = arith.constant dense<0.000000e+00> : vector<2x8xf32>
    %105 = vector.multi_reduction <add>, %104, %cst_27 [2] : vector<2x8x8xf32> to vector<2x8xf32>
    %106 = vector.shape_cast %105 : vector<2x8xf32> to vector<2x8x1xf32>
    %107 = tpu.reciprocal %106 {approx = true} : vector<2x8x1xf32> -> vector<2x8x1xf32>
    %108 = vector.broadcast %107 : vector<2x8x1xf32> to vector<2x8x8xf32>
    %109 = arith.mulf %104, %108 : vector<2x8x8xf32>
    %110 = arith.truncf %109 : vector<2x8x8xf32> to vector<2x8x8xbf16>
    "tpu.trace_start"() <{level = 10 : i32, message = "bqk,bkd->bqd"}> : () -> ()
    %cst_28 = arith.constant dense<0.000000e+00> : vector<2x8x24xf32>
    %111 = tpu.matmul %110, %98, %cst_28 {dimension_numbers = #tpu.dot_dimension_numbers<[2], [1], [1], [2], [0, 0, 0, 1, 1, 2], [0], [0]>} : vector<2x8x8xbf16>, vector<2x8x24xbf16>, vector<2x8x24xf32> -> vector<2x8x24xf32>
    "tpu.trace_stop"() : () -> ()
    %112 = vector.shape_cast %111 : vector<2x8x24xf32> to vector<16x24xf32>
    %113 = vector.extract_strided_slice %12 {offsets = [0, 96], sizes = [16, 24], strides = [1, 1]} : vector<16x576xf32> to vector<16x24xf32>
    %cst_29 = arith.constant 0.204124153 : f32
    %114 = vector.broadcast %cst_29 : f32 to vector<16x24xf32>
    %115 = arith.mulf %113, %114 : vector<16x24xf32>
    %116 = vector.shape_cast %115 : vector<16x24xf32> to vector<2x8x24xf32>
    %117 = arith.truncf %116 : vector<2x8x24xf32> to vector<2x8x24xbf16>
    %118 = vector.extract_strided_slice %12 {offsets = [0, 288], sizes = [16, 24], strides = [1, 1]} : vector<16x576xf32> to vector<16x24xf32>
    %119 = vector.shape_cast %118 : vector<16x24xf32> to vector<2x8x24xf32>
    %120 = arith.truncf %119 : vector<2x8x24xf32> to vector<2x8x24xbf16>
    %121 = vector.extract_strided_slice %12 {offsets = [0, 480], sizes = [16, 24], strides = [1, 1]} : vector<16x576xf32> to vector<16x24xf32>
    %122 = vector.shape_cast %121 : vector<16x24xf32> to vector<2x8x24xf32>
    %123 = arith.truncf %122 : vector<2x8x24xf32> to vector<2x8x24xbf16>
    "tpu.trace_start"() <{level = 10 : i32, message = "bqd,bkd->bqk"}> : () -> ()
    %cst_30 = arith.constant dense<0.000000e+00> : vector<2x8x8xf32>
    %124 = tpu.matmul %117, %120, %cst_30 {dimension_numbers = #tpu.dot_dimension_numbers<[2], [2], [1], [1], [0, 0, 0, 1, 1, 1], [0], [0]>} : vector<2x8x24xbf16>, vector<2x8x24xbf16>, vector<2x8x8xf32> -> vector<2x8x8xf32>
    "tpu.trace_stop"() : () -> ()
    %cst_31 = arith.constant dense<0xFF800000> : vector<2x8xf32>
    %125 = vector.multi_reduction <maximumf>, %124, %cst_31 [2] : vector<2x8x8xf32> to vector<2x8xf32>
    %126 = vector.shape_cast %125 : vector<2x8xf32> to vector<2x8x1xf32>
    %127 = vector.broadcast %126 : vector<2x8x1xf32> to vector<2x8x8xf32>
    %128 = arith.subf %124, %127 : vector<2x8x8xf32>
    %129 = math.exp %128 : vector<2x8x8xf32>
    %cst_32 = arith.constant dense<0.000000e+00> : vector<2x8xf32>
    %130 = vector.multi_reduction <add>, %129, %cst_32 [2] : vector<2x8x8xf32> to vector<2x8xf32>
    %131 = vector.shape_cast %130 : vector<2x8xf32> to vector<2x8x1xf32>
    %132 = tpu.reciprocal %131 {approx = true} : vector<2x8x1xf32> -> vector<2x8x1xf32>
    %133 = vector.broadcast %132 : vector<2x8x1xf32> to vector<2x8x8xf32>
    %134 = arith.mulf %129, %133 : vector<2x8x8xf32>
    %135 = arith.truncf %134 : vector<2x8x8xf32> to vector<2x8x8xbf16>
    "tpu.trace_start"() <{level = 10 : i32, message = "bqk,bkd->bqd"}> : () -> ()
    %cst_33 = arith.constant dense<0.000000e+00> : vector<2x8x24xf32>
    %136 = tpu.matmul %135, %123, %cst_33 {dimension_numbers = #tpu.dot_dimension_numbers<[2], [1], [1], [2], [0, 0, 0, 1, 1, 2], [0], [0]>} : vector<2x8x8xbf16>, vector<2x8x24xbf16>, vector<2x8x24xf32> -> vector<2x8x24xf32>
    "tpu.trace_stop"() : () -> ()
    %137 = vector.shape_cast %136 : vector<2x8x24xf32> to vector<16x24xf32>
    %138 = vector.extract_strided_slice %12 {offsets = [0, 120], sizes = [16, 24], strides = [1, 1]} : vector<16x576xf32> to vector<16x24xf32>
    %cst_34 = arith.constant 0.204124153 : f32
    %139 = vector.broadcast %cst_34 : f32 to vector<16x24xf32>
    %140 = arith.mulf %138, %139 : vector<16x24xf32>
    %141 = vector.shape_cast %140 : vector<16x24xf32> to vector<2x8x24xf32>
    %142 = arith.truncf %141 : vector<2x8x24xf32> to vector<2x8x24xbf16>
    %143 = vector.extract_strided_slice %12 {offsets = [0, 312], sizes = [16, 24], strides = [1, 1]} : vector<16x576xf32> to vector<16x24xf32>
    %144 = vector.shape_cast %143 : vector<16x24xf32> to vector<2x8x24xf32>
    %145 = arith.truncf %144 : vector<2x8x24xf32> to vector<2x8x24xbf16>
    %146 = vector.extract_strided_slice %12 {offsets = [0, 504], sizes = [16, 24], strides = [1, 1]} : vector<16x576xf32> to vector<16x24xf32>
    %147 = vector.shape_cast %146 : vector<16x24xf32> to vector<2x8x24xf32>
    %148 = arith.truncf %147 : vector<2x8x24xf32> to vector<2x8x24xbf16>
    "tpu.trace_start"() <{level = 10 : i32, message = "bqd,bkd->bqk"}> : () -> ()
    %cst_35 = arith.constant dense<0.000000e+00> : vector<2x8x8xf32>
    %149 = tpu.matmul %142, %145, %cst_35 {dimension_numbers = #tpu.dot_dimension_numbers<[2], [2], [1], [1], [0, 0, 0, 1, 1, 1], [0], [0]>} : vector<2x8x24xbf16>, vector<2x8x24xbf16>, vector<2x8x8xf32> -> vector<2x8x8xf32>
    "tpu.trace_stop"() : () -> ()
    %cst_36 = arith.constant dense<0xFF800000> : vector<2x8xf32>
    %150 = vector.multi_reduction <maximumf>, %149, %cst_36 [2] : vector<2x8x8xf32> to vector<2x8xf32>
    %151 = vector.shape_cast %150 : vector<2x8xf32> to vector<2x8x1xf32>
    %152 = vector.broadcast %151 : vector<2x8x1xf32> to vector<2x8x8xf32>
    %153 = arith.subf %149, %152 : vector<2x8x8xf32>
    %154 = math.exp %153 : vector<2x8x8xf32>
    %cst_37 = arith.constant dense<0.000000e+00> : vector<2x8xf32>
    %155 = vector.multi_reduction <add>, %154, %cst_37 [2] : vector<2x8x8xf32> to vector<2x8xf32>
    %156 = vector.shape_cast %155 : vector<2x8xf32> to vector<2x8x1xf32>
    %157 = tpu.reciprocal %156 {approx = true} : vector<2x8x1xf32> -> vector<2x8x1xf32>
    %158 = vector.broadcast %157 : vector<2x8x1xf32> to vector<2x8x8xf32>
    %159 = arith.mulf %154, %158 : vector<2x8x8xf32>
    %160 = arith.truncf %159 : vector<2x8x8xf32> to vector<2x8x8xbf16>
    "tpu.trace_start"() <{level = 10 : i32, message = "bqk,bkd->bqd"}> : () -> ()
    %cst_38 = arith.constant dense<0.000000e+00> : vector<2x8x24xf32>
    %161 = tpu.matmul %160, %148, %cst_38 {dimension_numbers = #tpu.dot_dimension_numbers<[2], [1], [1], [2], [0, 0, 0, 1, 1, 2], [0], [0]>} : vector<2x8x8xbf16>, vector<2x8x24xbf16>, vector<2x8x24xf32> -> vector<2x8x24xf32>
    "tpu.trace_stop"() : () -> ()
    %162 = vector.shape_cast %161 : vector<2x8x24xf32> to vector<16x24xf32>
    %163 = vector.extract_strided_slice %12 {offsets = [0, 144], sizes = [16, 24], strides = [1, 1]} : vector<16x576xf32> to vector<16x24xf32>
    %cst_39 = arith.constant 0.204124153 : f32
    %164 = vector.broadcast %cst_39 : f32 to vector<16x24xf32>
    %165 = arith.mulf %163, %164 : vector<16x24xf32>
    %166 = vector.shape_cast %165 : vector<16x24xf32> to vector<2x8x24xf32>
    %167 = arith.truncf %166 : vector<2x8x24xf32> to vector<2x8x24xbf16>
    %168 = vector.extract_strided_slice %12 {offsets = [0, 336], sizes = [16, 24], strides = [1, 1]} : vector<16x576xf32> to vector<16x24xf32>
    %169 = vector.shape_cast %168 : vector<16x24xf32> to vector<2x8x24xf32>
    %170 = arith.truncf %169 : vector<2x8x24xf32> to vector<2x8x24xbf16>
    %171 = vector.extract_strided_slice %12 {offsets = [0, 528], sizes = [16, 24], strides = [1, 1]} : vector<16x576xf32> to vector<16x24xf32>
    %172 = vector.shape_cast %171 : vector<16x24xf32> to vector<2x8x24xf32>
    %173 = arith.truncf %172 : vector<2x8x24xf32> to vector<2x8x24xbf16>
    "tpu.trace_start"() <{level = 10 : i32, message = "bqd,bkd->bqk"}> : () -> ()
    %cst_40 = arith.constant dense<0.000000e+00> : vector<2x8x8xf32>
    %174 = tpu.matmul %167, %170, %cst_40 {dimension_numbers = #tpu.dot_dimension_numbers<[2], [2], [1], [1], [0, 0, 0, 1, 1, 1], [0], [0]>} : vector<2x8x24xbf16>, vector<2x8x24xbf16>, vector<2x8x8xf32> -> vector<2x8x8xf32>
    "tpu.trace_stop"() : () -> ()
    %cst_41 = arith.constant dense<0xFF800000> : vector<2x8xf32>
    %175 = vector.multi_reduction <maximumf>, %174, %cst_41 [2] : vector<2x8x8xf32> to vector<2x8xf32>
    %176 = vector.shape_cast %175 : vector<2x8xf32> to vector<2x8x1xf32>
    %177 = vector.broadcast %176 : vector<2x8x1xf32> to vector<2x8x8xf32>
    %178 = arith.subf %174, %177 : vector<2x8x8xf32>
    %179 = math.exp %178 : vector<2x8x8xf32>
    %cst_42 = arith.constant dense<0.000000e+00> : vector<2x8xf32>
    %180 = vector.multi_reduction <add>, %179, %cst_42 [2] : vector<2x8x8xf32> to vector<2x8xf32>
    %181 = vector.shape_cast %180 : vector<2x8xf32> to vector<2x8x1xf32>
    %182 = tpu.reciprocal %181 {approx = true} : vector<2x8x1xf32> -> vector<2x8x1xf32>
    %183 = vector.broadcast %182 : vector<2x8x1xf32> to vector<2x8x8xf32>
    %184 = arith.mulf %179, %183 : vector<2x8x8xf32>
    %185 = arith.truncf %184 : vector<2x8x8xf32> to vector<2x8x8xbf16>
    "tpu.trace_start"() <{level = 10 : i32, message = "bqk,bkd->bqd"}> : () -> ()
    %cst_43 = arith.constant dense<0.000000e+00> : vector<2x8x24xf32>
    %186 = tpu.matmul %185, %173, %cst_43 {dimension_numbers = #tpu.dot_dimension_numbers<[2], [1], [1], [2], [0, 0, 0, 1, 1, 2], [0], [0]>} : vector<2x8x8xbf16>, vector<2x8x24xbf16>, vector<2x8x24xf32> -> vector<2x8x24xf32>
    "tpu.trace_stop"() : () -> ()
    %187 = vector.shape_cast %186 : vector<2x8x24xf32> to vector<16x24xf32>
    %188 = vector.extract_strided_slice %12 {offsets = [0, 168], sizes = [16, 24], strides = [1, 1]} : vector<16x576xf32> to vector<16x24xf32>
    %cst_44 = arith.constant 0.204124153 : f32
    %189 = vector.broadcast %cst_44 : f32 to vector<16x24xf32>
    %190 = arith.mulf %188, %189 : vector<16x24xf32>
    %191 = vector.shape_cast %190 : vector<16x24xf32> to vector<2x8x24xf32>
    %192 = arith.truncf %191 : vector<2x8x24xf32> to vector<2x8x24xbf16>
    %193 = vector.extract_strided_slice %12 {offsets = [0, 360], sizes = [16, 24], strides = [1, 1]} : vector<16x576xf32> to vector<16x24xf32>
    %194 = vector.shape_cast %193 : vector<16x24xf32> to vector<2x8x24xf32>
    %195 = arith.truncf %194 : vector<2x8x24xf32> to vector<2x8x24xbf16>
    %196 = vector.extract_strided_slice %12 {offsets = [0, 552], sizes = [16, 24], strides = [1, 1]} : vector<16x576xf32> to vector<16x24xf32>
    %197 = vector.shape_cast %196 : vector<16x24xf32> to vector<2x8x24xf32>
    %198 = arith.truncf %197 : vector<2x8x24xf32> to vector<2x8x24xbf16>
    "tpu.trace_start"() <{level = 10 : i32, message = "bqd,bkd->bqk"}> : () -> ()
    %cst_45 = arith.constant dense<0.000000e+00> : vector<2x8x8xf32>
    %199 = tpu.matmul %192, %195, %cst_45 {dimension_numbers = #tpu.dot_dimension_numbers<[2], [2], [1], [1], [0, 0, 0, 1, 1, 1], [0], [0]>} : vector<2x8x24xbf16>, vector<2x8x24xbf16>, vector<2x8x8xf32> -> vector<2x8x8xf32>
    "tpu.trace_stop"() : () -> ()
    %cst_46 = arith.constant dense<0xFF800000> : vector<2x8xf32>
    %200 = vector.multi_reduction <maximumf>, %199, %cst_46 [2] : vector<2x8x8xf32> to vector<2x8xf32>
    %201 = vector.shape_cast %200 : vector<2x8xf32> to vector<2x8x1xf32>
    %202 = vector.broadcast %201 : vector<2x8x1xf32> to vector<2x8x8xf32>
    %203 = arith.subf %199, %202 : vector<2x8x8xf32>
    %204 = math.exp %203 : vector<2x8x8xf32>
    %cst_47 = arith.constant dense<0.000000e+00> : vector<2x8xf32>
    %205 = vector.multi_reduction <add>, %204, %cst_47 [2] : vector<2x8x8xf32> to vector<2x8xf32>
    %206 = vector.shape_cast %205 : vector<2x8xf32> to vector<2x8x1xf32>
    %207 = tpu.reciprocal %206 {approx = true} : vector<2x8x1xf32> -> vector<2x8x1xf32>
    %208 = vector.broadcast %207 : vector<2x8x1xf32> to vector<2x8x8xf32>
    %209 = arith.mulf %204, %208 : vector<2x8x8xf32>
    %210 = arith.truncf %209 : vector<2x8x8xf32> to vector<2x8x8xbf16>
    "tpu.trace_start"() <{level = 10 : i32, message = "bqk,bkd->bqd"}> : () -> ()
    %cst_48 = arith.constant dense<0.000000e+00> : vector<2x8x24xf32>
    %211 = tpu.matmul %210, %198, %cst_48 {dimension_numbers = #tpu.dot_dimension_numbers<[2], [1], [1], [2], [0, 0, 0, 1, 1, 2], [0], [0]>} : vector<2x8x8xbf16>, vector<2x8x24xbf16>, vector<2x8x24xf32> -> vector<2x8x24xf32>
    "tpu.trace_stop"() : () -> ()
    %212 = vector.shape_cast %211 : vector<2x8x24xf32> to vector<16x24xf32>
    %213 = tpu.concatenate %37, %62, %87, %112, %137, %162, %187, %212 in 1 : vector<16x24xf32>, vector<16x24xf32>, vector<16x24xf32>, vector<16x24xf32>, vector<16x24xf32>, vector<16x24xf32>, vector<16x24xf32>, vector<16x24xf32> -> vector<16x192xf32>
    %214 = arith.truncf %213 : vector<16x192xf32> to vector<16x192xbf16>
    %c0_49 = arith.constant 0 : index
    %c0_50 = arith.constant 0 : index
    %c0_51 = arith.constant 0 : index
    %215 = vector.load %arg5[%c0_49, %c0_50, %c0_51] : memref<1x192x192xbf16, #tpu.memory_space<vmem>>, vector<1x192x192xbf16>
    %216 = vector.shape_cast %215 : vector<1x192x192xbf16> to vector<192x192xbf16>
    %cst_52 = arith.constant dense<0.000000e+00> : vector<16x192xf32>
    %217 = tpu.matmul %214, %216, %cst_52 {dimension_numbers = #tpu.dot_dimension_numbers<[1], [0], [0], [1], [0, 0, 1, 1], [], []>} : vector<16x192xbf16>, vector<192x192xbf16>, vector<16x192xf32> -> vector<16x192xf32>
    %c0_53 = arith.constant 0 : index
    %c0_54 = arith.constant 0 : index
    %c0_55 = arith.constant 0 : index
    %218 = vector.load %arg6[%c0_53, %c0_54, %c0_55] : memref<1x1x192xf32, #tpu.memory_space<vmem>>, vector<1x1x192xf32>
    %219 = vector.shape_cast %218 : vector<1x1x192xf32> to vector<1x192xf32>
    %220 = vector.broadcast %219 : vector<1x192xf32> to vector<16x192xf32>
    %221 = arith.addf %217, %220 : vector<16x192xf32>
    %222 = arith.addf %4, %221 : vector<16x192xf32>
    %cst_56 = arith.constant dense<0.000000e+00> : vector<16xf32>
    %223 = vector.multi_reduction <add>, %222, %cst_56 [1] : vector<16x192xf32> to vector<16xf32>
    %224 = vector.shape_cast %223 : vector<16xf32> to vector<16x1xf32>
    %cst_57 = arith.constant 1.920000e+02 : f32
    %225 = vector.broadcast %cst_57 : f32 to vector<16x1xf32>
    %226 = arith.divf %224, %225 : vector<16x1xf32>
    %227 = vector.broadcast %226 : vector<16x1xf32> to vector<16x192xf32>
    %228 = arith.subf %222, %227 : vector<16x192xf32>
    %229 = vector.broadcast %226 : vector<16x1xf32> to vector<16x192xf32>
    %230 = arith.subf %222, %229 : vector<16x192xf32>
    %231 = arith.mulf %228, %230 : vector<16x192xf32>
    %cst_58 = arith.constant dense<0.000000e+00> : vector<16xf32>
    %232 = vector.multi_reduction <add>, %231, %cst_58 [1] : vector<16x192xf32> to vector<16xf32>
    %233 = vector.shape_cast %232 : vector<16xf32> to vector<16x1xf32>
    %cst_59 = arith.constant 1.920000e+02 : f32
    %234 = vector.broadcast %cst_59 : f32 to vector<16x1xf32>
    %235 = arith.divf %233, %234 : vector<16x1xf32>
    %236 = vector.broadcast %226 : vector<16x1xf32> to vector<16x192xf32>
    %237 = arith.subf %222, %236 : vector<16x192xf32>
    %cst_60 = arith.constant 9.99999974E-6 : f32
    %238 = vector.broadcast %cst_60 : f32 to vector<16x1xf32>
    %239 = arith.addf %235, %238 : vector<16x1xf32>
    %240 = math.rsqrt %239 : vector<16x1xf32>
    %241 = vector.broadcast %240 : vector<16x1xf32> to vector<16x192xf32>
    %242 = arith.mulf %237, %241 : vector<16x192xf32>
    %c0_61 = arith.constant 0 : index
    %c0_62 = arith.constant 0 : index
    %c0_63 = arith.constant 0 : index
    %243 = vector.load %arg7[%c0_61, %c0_62, %c0_63] : memref<1x1x192xf32, #tpu.memory_space<vmem>>, vector<1x1x192xf32>
    %244 = vector.shape_cast %243 : vector<1x1x192xf32> to vector<1x192xf32>
    %245 = vector.broadcast %244 : vector<1x192xf32> to vector<16x192xf32>
    %246 = arith.mulf %242, %245 : vector<16x192xf32>
    %c0_64 = arith.constant 0 : index
    %c0_65 = arith.constant 0 : index
    %c0_66 = arith.constant 0 : index
    %247 = vector.load %arg8[%c0_64, %c0_65, %c0_66] : memref<1x1x192xf32, #tpu.memory_space<vmem>>, vector<1x1x192xf32>
    %248 = vector.shape_cast %247 : vector<1x1x192xf32> to vector<1x192xf32>
    %249 = vector.broadcast %248 : vector<1x192xf32> to vector<16x192xf32>
    %250 = arith.addf %246, %249 : vector<16x192xf32>
    %251 = arith.truncf %250 : vector<16x192xf32> to vector<16x192xbf16>
    %c0_67 = arith.constant 0 : index
    %c0_68 = arith.constant 0 : index
    %c0_69 = arith.constant 0 : index
    %252 = vector.load %arg9[%c0_67, %c0_68, %c0_69] : memref<1x192x768xbf16, #tpu.memory_space<vmem>>, vector<1x192x768xbf16>
    %253 = vector.shape_cast %252 : vector<1x192x768xbf16> to vector<192x768xbf16>
    %cst_70 = arith.constant dense<0.000000e+00> : vector<16x768xf32>
    %254 = tpu.matmul %251, %253, %cst_70 {dimension_numbers = #tpu.dot_dimension_numbers<[1], [0], [0], [1], [0, 0, 1, 1], [], []>} : vector<16x192xbf16>, vector<192x768xbf16>, vector<16x768xf32> -> vector<16x768xf32>
    %c0_71 = arith.constant 0 : index
    %c0_72 = arith.constant 0 : index
    %c0_73 = arith.constant 0 : index
    %255 = vector.load %arg10[%c0_71, %c0_72, %c0_73] : memref<1x1x768xf32, #tpu.memory_space<vmem>>, vector<1x1x768xf32>
    %256 = vector.shape_cast %255 : vector<1x1x768xf32> to vector<1x768xf32>
    %257 = vector.broadcast %256 : vector<1x768xf32> to vector<16x768xf32>
    %258 = arith.addf %254, %257 : vector<16x768xf32>
    %cst_74 = arith.constant 0.000000e+00 : f32
    %259 = vector.broadcast %cst_74 : f32 to vector<16x768xf32>
    %260 = arith.maximumf %258, %259 : vector<16x768xf32>
    %261 = arith.truncf %260 : vector<16x768xf32> to vector<16x768xbf16>
    %c0_75 = arith.constant 0 : index
    %c0_76 = arith.constant 0 : index
    %c0_77 = arith.constant 0 : index
    %262 = vector.load %arg11[%c0_75, %c0_76, %c0_77] : memref<1x768x192xbf16, #tpu.memory_space<vmem>>, vector<1x768x192xbf16>
    %263 = vector.shape_cast %262 : vector<1x768x192xbf16> to vector<768x192xbf16>
    %cst_78 = arith.constant dense<0.000000e+00> : vector<16x192xf32>
    %264 = tpu.matmul %261, %263, %cst_78 {dimension_numbers = #tpu.dot_dimension_numbers<[1], [0], [0], [1], [0, 0, 1, 1], [], []>} : vector<16x768xbf16>, vector<768x192xbf16>, vector<16x192xf32> -> vector<16x192xf32>
    %c0_79 = arith.constant 0 : index
    %c0_80 = arith.constant 0 : index
    %c0_81 = arith.constant 0 : index
    %265 = vector.load %arg12[%c0_79, %c0_80, %c0_81] : memref<1x1x192xf32, #tpu.memory_space<vmem>>, vector<1x1x192xf32>
    %266 = vector.shape_cast %265 : vector<1x1x192xf32> to vector<1x192xf32>
    %267 = vector.broadcast %266 : vector<1x192xf32> to vector<16x192xf32>
    %268 = arith.addf %264, %267 : vector<16x192xf32>
    %269 = arith.addf %250, %268 : vector<16x192xf32>
    %cst_82 = arith.constant dense<0.000000e+00> : vector<16xf32>
    %270 = vector.multi_reduction <add>, %269, %cst_82 [1] : vector<16x192xf32> to vector<16xf32>
    %271 = vector.shape_cast %270 : vector<16xf32> to vector<16x1xf32>
    %cst_83 = arith.constant 1.920000e+02 : f32
    %272 = vector.broadcast %cst_83 : f32 to vector<16x1xf32>
    %273 = arith.divf %271, %272 : vector<16x1xf32>
    %274 = vector.broadcast %273 : vector<16x1xf32> to vector<16x192xf32>
    %275 = arith.subf %269, %274 : vector<16x192xf32>
    %276 = vector.broadcast %273 : vector<16x1xf32> to vector<16x192xf32>
    %277 = arith.subf %269, %276 : vector<16x192xf32>
    %278 = arith.mulf %275, %277 : vector<16x192xf32>
    %cst_84 = arith.constant dense<0.000000e+00> : vector<16xf32>
    %279 = vector.multi_reduction <add>, %278, %cst_84 [1] : vector<16x192xf32> to vector<16xf32>
    %280 = vector.shape_cast %279 : vector<16xf32> to vector<16x1xf32>
    %cst_85 = arith.constant 1.920000e+02 : f32
    %281 = vector.broadcast %cst_85 : f32 to vector<16x1xf32>
    %282 = arith.divf %280, %281 : vector<16x1xf32>
    %283 = vector.broadcast %273 : vector<16x1xf32> to vector<16x192xf32>
    %284 = arith.subf %269, %283 : vector<16x192xf32>
    %cst_86 = arith.constant 9.99999974E-6 : f32
    %285 = vector.broadcast %cst_86 : f32 to vector<16x1xf32>
    %286 = arith.addf %282, %285 : vector<16x1xf32>
    %287 = math.rsqrt %286 : vector<16x1xf32>
    %288 = vector.broadcast %287 : vector<16x1xf32> to vector<16x192xf32>
    %289 = arith.mulf %284, %288 : vector<16x192xf32>
    %c0_87 = arith.constant 0 : index
    %c0_88 = arith.constant 0 : index
    %c0_89 = arith.constant 0 : index
    %290 = vector.load %arg13[%c0_87, %c0_88, %c0_89] : memref<1x1x192xf32, #tpu.memory_space<vmem>>, vector<1x1x192xf32>
    %291 = vector.shape_cast %290 : vector<1x1x192xf32> to vector<1x192xf32>
    %292 = vector.broadcast %291 : vector<1x192xf32> to vector<16x192xf32>
    %293 = arith.mulf %289, %292 : vector<16x192xf32>
    %c0_90 = arith.constant 0 : index
    %c0_91 = arith.constant 0 : index
    %c0_92 = arith.constant 0 : index
    %294 = vector.load %arg14[%c0_90, %c0_91, %c0_92] : memref<1x1x192xf32, #tpu.memory_space<vmem>>, vector<1x1x192xf32>
    %295 = vector.shape_cast %294 : vector<1x1x192xf32> to vector<1x192xf32>
    %296 = vector.broadcast %295 : vector<1x192xf32> to vector<16x192xf32>
    %297 = arith.addf %293, %296 : vector<16x192xf32>
    %298 = vector.shape_cast %297 : vector<16x192xf32> to vector<2x8x192xf32>
    %c0_93 = arith.constant 0 : index
    %c0_94 = arith.constant 0 : index
    %c0_95 = arith.constant 0 : index
    %299 = vector.load %arg16[%c0_93, %c0_94, %c0_95] : memref<2x8x192xf32, #tpu.memory_space<vmem>>, vector<2x8x192xf32>
    tpu.vector_store %arg16[%c0_93, %c0_94, %c0_95], %298 {strides = array<i32>} : memref<2x8x192xf32, #tpu.memory_space<vmem>>, vector<2x8x192xf32>,
    %c1_i32 = arith.constant 1 : i32
    %300 = arith.cmpi eq, %arg1, %c1_i32 : i32
    %301 = arith.extui %300 : i1 to i32
    %c0_i32_96 = arith.constant 0 : i32
    %302 = arith.cmpi ne, %301, %c0_i32_96 : i32
    scf.if %302 {
      %c0_97 = arith.constant 0 : index
      %c0_98 = arith.constant 0 : index
      %c0_99 = arith.constant 0 : index
      %303 = vector.load %arg15[%c0_97, %c0_98, %c0_99] : memref<2x8x192xf32, #tpu.memory_space<vmem>>, vector<2x8x192xf32>
      tpu.vector_store %arg15[%c0_97, %c0_98, %c0_99], %298 {strides = array<i32>} : memref<2x8x192xf32, #tpu.memory_space<vmem>>, vector<2x8x192xf32>,
    } else {
    }
    return
  }
  func.func @transform_0(%arg0: i32, %arg1: i32) -> (i32, i32, i32) {
    %c0_i32 = arith.constant 0 : i32
    %c0_i32_0 = arith.constant 0 : i32
    %c0_i32_1 = arith.constant 0 : i32
    return %arg0, %c0_i32, %c0_i32_0 : i32, i32, i32
  }
  func.func @transform_1(%arg0: i32, %arg1: i32) -> (i32, i32, i32) {
    %c0_i32 = arith.constant 0 : i32
    %c0_i32_0 = arith.constant 0 : i32
    %c0_i32_1 = arith.constant 0 : i32
    return %arg1, %c0_i32, %c0_i32_0 : i32, i32, i32
  }
  func.func @transform_2(%arg0: i32, %arg1: i32) -> (i32, i32, i32) {
    %c0_i32 = arith.constant 0 : i32
    %c0_i32_0 = arith.constant 0 : i32
    %c0_i32_1 = arith.constant 0 : i32
    return %arg1, %c0_i32, %c0_i32_0 : i32, i32, i32
  }
  func.func @transform_3(%arg0: i32, %arg1: i32) -> (i32, i32, i32) {
    %c0_i32 = arith.constant 0 : i32
    %c0_i32_0 = arith.constant 0 : i32
    %c0_i32_1 = arith.constant 0 : i32
    return %arg1, %c0_i32, %c0_i32_0 : i32, i32, i32
  }
  func.func @transform_4(%arg0: i32, %arg1: i32) -> (i32, i32, i32) {
    %c0_i32 = arith.constant 0 : i32
    %c0_i32_0 = arith.constant 0 : i32
    %c0_i32_1 = arith.constant 0 : i32
    return %arg1, %c0_i32, %c0_i32_0 : i32, i32, i32
  }
  func.func @transform_5(%arg0: i32, %arg1: i32) -> (i32, i32, i32) {
    %c0_i32 = arith.constant 0 : i32
    %c0_i32_0 = arith.constant 0 : i32
    %c0_i32_1 = arith.constant 0 : i32
    return %arg1, %c0_i32, %c0_i32_0 : i32, i32, i32
  }
  func.func @transform_6(%arg0: i32, %arg1: i32) -> (i32, i32, i32) {
    %c0_i32 = arith.constant 0 : i32
    %c0_i32_0 = arith.constant 0 : i32
    %c0_i32_1 = arith.constant 0 : i32
    return %arg1, %c0_i32, %c0_i32_0 : i32, i32, i32
  }
  func.func @transform_7(%arg0: i32, %arg1: i32) -> (i32, i32, i32) {
    %c0_i32 = arith.constant 0 : i32
    %c0_i32_0 = arith.constant 0 : i32
    %c0_i32_1 = arith.constant 0 : i32
    return %arg1, %c0_i32, %c0_i32_0 : i32, i32, i32
  }
  func.func @transform_8(%arg0: i32, %arg1: i32) -> (i32, i32, i32) {
    %c0_i32 = arith.constant 0 : i32
    %c0_i32_0 = arith.constant 0 : i32
    %c0_i32_1 = arith.constant 0 : i32
    return %arg1, %c0_i32, %c0_i32_0 : i32, i32, i32
  }
  func.func @transform_9(%arg0: i32, %arg1: i32) -> (i32, i32, i32) {
    %c0_i32 = arith.constant 0 : i32
    %c0_i32_0 = arith.constant 0 : i32
    %c0_i32_1 = arith.constant 0 : i32
    return %arg1, %c0_i32, %c0_i32_0 : i32, i32, i32
  }
  func.func @transform_10(%arg0: i32, %arg1: i32) -> (i32, i32, i32) {
    %c0_i32 = arith.constant 0 : i32
    %c0_i32_0 = arith.constant 0 : i32
    %c0_i32_1 = arith.constant 0 : i32
    return %arg1, %c0_i32, %c0_i32_0 : i32, i32, i32
  }
  func.func @transform_11(%arg0: i32, %arg1: i32) -> (i32, i32, i32) {
    %c0_i32 = arith.constant 0 : i32
    %c0_i32_0 = arith.constant 0 : i32
    %c0_i32_1 = arith.constant 0 : i32
    return %arg1, %c0_i32, %c0_i32_0 : i32, i32, i32
  }
  func.func @transform_12(%arg0: i32, %arg1: i32) -> (i32, i32, i32) {
    %c0_i32 = arith.constant 0 : i32
    %c0_i32_0 = arith.constant 0 : i32
    %c0_i32_1 = arith.constant 0 : i32
    return %arg1, %c0_i32, %c0_i32_0 : i32, i32, i32
  }
  func.func @transform_13(%arg0: i32, %arg1: i32) -> (i32, i32, i32) {
    %c0_i32 = arith.constant 0 : i32
    %c0_i32_0 = arith.constant 0 : i32
    %c0_i32_1 = arith.constant 0 : i32
    return %arg0, %c0_i32, %c0_i32_0 : i32, i32, i32
  }
}

</mosaic_0001>

<llo_original>
// kernel: tpu_custom_call.1
$region0: #{tpu_custom_call.1}
  #allocation0 [shape = 'u32[]', space=smem, size = 0x4, offset = 0x4, fixed_abs, tag = 'smem constant byte address 0x4 - core index']
  #allocation1 [shape = 'u32[72,128]{1,0:T(1,128)}', space=vmem, size = 0x9000, scoped, tag = 'internal scratch']
  #allocation2 [shape = 'f32[2,8,192]{2,1,0:T(8,128)}', space=vmem, size = 0x4000, scoped, tag = 'scratch operand']
  %s0 = inlined_call_operand.vmem [shape: f32[2,8,192], index: 0, kind: input, shape index: {}]
  %s1 = inlined_call_operand.vmem [shape: bf16[2,192,576], index: 1, kind: input, shape index: {}]
  %s2 = inlined_call_operand.vmem [shape: f32[2,1,576], index: 2, kind: input, shape index: {}]
  %s3 = inlined_call_operand.vmem [shape: bf16[2,192,192], index: 3, kind: input, shape index: {}]
  %s4 = inlined_call_operand.vmem [shape: f32[2,1,192], index: 4, kind: input, shape index: {}]
  %s5 = inlined_call_operand.vmem [shape: f32[2,1,192], index: 5, kind: input, shape index: {}]
  %s6 = inlined_call_operand.vmem [shape: f32[2,1,192], index: 6, kind: input, shape index: {}]
  %s7 = inlined_call_operand.vmem [shape: bf16[2,192,768], index: 7, kind: input, shape index: {}]
  %s8 = inlined_call_operand.vmem [shape: f32[2,1,768], index: 8, kind: input, shape index: {}]
  %s9 = inlined_call_operand.vmem [shape: bf16[2,768,192], index: 9, kind: input, shape index: {}]
  %s10 = inlined_call_operand.vmem [shape: f32[2,1,192], index: 10, kind: input, shape index: {}]
  %s11 = inlined_call_operand.vmem [shape: f32[2,1,192], index: 11, kind: input, shape index: {}]
  %s12 = inlined_call_operand.vmem [shape: f32[2,1,192], index: 12, kind: input, shape index: {}]
  %s13 = inlined_call_operand.hbm [shape: f32[2,8,192], index: 13, kind: output, shape index: {}]
  %s14 = sld [smem:[#allocation0]]
  $region93: #{tpu_custom_call.1} parent=0
    _
  %s16 = ssub.s32 1, %s14
  %s17 = scalar_select 0, %s16, %s14
  $region1: #{tpu_custom_call.1} parent=0
    #allocation3 [shape = 'u8[16384]{0}', space=vmem, size = 0x4000, scoped, tag = 'output window, operand 0, single buffered']
    #allocation4 [shape = 's32[2]{0}', space=sflag, size = 0x8, scoped, tag = 'scoped memory for tpu_custom_call.1']
    %18 = vsyncpa [#allocation4], 0
    loop: start=0, step=1, limit=4
    $region2: #{tpu_custom_call.1} parent=1 // loop_pre_header
      _
    $region3: #{tpu_custom_call.1} parent=1 // loop_header
      %s20 = sphi 0, %s24
      %p21 = scmp.ge.s32.totalorder %s20, 4
      %s27 = sphi 0, %s39
      %s28 = sphi 0, %s35
      %s29 = sphi 0, %s27
      %s30 = sphi 0, %s28
      %s31 = sphi 0, %s29
      %s32 = sphi 0, %s30
      %s42 = sphi 0, %s44
      %s45 = sphi 0, %s42
      %s46 = sphi 0, %s45
      %s62 = sphi 0, %s46
      %s68 = sphi 0, %s70
      %s71 = sphi 0, %s68
      %s72 = sphi 0, %s71
      %s88 = sphi 0, %s72
      %s94 = sphi 0, %s96
      %s97 = sphi 0, %s94
      %s98 = sphi 0, %s97
      %s114 = sphi 0, %s98
      %s120 = sphi 0, %s122
      %s123 = sphi 0, %s120
      %s124 = sphi 0, %s123
      %s140 = sphi 0, %s124
      %s146 = sphi 0, %s148
      %s149 = sphi 0, %s146
      %s150 = sphi 0, %s149
      %s166 = sphi 0, %s150
      %s172 = sphi 0, %s174
      %s175 = sphi 0, %s172
      %s176 = sphi 0, %s175
      %s192 = sphi 0, %s176
      %s198 = sphi 0, %s200
      %s201 = sphi 0, %s198
      %s202 = sphi 0, %s201
      %s218 = sphi 0, %s202
      %s224 = sphi 0, %s226
      %s227 = sphi 0, %s224
      %s228 = sphi 0, %s227
      %s244 = sphi 0, %s228
      %s250 = sphi 0, %s252
      %s253 = sphi 0, %s250
      %s254 = sphi 0, %s253
      %s270 = sphi 0, %s254
      %s276 = sphi 0, %s278
      %s279 = sphi 0, %s276
      %s280 = sphi 0, %s279
      %s296 = sphi 0, %s280
      %s302 = sphi 0, %s304
      %s305 = sphi 0, %s302
      %s306 = sphi 0, %s305
      %s322 = sphi 0, %s306
      %s328 = sphi 0, %s330
      %s331 = sphi 0, %s328
      %s332 = sphi 0, %s331
      %s348 = sphi 0, %s332
      %s354 = sphi 0, %s356
      %s357 = sphi 0, %s354
      %s358 = sphi 0, %s357
      %s374 = sphi 0, %s358
      %s380 = sphi 0, %s382
      %s383 = sphi 0, %s380
      %s384 = sphi 0, %s383
      %s400 = sphi 0, %s384
    $region4: #{tpu_custom_call.1} parent=1 // loop_header_branch
      %23 = sbr.rel (%p21) target = $region8
    $region5: #{tpu_custom_call.1} parent=1 // loop_body
      %s25 = ssub.s32 %s20, 1
      %s26 = ssub.s32 %s20, 2
      %s33 = sadd.s32 1, %s28
      %p34 = scmp.ge.s32.totalorder %s33, 2
      %s35 = scalar_select %p34, 0, %s33
      %s36 = sadd.s32 1, %s27
      %s37 = scalar_select %p34, %s36, %s27
      %p38 = scmp.ge.s32.totalorder %s37, 1
      %s39 = scalar_select %p38, 0, %s37
      %s40 = ssub.s32 %s27, %s39
      %p41 = scmp.eq.s32.totalorder %s40, 0
      %s43 = sadd.s32 %s42, 1
      %s44 = scalar_select %p41, %s42, %s43
      %p47 = pneg %p41
      %p48 = scmp.eq.s32.totalorder %s20, 1
      %p49 = por %p47, %p48
      %p50 = scmp.ne.s32.totalorder %s42, %s45
      %p51 = scmp.eq.s32.totalorder %s20, 0
      %p52 = por %p50, %p51
      %p53 = scmp.ne.s32.totalorder %s42, %s45
      %p54 = scmp.eq.s32.totalorder %s25, 1
      %p55 = por %p53, %p54
      %p56 = scmp.ne.s32.totalorder %s45, %s46
      %p57 = scmp.eq.s32.totalorder %s25, 0
      %p58 = por %p56, %p57
      %p59 = scmp.ne.s32.totalorder %s45, %s46
      %p60 = scmp.eq.s32.totalorder %s26, 1
      %p61 = por %p59, %p60
      %p63 = scmp.ne.s32.totalorder %s46, %s62
      %p64 = scmp.eq.s32.totalorder %s26, 0
      %p65 = por %p63, %p64
      %s66 = ssub.s32 %s28, %s35
      %p67 = scmp.eq.s32.totalorder %s66, 0
      %s69 = sadd.s32 %s68, 1
      %s70 = scalar_select %p67, %s68, %s69
      %p73 = pneg %p67
      %p74 = scmp.eq.s32.totalorder %s20, 1
      %p75 = por %p73, %p74
      %p76 = scmp.ne.s32.totalorder %s68, %s71
      %p77 = scmp.eq.s32.totalorder %s20, 0
      %p78 = por %p76, %p77
      %p79 = scmp.ne.s32.totalorder %s68, %s71
      %p80 = scmp.eq.s32.totalorder %s25, 1
      %p81 = por %p79, %p80
      %p82 = scmp.ne.s32.totalorder %s71, %s72
      %p83 = scmp.eq.s32.totalorder %s25, 0
      %p84 = por %p82, %p83
      %p85 = scmp.ne.s32.totalorder %s71, %s72
      %p86 = scmp.eq.s32.totalorder %s26, 1
      %p87 = por %p85, %p86
      %p89 = scmp.ne.s32.totalorder %s72, %s88
      %p90 = scmp.eq.s32.totalorder %s26, 0
      %p91 = por %p89, %p90
      %s92 = ssub.s32 %s28, %s35
      %p93 = scmp.eq.s32.totalorder %s92, 0
      %s95 = sadd.s32 %s94, 1
      %s96 = scalar_select %p93, %s94, %s95
      %p99 = pneg %p93
      %p100 = scmp.eq.s32.totalorder %s20, 1
      %p101 = por %p99, %p100
      %p102 = scmp.ne.s32.totalorder %s94, %s97
      %p103 = scmp.eq.s32.totalorder %s20, 0
      %p104 = por %p102, %p103
      %p105 = scmp.ne.s32.totalorder %s94, %s97
      %p106 = scmp.eq.s32.totalorder %s25, 1
      %p107 = por %p105, %p106
      %p108 = scmp.ne.s32.totalorder %s97, %s98
      %p109 = scmp.eq.s32.totalorder %s25, 0
      %p110 = por %p108, %p109
      %p111 = scmp.ne.s32.totalorder %s97, %s98
      %p112 = scmp.eq.s32.totalorder %s26, 1
      %p113 = por %p111, %p112
      %p115 = scmp.ne.s32.totalorder %s98, %s114
      %p116 = scmp.eq.s32.totalorder %s26, 0
      %p117 = por %p115, %p116
      %s118 = ssub.s32 %s28, %s35
      %p119 = scmp.eq.s32.totalorder %s118, 0
      %s121 = sadd.s32 %s120, 1
      %s122 = scalar_select %p119, %s120, %s121
      %p125 = pneg %p119
      %p126 = scmp.eq.s32.totalorder %s20, 1
      %p127 = por %p125, %p126
      %p128 = scmp.ne.s32.totalorder %s120, %s123
      %p129 = scmp.eq.s32.totalorder %s20, 0
      %p130 = por %p128, %p129
      %p131 = scmp.ne.s32.totalorder %s120, %s123
      %p132 = scmp.eq.s32.totalorder %s25, 1
      %p133 = por %p131, %p132
      %p134 = scmp.ne.s32.totalorder %s123, %s124
      %p135 = scmp.eq.s32.totalorder %s25, 0
      %p136 = por %p134, %p135
      %p137 = scmp.ne.s32.totalorder %s123, %s124
      %p138 = scmp.eq.s32.totalorder %s26, 1
      %p139 = por %p137, %p138
      %p141 = scmp.ne.s32.totalorder %s124, %s140
      %p142 = scmp.eq.s32.totalorder %s26, 0
      %p143 = por %p141, %p142
      %s144 = ssub.s32 %s28, %s35
      %p145 = scmp.eq.s32.totalorder %s144, 0
      %s147 = sadd.s32 %s146, 1
      %s148 = scalar_select %p145, %s146, %s147
      %p151 = pneg %p145
      %p152 = scmp.eq.s32.totalorder %s20, 1
      %p153 = por %p151, %p152
      %p154 = scmp.ne.s32.totalorder %s146, %s149
      %p155 = scmp.eq.s32.totalorder %s20, 0
      %p156 = por %p154, %p155
      %p157 = scmp.ne.s32.totalorder %s146, %s149
      %p158 = scmp.eq.s32.totalorder %s25, 1
      %p159 = por %p157, %p158
      %p160 = scmp.ne.s32.totalorder %s149, %s150
      %p161 = scmp.eq.s32.totalorder %s25, 0
      %p162 = por %p160, %p161
      %p163 = scmp.ne.s32.totalorder %s149, %s150
      %p164 = scmp.eq.s32.totalorder %s26, 1
      %p165 = por %p163, %p164
      %p167 = scmp.ne.s32.totalorder %s150, %s166
      %p168 = scmp.eq.s32.totalorder %s26, 0
      %p169 = por %p167, %p168
      %s170 = ssub.s32 %s28, %s35
      %p171 = scmp.eq.s32.totalorder %s170, 0
      %s173 = sadd.s32 %s172, 1
      %s174 = scalar_select %p171, %s172, %s173
      %p177 = pneg %p171
      %p178 = scmp.eq.s32.totalorder %s20, 1
      %p179 = por %p177, %p178
      %p180 = scmp.ne.s32.totalorder %s172, %s175
      %p181 = scmp.eq.s32.totalorder %s20, 0
      %p182 = por %p180, %p181
      %p183 = scmp.ne.s32.totalorder %s172, %s175
      %p184 = scmp.eq.s32.totalorder %s25, 1
      %p185 = por %p183, %p184
      %p186 = scmp.ne.s32.totalorder %s175, %s176
      %p187 = scmp.eq.s32.totalorder %s25, 0
      %p188 = por %p186, %p187
      %p189 = scmp.ne.s32.totalorder %s175, %s176
      %p190 = scmp.eq.s32.totalorder %s26, 1
      %p191 = por %p189, %p190
      %p193 = scmp.ne.s32.totalorder %s176, %s192
      %p194 = scmp.eq.s32.totalorder %s26, 0
      %p195 = por %p193, %p194
      %s196 = ssub.s32 %s28, %s35
      %p197 = scmp.eq.s32.totalorder %s196, 0
      %s199 = sadd.s32 %s198, 1
      %s200 = scalar_select %p197, %s198, %s199
      %p203 = pneg %p197
      %p204 = scmp.eq.s32.totalorder %s20, 1
      %p205 = por %p203, %p204
      %p206 = scmp.ne.s32.totalorder %s198, %s201
      %p207 = scmp.eq.s32.totalorder %s20, 0
      %p208 = por %p206, %p207
      %p209 = scmp.ne.s32.totalorder %s198, %s201
      %p210 = scmp.eq.s32.totalorder %s25, 1
      %p211 = por %p209, %p210
      %p212 = scmp.ne.s32.totalorder %s201, %s202
      %p213 = scmp.eq.s32.totalorder %s25, 0
      %p214 = por %p212, %p213
      %p215 = scmp.ne.s32.totalorder %s201, %s202
      %p216 = scmp.eq.s32.totalorder %s26, 1
      %p217 = por %p215, %p216
      %p219 = scmp.ne.s32.totalorder %s202, %s218
      %p220 = scmp.eq.s32.totalorder %s26, 0
      %p221 = por %p219, %p220
      %s222 = ssub.s32 %s28, %s35
      %p223 = scmp.eq.s32.totalorder %s222, 0
      %s225 = sadd.s32 %s224, 1
      %s226 = scalar_select %p223, %s224, %s225
      %p229 = pneg %p223
      %p230 = scmp.eq.s32.totalorder %s20, 1
      %p231 = por %p229, %p230
      %p232 = scmp.ne.s32.totalorder %s224, %s227
      %p233 = scmp.eq.s32.totalorder %s20, 0
      %p234 = por %p232, %p233
      %p235 = scmp.ne.s32.totalorder %s224, %s227
      %p236 = scmp.eq.s32.totalorder %s25, 1
      %p237 = por %p235, %p236
      %p238 = scmp.ne.s32.totalorder %s227, %s228
      %p239 = scmp.eq.s32.totalorder %s25, 0
      %p240 = por %p238, %p239
      %p241 = scmp.ne.s32.totalorder %s227, %s228
      %p242 = scmp.eq.s32.totalorder %s26, 1
      %p243 = por %p241, %p242
      %p245 = scmp.ne.s32.totalorder %s228, %s244
      %p246 = scmp.eq.s32.totalorder %s26, 0
      %p247 = por %p245, %p246
      %s248 = ssub.s32 %s28, %s35
      %p249 = scmp.eq.s32.totalorder %s248, 0
      %s251 = sadd.s32 %s250, 1
      %s252 = scalar_select %p249, %s250, %s251
      %p255 = pneg %p249
      %p256 = scmp.eq.s32.totalorder %s20, 1
      %p257 = por %p255, %p256
      %p258 = scmp.ne.s32.totalorder %s250, %s253
      %p259 = scmp.eq.s32.totalorder %s20, 0
      %p260 = por %p258, %p259
      %p261 = scmp.ne.s32.totalorder %s250, %s253
      %p262 = scmp.eq.s32.totalorder %s25, 1
      %p263 = por %p261, %p262
      %p264 = scmp.ne.s32.totalorder %s253, %s254
      %p265 = scmp.eq.s32.totalorder %s25, 0
      %p266 = por %p264, %p265
      %p267 = scmp.ne.s32.totalorder %s253, %s254
      %p268 = scmp.eq.s32.totalorder %s26, 1
      %p269 = por %p267, %p268
      %p271 = scmp.ne.s32.totalorder %s254, %s270
      %p272 = scmp.eq.s32.totalorder %s26, 0
      %p273 = por %p271, %p272
      %s274 = ssub.s32 %s28, %s35
      %p275 = scmp.eq.s32.totalorder %s274, 0
      %s277 = sadd.s32 %s276, 1
      %s278 = scalar_select %p275, %s276, %s277
      %p281 = pneg %p275
      %p282 = scmp.eq.s32.totalorder %s20, 1
      %p283 = por %p281, %p282
      %p284 = scmp.ne.s32.totalorder %s276, %s279
      %p285 = scmp.eq.s32.totalorder %s20, 0
      %p286 = por %p284, %p285
      %p287 = scmp.ne.s32.totalorder %s276, %s279
      %p288 = scmp.eq.s32.totalorder %s25, 1
      %p289 = por %p287, %p288
      %p290 = scmp.ne.s32.totalorder %s279, %s280
      %p291 = scmp.eq.s32.totalorder %s25, 0
      %p292 = por %p290, %p291
      %p293 = scmp.ne.s32.totalorder %s279, %s280
      %p294 = scmp.eq.s32.totalorder %s26, 1
      %p295 = por %p293, %p294
      %p297 = scmp.ne.s32.totalorder %s280, %s296
      %p298 = scmp.eq.s32.totalorder %s26, 0
      %p299 = por %p297, %p298
      %s300 = ssub.s32 %s28, %s35
      %p301 = scmp.eq.s32.totalorder %s300, 0
      %s303 = sadd.s32 %s302, 1
      %s304 = scalar_select %p301, %s302, %s303
      %p307 = pneg %p301
      %p308 = scmp.eq.s32.totalorder %s20, 1
      %p309 = por %p307, %p308
      %p310 = scmp.ne.s32.totalorder %s302, %s305
      %p311 = scmp.eq.s32.totalorder %s20, 0
      %p312 = por %p310, %p311
      %p313 = scmp.ne.s32.totalorder %s302, %s305
      %p314 = scmp.eq.s32.totalorder %s25, 1
      %p315 = por %p313, %p314
      %p316 = scmp.ne.s32.totalorder %s305, %s306
      %p317 = scmp.eq.s32.totalorder %s25, 0
      %p318 = por %p316, %p317
      %p319 = scmp.ne.s32.totalorder %s305, %s306
      %p320 = scmp.eq.s32.totalorder %s26, 1
      %p321 = por %p319, %p320
      %p323 = scmp.ne.s32.totalorder %s306, %s322
      %p324 = scmp.eq.s32.totalorder %s26, 0
      %p325 = por %p323, %p324
      %s326 = ssub.s32 %s28, %s35
      %p327 = scmp.eq.s32.totalorder %s326, 0
      %s329 = sadd.s32 %s328, 1
      %s330 = scalar_select %p327, %s328, %s329
      %p333 = pneg %p327
      %p334 = scmp.eq.s32.totalorder %s20, 1
      %p335 = por %p333, %p334
      %p336 = scmp.ne.s32.totalorder %s328, %s331
      %p337 = scmp.eq.s32.totalorder %s20, 0
      %p338 = por %p336, %p337
      %p339 = scmp.ne.s32.totalorder %s328, %s331
      %p340 = scmp.eq.s32.totalorder %s25, 1
      %p341 = por %p339, %p340
      %p342 = scmp.ne.s32.totalorder %s331, %s332
      %p343 = scmp.eq.s32.totalorder %s25, 0
      %p344 = por %p342, %p343
      %p345 = scmp.ne.s32.totalorder %s331, %s332
      %p346 = scmp.eq.s32.totalorder %s26, 1
      %p347 = por %p345, %p346
      %p349 = scmp.ne.s32.totalorder %s332, %s348
      %p350 = scmp.eq.s32.totalorder %s26, 0
      %p351 = por %p349, %p350
      %s352 = ssub.s32 %s28, %s35
      %p353 = scmp.eq.s32.totalorder %s352, 0
      %s355 = sadd.s32 %s354, 1
      %s356 = scalar_select %p353, %s354, %s355
      %p359 = pneg %p353
      %p360 = scmp.eq.s32.totalorder %s20, 1
      %p361 = por %p359, %p360
      %p362 = scmp.ne.s32.totalorder %s354, %s357
      %p363 = scmp.eq.s32.totalorder %s20, 0
      %p364 = por %p362, %p363
      %p365 = scmp.ne.s32.totalorder %s354, %s357
      %p366 = scmp.eq.s32.totalorder %s25, 1
      %p367 = por %p365, %p366
      %p368 = scmp.ne.s32.totalorder %s357, %s358
      %p369 = scmp.eq.s32.totalorder %s25, 0
      %p370 = por %p368, %p369
      %p371 = scmp.ne.s32.totalorder %s357, %s358
      %p372 = scmp.eq.s32.totalorder %s26, 1
      %p373 = por %p371, %p372
      %p375 = scmp.ne.s32.totalorder %s358, %s374
      %p376 = scmp.eq.s32.totalorder %s26, 0
      %p377 = por %p375, %p376
      %s378 = ssub.s32 %s27, %s39
      %p379 = scmp.eq.s32.totalorder %s378, 0
      %s381 = sadd.s32 %s380, 1
      %s382 = scalar_select %p379, %s380, %s381
      %p385 = pneg %p379
      %p386 = scmp.eq.s32.totalorder %s20, 1
      %p387 = por %p385, %p386
      %p388 = scmp.ne.s32.totalorder %s380, %s383
      %p389 = scmp.eq.s32.totalorder %s20, 0
      %p390 = por %p388, %p389
      %p391 = scmp.ne.s32.totalorder %s380, %s383
      %p392 = scmp.eq.s32.totalorder %s25, 1
      %p393 = por %p391, %p392
      %p394 = scmp.ne.s32.totalorder %s383, %s384
      %p395 = scmp.eq.s32.totalorder %s25, 0
      %p396 = por %p394, %p395
      %p397 = scmp.ne.s32.totalorder %s383, %s384
      %p398 = scmp.eq.s32.totalorder %s26, 1
      %p399 = por %p397, %p398
      %p401 = scmp.ne.s32.totalorder %s384, %s400
      %p402 = scmp.eq.s32.totalorder %s26, 0
      %p403 = por %p401, %p402
      %p404 = scmp.le.s32.totalorder 1, %s20
      %p405 = scmp.lt.s32.totalorder %s20, 3
      %p406 = pnand %p404, %p405
      %p407 = pneg %p406
      // Predicated region
      $region9: #{tpu_custom_call.1} parent=5 // pred_check
        _
      $region10: #{tpu_custom_call.1} parent=5 // pred_check_branch
        %409 = sbr.rel (%p406) target = $region12
      $region11: #{tpu_custom_call.1} parent=5 // pred_region
        %s410 = ssub.s32 %s20, 1
        // Predicated region
        $region13: #{tpu_custom_call.1} parent=11 // pred_check
          %p411 = pneg %p58
        $region14: #{tpu_custom_call.1} parent=11 // pred_check_branch
          %413 = sbr.rel (%p411) target = $region16
        $region15: #{tpu_custom_call.1} parent=11 // pred_region
          %s414 = smul.u32 2, %s29
          %p415 = scmp.lt.s32.totalorder %s414, 1
          %s416 = scalar_select %p415, %s414, 1
          %s417 = smul.addr %s416, 2
          %s418 = smul.addr %s417, 8
          %s419 = scalar_lea.vmem %s0, %s418
          %s420 = smul.u32 2, %s29
        $region16: #{tpu_custom_call.1} parent=11 // pred_fallthru
          _
      $region12: #{tpu_custom_call.1} parent=5 // pred_fallthru
        _
      %p421 = scmp.lt.s32.totalorder %s20, 2
      // Predicated region
      $region17: #{tpu_custom_call.1} parent=5 // pred_check
        %p422 = pneg %p421
      $region18: #{tpu_custom_call.1} parent=5 // pred_check_branch
        %424 = sbr.rel (%p422) target = $region20
      $region19: #{tpu_custom_call.1} parent=5 // pred_region
        // Predicated region
        $region21: #{tpu_custom_call.1} parent=19 // pred_check
          %p425 = pneg %p78
        $region22: #{tpu_custom_call.1} parent=19 // pred_check_branch
          %427 = sbr.rel (%p425) target = $region24
        $region23: #{tpu_custom_call.1} parent=19 // pred_region
          %p428 = scmp.lt.s32.totalorder %s28, 1
          %s429 = scalar_select %p428, %s28, 1
          %s430 = smul.addr %s429, 120
          %s431 = smul.addr %s430, 4
          %s432 = scalar_lea.vmem %s1, %s431
        $region24: #{tpu_custom_call.1} parent=19 // pred_fallthru
          _
        // Predicated region
        $region25: #{tpu_custom_call.1} parent=19 // pred_check
          %p433 = pneg %p104
        $region26: #{tpu_custom_call.1} parent=19 // pred_check_branch
          %435 = sbr.rel (%p433) target = $region28
        $region27: #{tpu_custom_call.1} parent=19 // pred_region
          %p436 = scmp.lt.s32.totalorder %s28, 1
          %s437 = scalar_select %p436, %s28, 1
          %s438 = smul.addr %s437, 5
          %s439 = scalar_lea.vmem %s2, %s438
        $region28: #{tpu_custom_call.1} parent=19 // pred_fallthru
          _
        // Predicated region
        $region29: #{tpu_custom_call.1} parent=19 // pred_check
          %p440 = pneg %p130
        $region30: #{tpu_custom_call.1} parent=19 // pred_check_branch
          %442 = sbr.rel (%p440) target = $region32
        $region31: #{tpu_custom_call.1} parent=19 // pred_region
          %p443 = scmp.lt.s32.totalorder %s28, 1
          %s444 = scalar_select %p443, %s28, 1
          %s445 = smul.addr %s444, 48
          %s446 = smul.addr %s445, 4
          %s447 = scalar_lea.vmem %s3, %s446
        $region32: #{tpu_custom_call.1} parent=19 // pred_fallthru
          _
        // Predicated region
        $region33: #{tpu_custom_call.1} parent=19 // pred_check
          %p448 = pneg %p156
        $region34: #{tpu_custom_call.1} parent=19 // pred_check_branch
          %450 = sbr.rel (%p448) target = $region36
        $region35: #{tpu_custom_call.1} parent=19 // pred_region
          %p451 = scmp.lt.s32.totalorder %s28, 1
          %s452 = scalar_select %p451, %s28, 1
          %s453 = smul.addr %s452, 2
          %s454 = scalar_lea.vmem %s4, %s453
        $region36: #{tpu_custom_call.1} parent=19 // pred_fallthru
          _
        // Predicated region
        $region37: #{tpu_custom_call.1} parent=19 // pred_check
          %p455 = pneg %p182
        $region38: #{tpu_custom_call.1} parent=19 // pred_check_branch
          %457 = sbr.rel (%p455) target = $region40
        $region39: #{tpu_custom_call.1} parent=19 // pred_region
          %p458 = scmp.lt.s32.totalorder %s28, 1
          %s459 = scalar_select %p458, %s28, 1
          %s460 = smul.addr %s459, 2
          %s461 = scalar_lea.vmem %s5, %s460
        $region40: #{tpu_custom_call.1} parent=19 // pred_fallthru
          _
        // Predicated region
        $region41: #{tpu_custom_call.1} parent=19 // pred_check
          %p462 = pneg %p208
        $region42: #{tpu_custom_call.1} parent=19 // pred_check_branch
          %464 = sbr.rel (%p462) target = $region44
        $region43: #{tpu_custom_call.1} parent=19 // pred_region
          %p465 = scmp.lt.s32.totalorder %s28, 1
          %s466 = scalar_select %p465, %s28, 1
          %s467 = smul.addr %s466, 2
          %s468 = scalar_lea.vmem %s6, %s467
        $region44: #{tpu_custom_call.1} parent=19 // pred_fallthru
          _
        // Predicated region
        $region45: #{tpu_custom_call.1} parent=19 // pred_check
          %p469 = pneg %p234
        $region46: #{tpu_custom_call.1} parent=19 // pred_check_branch
          %471 = sbr.rel (%p469) target = $region48
        $region47: #{tpu_custom_call.1} parent=19 // pred_region
          %p472 = scmp.lt.s32.totalorder %s28, 1
          %s473 = scalar_select %p472, %s28, 1
          %s474 = smul.addr %s473, 144
          %s475 = smul.addr %s474, 4
          %s476 = scalar_lea.vmem %s7, %s475
        $region48: #{tpu_custom_call.1} parent=19 // pred_fallthru
          _
        // Predicated region
        $region49: #{tpu_custom_call.1} parent=19 // pred_check
          %p477 = pneg %p260
        $region50: #{tpu_custom_call.1} parent=19 // pred_check_branch
          %479 = sbr.rel (%p477) target = $region52
        $region51: #{tpu_custom_call.1} parent=19 // pred_region
          %p480 = scmp.lt.s32.totalorder %s28, 1
          %s481 = scalar_select %p480, %s28, 1
          %s482 = smul.addr %s481, 6
          %s483 = scalar_lea.vmem %s8, %s482
        $region52: #{tpu_custom_call.1} parent=19 // pred_fallthru
          _
        // Predicated region
        $region53: #{tpu_custom_call.1} parent=19 // pred_check
          %p484 = pneg %p286
        $region54: #{tpu_custom_call.1} parent=19 // pred_check_branch
          %486 = sbr.rel (%p484) target = $region56
        $region55: #{tpu_custom_call.1} parent=19 // pred_region
          %p487 = scmp.lt.s32.totalorder %s28, 1
          %s488 = scalar_select %p487, %s28, 1
          %s489 = smul.addr %s488, 192
          %s490 = smul.addr %s489, 4
          %s491 = scalar_lea.vmem %s9, %s490
        $region56: #{tpu_custom_call.1} parent=19 // pred_fallthru
          _
        // Predicated region
        $region57: #{tpu_custom_call.1} parent=19 // pred_check
          %p492 = pneg %p312
        $region58: #{tpu_custom_call.1} parent=19 // pred_check_branch
          %494 = sbr.rel (%p492) target = $region60
        $region59: #{tpu_custom_call.1} parent=19 // pred_region
          %p495 = scmp.lt.s32.totalorder %s28, 1
          %s496 = scalar_select %p495, %s28, 1
          %s497 = smul.addr %s496, 2
          %s498 = scalar_lea.vmem %s10, %s497
        $region60: #{tpu_custom_call.1} parent=19 // pred_fallthru
          _
        // Predicated region
        $region61: #{tpu_custom_call.1} parent=19 // pred_check
          %p499 = pneg %p338
        $region62: #{tpu_custom_call.1} parent=19 // pred_check_branch
          %501 = sbr.rel (%p499) target = $region64
        $region63: #{tpu_custom_call.1} parent=19 // pred_region
          %p502 = scmp.lt.s32.totalorder %s28, 1
          %s503 = scalar_select %p502, %s28, 1
          %s504 = smul.addr %s503, 2
          %s505 = scalar_lea.vmem %s11, %s504
        $region64: #{tpu_custom_call.1} parent=19 // pred_fallthru
          _
        // Predicated region
        $region65: #{tpu_custom_call.1} parent=19 // pred_check
          %p506 = pneg %p364
        $region66: #{tpu_custom_call.1} parent=19 // pred_check_branch
          %508 = sbr.rel (%p506) target = $region68
        $region67: #{tpu_custom_call.1} parent=19 // pred_region
          %p509 = scmp.lt.s32.totalorder %s28, 1
          %s510 = scalar_select %p509, %s28, 1
          %s511 = smul.addr %s510, 2
          %s512 = scalar_lea.vmem %s12, %s511
        $region68: #{tpu_custom_call.1} parent=19 // pred_fallthru
          _
      $region20: #{tpu_custom_call.1} parent=5 // pred_fallthru
        _
      %p513 = scmp.le.s32.totalorder 1, %s20
      %p514 = scmp.lt.s32.totalorder %s20, 3
      %p515 = pnand %p513, %p514
      %p516 = pneg %p515
      // Predicated region
      $region69: #{tpu_custom_call.1} parent=5 // pred_check
        _
      $region70: #{tpu_custom_call.1} parent=5 // pred_check_branch
        %518 = sbr.rel (%p515) target = $region72
      $region71: #{tpu_custom_call.1} parent=5 // pred_region
        %s519 = ssub.s32 %s20, 1
        %s520 = smul.u32 2, %s29
        %p521 = scmp.lt.s32.totalorder %s520, 1
        %s522 = scalar_select %p521, %s520, 1
        %s523 = smul.addr %s522, 2
        %s524 = smul.addr %s523, 8
        %s525 = scalar_lea.vmem %s0, %s524
        %p526 = pneg %p58
        %p527 = pneg %p55
        %p528 = scmp.lt.s32.totalorder %s30, 1
        %s529 = scalar_select %p528, %s30, 1
        %s530 = smul.addr %s529, 120
        %s531 = smul.addr %s530, 4
        %s532 = scalar_lea.vmem %s1, %s531
        %p533 = pneg %p84
        %p534 = pneg %p81
        %p535 = scmp.lt.s32.totalorder %s30, 1
        %s536 = scalar_select %p535, %s30, 1
        %s537 = smul.addr %s536, 5
        %s538 = scalar_lea.vmem %s2, %s537
        %p539 = pneg %p110
        %p540 = pneg %p107
        %p541 = scmp.lt.s32.totalorder %s30, 1
        %s542 = scalar_select %p541, %s30, 1
        %s543 = smul.addr %s542, 48
        %s544 = smul.addr %s543, 4
        %s545 = scalar_lea.vmem %s3, %s544
        %p546 = pneg %p136
        %p547 = pneg %p133
        %p548 = scmp.lt.s32.totalorder %s30, 1
        %s549 = scalar_select %p548, %s30, 1
        %s550 = smul.addr %s549, 2
        %s551 = scalar_lea.vmem %s4, %s550
        %p552 = pneg %p162
        %p553 = pneg %p159
        %p554 = scmp.lt.s32.totalorder %s30, 1
        %s555 = scalar_select %p554, %s30, 1
        %s556 = smul.addr %s555, 2
        %s557 = scalar_lea.vmem %s5, %s556
        %p558 = pneg %p188
        %p559 = pneg %p185
        %p560 = scmp.lt.s32.totalorder %s30, 1
        %s561 = scalar_select %p560, %s30, 1
        %s562 = smul.addr %s561, 2
        %s563 = scalar_lea.vmem %s6, %s562
        %p564 = pneg %p214
        %p565 = pneg %p211
        %p566 = scmp.lt.s32.totalorder %s30, 1
        %s567 = scalar_select %p566, %s30, 1
        %s568 = smul.addr %s567, 144
        %s569 = smul.addr %s568, 4
        %s570 = scalar_lea.vmem %s7, %s569
        %p571 = pneg %p240
        %p572 = pneg %p237
        %p573 = scmp.lt.s32.totalorder %s30, 1
        %s574 = scalar_select %p573, %s30, 1
        %s575 = smul.addr %s574, 6
        %s576 = scalar_lea.vmem %s8, %s575
        %p577 = pneg %p266
        %p578 = pneg %p263
        %p579 = scmp.lt.s32.totalorder %s30, 1
        %s580 = scalar_select %p579, %s30, 1
        %s581 = smul.addr %s580, 192
        %s582 = smul.addr %s581, 4
        %s583 = scalar_lea.vmem %s9, %s582
        %p584 = pneg %p292
        %p585 = pneg %p289
        %p586 = scmp.lt.s32.totalorder %s30, 1
        %s587 = scalar_select %p586, %s30, 1
        %s588 = smul.addr %s587, 2
        %s589 = scalar_lea.vmem %s10, %s588
        %p590 = pneg %p318
        %p591 = pneg %p315
        %p592 = scmp.lt.s32.totalorder %s30, 1
        %s593 = scalar_select %p592, %s30, 1
        %s594 = smul.addr %s593, 2
        %s595 = scalar_lea.vmem %s11, %s594
        %p596 = pneg %p344
        %p597 = pneg %p341
        %p598 = scmp.lt.s32.totalorder %s30, 1
        %s599 = scalar_select %p598, %s30, 1
        %s600 = smul.addr %s599, 2
        %s601 = scalar_lea.vmem %s12, %s600
        %p602 = pneg %p370
        %p603 = pneg %p367
        %p604 = pneg %p396
        %p605 = pneg %p393
        %s606 = smul.u32 2, %s29
        %p607 = scmp.lt.s32.totalorder %s606, 1
        %s608 = scalar_select %p607, %s606, 1
        %s609 = smul.addr %s608, 2
        %s610 = smul.addr %s609, 8
        %s611 = scalar_lea.vmem %s0, %s610
        %s612 = smul.u32 2, %s29
        %p613 = scmp.lt.s32.totalorder %s30, 1
        %s614 = scalar_select %p613, %s30, 1
        %s615 = smul.addr %s614, 120
        %s616 = smul.addr %s615, 4
        %s617 = scalar_lea.vmem %s1, %s616
        %p618 = scmp.lt.s32.totalorder %s30, 1
        %s619 = scalar_select %p618, %s30, 1
        %s620 = smul.addr %s619, 5
        %s621 = scalar_lea.vmem %s2, %s620
        %p622 = scmp.lt.s32.totalorder %s30, 1
        %s623 = scalar_select %p622, %s30, 1
        %s624 = smul.addr %s623, 48
        %s625 = smul.addr %s624, 4
        %s626 = scalar_lea.vmem %s3, %s625
        %p627 = scmp.lt.s32.totalorder %s30, 1
        %s628 = scalar_select %p627, %s30, 1
        %s629 = smul.addr %s628, 2
        %s630 = scalar_lea.vmem %s4, %s629
        %p631 = scmp.lt.s32.totalorder %s30, 1
        %s632 = scalar_select %p631, %s30, 1
        %s633 = smul.addr %s632, 2
        %s634 = scalar_lea.vmem %s5, %s633
        %p635 = scmp.lt.s32.totalorder %s30, 1
        %s636 = scalar_select %p635, %s30, 1
        %s637 = smul.addr %s636, 2
        %s638 = scalar_lea.vmem %s6, %s637
        %p639 = scmp.lt.s32.totalorder %s30, 1
        %s640 = scalar_select %p639, %s30, 1
        %s641 = smul.addr %s640, 144
        %s642 = smul.addr %s641, 4
        %s643 = scalar_lea.vmem %s7, %s642
        %p644 = scmp.lt.s32.totalorder %s30, 1
        %s645 = scalar_select %p644, %s30, 1
        %s646 = smul.addr %s645, 6
        %s647 = scalar_lea.vmem %s8, %s646
        %p648 = scmp.lt.s32.totalorder %s30, 1
        %s649 = scalar_select %p648, %s30, 1
        %s650 = smul.addr %s649, 192
        %s651 = smul.addr %s650, 4
        %s652 = scalar_lea.vmem %s9, %s651
        %p653 = scmp.lt.s32.totalorder %s30, 1
        %s654 = scalar_select %p653, %s30, 1
        %s655 = smul.addr %s654, 2
        %s656 = scalar_lea.vmem %s10, %s655
        %p657 = scmp.lt.s32.totalorder %s30, 1
        %s658 = scalar_select %p657, %s30, 1
        %s659 = smul.addr %s658, 2
        %s660 = scalar_lea.vmem %s11, %s659
        %p661 = scmp.lt.s32.totalorder %s30, 1
        %s662 = scalar_select %p661, %s30, 1
        %s663 = smul.addr %s662, 2
        %s664 = scalar_lea.vmem %s12, %s663
        %s665 = smul.u32 2, %s29
        %p667 = scmp.eq.s32.totalorder %s30, 0
        // Predicated region
        $region73: #{tpu_custom_call.1} parent=71 // pred_check
          %p668 = pneg %p667
        $region74: #{tpu_custom_call.1} parent=71 // pred_check_branch
          %670 = sbr.rel (%p668) target = $region76
        $region75: #{tpu_custom_call.1} parent=71 // pred_region
          %v671 = vld [vmem:[%s611] sm:$0xff]
          %v672 = vld [vmem:[%s611 + $0x8] sm:$0xff]
          %v673 = vld [vmem:[%s611 + $0x10] sm:$0xff]
          %v674 = vld [vmem:[%s611 + $0x18] sm:$0xff]
          %675 = vst [vmem:[#allocation2] sm:$0xff] %v671
          %vm676 = vcmask 523264
          %677 = vst.msk [vmem:[#allocation2 + $0x8] sm:$0xff] %vm676, %v672
          %678 = vst [vmem:[#allocation2 + $0x10] sm:$0xff] %v673
          %679 = vst.msk [vmem:[#allocation2 + $0x18] sm:$0xff] %vm676, %v674
        $region76: #{tpu_custom_call.1} parent=71 // pred_fallthru
          _
        %v680 = vld [vmem:[#allocation2] sm:$0xff]
        %v681 = vld [vmem:[#allocation2 + $0x8] sm:$0xff]
        %v682 = vld [vmem:[#allocation2 + $0x10] sm:$0xff]
        %v683 = vld [vmem:[#allocation2 + $0x18] sm:$0xff]
        %v684 = vpack.c.bf16 %v682, %v680
        %v685 = vpack.c.bf16 %v683, %v681
        %v686 = vld [vmem:[%s617] sm:$0xff]
        %v687 = vld [vmem:[%s617 + $0x8] sm:$0xff]
        %v688 = vld [vmem:[%s617 + $0x10] sm:$0xf]
        %v689 = vld [vmem:[%s617 + $0x14] sm:$0xff]
        %v690 = vld [vmem:[%s617 + $0x1c] sm:$0xff]
        %v691 = vld [vmem:[%s617 + $0x24] sm:$0xf]
        %v692 = vld [vmem:[%s617 + $0x28] sm:$0xff]
        %v693 = vld [vmem:[%s617 + $0x30] sm:$0xff]
        %v694 = vld [vmem:[%s617 + $0x38] sm:$0xf]
        %v695 = vld [vmem:[%s617 + $0x3c] sm:$0xff]
        %v696 = vld [vmem:[%s617 + $0x44] sm:$0xff]
        %v697 = vld [vmem:[%s617 + $0x4c] sm:$0xf]
        %v698 = vld [vmem:[%s617 + $0x50] sm:$0xff]
        %v699 = vld [vmem:[%s617 + $0x58] sm:$0xff]
        %v700 = vld [vmem:[%s617 + $0x60] sm:$0xf]
        %v701 = vld [vmem:[%s617 + $0x64] sm:$0xff]
        %v702 = vld [vmem:[%s617 + $0x6c] sm:$0xff]
        %v703 = vld [vmem:[%s617 + $0x74] sm:$0xf]
        %v704 = vld [vmem:[%s617 + $0x78] sm:$0xff]
        %v705 = vld [vmem:[%s617 + $0x80] sm:$0xff]
        %v706 = vld [vmem:[%s617 + $0x88] sm:$0xf]
        %v707 = vld [vmem:[%s617 + $0x8c] sm:$0xff]
        %v708 = vld [vmem:[%s617 + $0x94] sm:$0xff]
        %v709 = vld [vmem:[%s617 + $0x9c] sm:$0xf]
        %v710 = vld [vmem:[%s617 + $0xa0] sm:$0xff]
        %v711 = vld [vmem:[%s617 + $0xa8] sm:$0xff]
        %v712 = vld [vmem:[%s617 + $0xb0] sm:$0xf]
        %v713 = vld [vmem:[%s617 + $0xb4] sm:$0xff]
        %v714 = vld [vmem:[%s617 + $0xbc] sm:$0xff]
        %v715 = vld [vmem:[%s617 + $0xc4] sm:$0xf]
        %v716 = vld [vmem:[%s617 + $0xc8] sm:$0xff]
        %v717 = vld [vmem:[%s617 + $0xd0] sm:$0xff]
        %v718 = vld [vmem:[%s617 + $0xd8] sm:$0xf]
        %v719 = vld [vmem:[%s617 + $0xdc] sm:$0xff]
        %v720 = vld [vmem:[%s617 + $0xe4] sm:$0xff]
        %v721 = vld [vmem:[%s617 + $0xec] sm:$0xf]
        %v722 = vld [vmem:[%s617 + $0xf0] sm:$0xff]
        %v723 = vld [vmem:[%s617 + $0xf8] sm:$0xff]
        %v724 = vld [vmem:[%s617 + $0x100] sm:$0xf]
        %v725 = vld [vmem:[%s617 + $0x104] sm:$0xff]
        %v726 = vld [vmem:[%s617 + $0x10c] sm:$0xff]
        %v727 = vld [vmem:[%s617 + $0x114] sm:$0xf]
        %v728 = vld [vmem:[%s617 + $0x118] sm:$0xff]
        %v729 = vld [vmem:[%s617 + $0x120] sm:$0xff]
        %v730 = vld [vmem:[%s617 + $0x128] sm:$0xf]
        %v731 = vld [vmem:[%s617 + $0x12c] sm:$0xff]
        %v732 = vld [vmem:[%s617 + $0x134] sm:$0xff]
        %v733 = vld [vmem:[%s617 + $0x13c] sm:$0xf]
        %v734 = vld [vmem:[%s617 + $0x140] sm:$0xff]
        %v735 = vld [vmem:[%s617 + $0x148] sm:$0xff]
        %v736 = vld [vmem:[%s617 + $0x150] sm:$0xf]
        %v737 = vld [vmem:[%s617 + $0x154] sm:$0xff]
        %v738 = vld [vmem:[%s617 + $0x15c] sm:$0xff]
        %v739 = vld [vmem:[%s617 + $0x164] sm:$0xf]
        %v740 = vld [vmem:[%s617 + $0x168] sm:$0xff]
        %v741 = vld [vmem:[%s617 + $0x170] sm:$0xff]
        %v742 = vld [vmem:[%s617 + $0x178] sm:$0xf]
        %v743 = vld [vmem:[%s617 + $0x17c] sm:$0xff]
        %v744 = vld [vmem:[%s617 + $0x184] sm:$0xff]
        %v745 = vld [vmem:[%s617 + $0x18c] sm:$0xf]
        %v746 = vld [vmem:[%s617 + $0x190] sm:$0xff]
        %v747 = vld [vmem:[%s617 + $0x198] sm:$0xff]
        %v748 = vld [vmem:[%s617 + $0x1a0] sm:$0xf]
        %v749 = vld [vmem:[%s617 + $0x1a4] sm:$0xff]
        %v750 = vld [vmem:[%s617 + $0x1ac] sm:$0xff]
        %v751 = vld [vmem:[%s617 + $0x1b4] sm:$0xf]
        %v752 = vld [vmem:[%s617 + $0x1b8] sm:$0xff]
        %v753 = vld [vmem:[%s617 + $0x1c0] sm:$0xff]
        %v754 = vld [vmem:[%s617 + $0x1c8] sm:$0xf]
        %v755 = vld [vmem:[%s617 + $0x1cc] sm:$0xff]
        %v756 = vld [vmem:[%s617 + $0x1d4] sm:$0xff]
        %v757 = vld [vmem:[%s617 + $0x1dc] sm:$0xf]
        %v758 = vld [vmem:[%s621] sm:$0x1f]
        %v760 = vperm.slane %v758, 0
        %v761 = vperm.slane %v758, 1
        %v762 = vperm.slane %v758, 2
        %v763 = vperm.slane %v758, 3
        %v764 = vperm.slane %v758, 4
        %v842 = vunpack.c.l.b16 %v686
        %v843 = vunpack.c.h.b16 %v686
        %v844 = vunpack.c.l.b16 %v687
        %v845 = vunpack.c.h.b16 %v687
        %v846 = vunpack.c.l.b16 %v688
        %v847 = vunpack.c.l.b16 %v689
        %v848 = vunpack.c.h.b16 %v689
        %v849 = vunpack.c.l.b16 %v690
        %v850 = vunpack.c.h.b16 %v690
        %v851 = vunpack.c.l.b16 %v691
        %v852 = vunpack.c.l.b16 %v692
        %v853 = vunpack.c.h.b16 %v692
        %v854 = vunpack.c.l.b16 %v693
        %v855 = vunpack.c.h.b16 %v693
        %v856 = vunpack.c.l.b16 %v694
        %v857 = vunpack.c.l.b16 %v695
        %v858 = vunpack.c.h.b16 %v695
        %v859 = vunpack.c.l.b16 %v696
        %v860 = vunpack.c.h.b16 %v696
        %v861 = vunpack.c.l.b16 %v697
        %v862 = vunpack.c.l.b16 %v698
        %v863 = vunpack.c.h.b16 %v698
        %v864 = vunpack.c.l.b16 %v699
        %v865 = vunpack.c.h.b16 %v699
        %v866 = vunpack.c.l.b16 %v700
        %v867 = vunpack.c.l.b16 %v701
        %v868 = vunpack.c.h.b16 %v701
        %v869 = vunpack.c.l.b16 %v702
        %v870 = vunpack.c.h.b16 %v702
        %v871 = vunpack.c.l.b16 %v703
        %v872 = vunpack.c.l.b16 %v704
        %v873 = vunpack.c.h.b16 %v704
        %v874 = vunpack.c.l.b16 %v705
        %v875 = vunpack.c.h.b16 %v705
        %v876 = vunpack.c.l.b16 %v706
        %v877 = vunpack.c.l.b16 %v707
        %v878 = vunpack.c.h.b16 %v707
        %v879 = vunpack.c.l.b16 %v708
        %v880 = vunpack.c.h.b16 %v708
        %v881 = vunpack.c.l.b16 %v709
        %v882 = vunpack.c.l.b16 %v710
        %v883 = vunpack.c.h.b16 %v710
        %v884 = vunpack.c.l.b16 %v711
        %v885 = vunpack.c.h.b16 %v711
        %v886 = vunpack.c.l.b16 %v712
        %v887 = vunpack.c.l.b16 %v713
        %v888 = vunpack.c.h.b16 %v713
        %v889 = vunpack.c.l.b16 %v714
        %v890 = vunpack.c.h.b16 %v714
        %v891 = vunpack.c.l.b16 %v715
        %v892 = vunpack.c.l.b16 %v716
        %v893 = vunpack.c.h.b16 %v716
        %v894 = vunpack.c.l.b16 %v717
        %v895 = vunpack.c.h.b16 %v717
        %v896 = vunpack.c.l.b16 %v718
        %v897 = vunpack.c.l.b16 %v719
        %v898 = vunpack.c.h.b16 %v719
        %v899 = vunpack.c.l.b16 %v720
        %v900 = vunpack.c.h.b16 %v720
        %v901 = vunpack.c.l.b16 %v721
        %v902 = vunpack.c.l.b16 %v722
        %v903 = vunpack.c.h.b16 %v722
        %v904 = vunpack.c.l.b16 %v723
        %v905 = vunpack.c.h.b16 %v723
        %v906 = vunpack.c.l.b16 %v724
        %v907 = vunpack.c.l.b16 %v725
        %v908 = vunpack.c.h.b16 %v725
        %v909 = vunpack.c.l.b16 %v726
        %v910 = vunpack.c.h.b16 %v726
        %v911 = vunpack.c.l.b16 %v727
        %v912 = vunpack.c.l.b16 %v728
        %v913 = vunpack.c.h.b16 %v728
        %v914 = vunpack.c.l.b16 %v729
        %v915 = vunpack.c.h.b16 %v729
        %v916 = vunpack.c.l.b16 %v730
        %v917 = vunpack.c.l.b16 %v731
        %v918 = vunpack.c.h.b16 %v731
        %v919 = vunpack.c.l.b16 %v732
        %v920 = vunpack.c.h.b16 %v732
        %v921 = vunpack.c.l.b16 %v733
        %v922 = vunpack.c.l.b16 %v734
        %v923 = vunpack.c.h.b16 %v734
        %v924 = vunpack.c.l.b16 %v735
        %v925 = vunpack.c.h.b16 %v735
        %v926 = vunpack.c.l.b16 %v736
        %v927 = vunpack.c.l.b16 %v737
        %v928 = vunpack.c.h.b16 %v737
        %v929 = vunpack.c.l.b16 %v738
        %v930 = vunpack.c.h.b16 %v738
        %v931 = vunpack.c.l.b16 %v739
        %v932 = vunpack.c.l.b16 %v740
        %v933 = vunpack.c.h.b16 %v740
        %v934 = vunpack.c.l.b16 %v741
        %v935 = vunpack.c.h.b16 %v741
        %v936 = vunpack.c.l.b16 %v742
        %v937 = vunpack.c.l.b16 %v743
        %v938 = vunpack.c.h.b16 %v743
        %v939 = vunpack.c.l.b16 %v744
        %v940 = vunpack.c.h.b16 %v744
        %v941 = vunpack.c.l.b16 %v745
        %v942 = vunpack.c.l.b16 %v746
        %v943 = vunpack.c.h.b16 %v746
        %v944 = vunpack.c.l.b16 %v747
        %v945 = vunpack.c.h.b16 %v747
        %v946 = vunpack.c.l.b16 %v748
        %v947 = vunpack.c.l.b16 %v749
        %v948 = vunpack.c.h.b16 %v749
        %v949 = vunpack.c.l.b16 %v750
        %v950 = vunpack.c.h.b16 %v750
        %v951 = vunpack.c.l.b16 %v751
        %v952 = vunpack.c.l.b16 %v752
        %v953 = vunpack.c.h.b16 %v752
        %v954 = vunpack.c.l.b16 %v753
        %v955 = vunpack.c.h.b16 %v753
        %v956 = vunpack.c.l.b16 %v754
        %v957 = vunpack.c.l.b16 %v755
        %v958 = vunpack.c.h.b16 %v755
        %v959 = vunpack.c.l.b16 %v756
        %v960 = vunpack.c.h.b16 %v756
        %v961 = vunpack.c.l.b16 %v757
        %v962 = vpack.c.b16 %v847, %v842
        %v963 = vpack.c.b16 %v848, %v843
        %v964 = vpack.c.b16 %v849, %v844
        %v965 = vpack.c.b16 %v850, %v845
        %v966 = vpack.c.b16 %v851, %v846
        %v967 = vpack.c.b16 %v857, %v852
        %v968 = vpack.c.b16 %v858, %v853
        %v969 = vpack.c.b16 %v859, %v854
        %v970 = vpack.c.b16 %v860, %v855
        %v971 = vpack.c.b16 %v861, %v856
        %v972 = vpack.c.b16 %v867, %v862
        %v973 = vpack.c.b16 %v868, %v863
        %v974 = vpack.c.b16 %v869, %v864
        %v975 = vpack.c.b16 %v870, %v865
        %v976 = vpack.c.b16 %v871, %v866
        %v977 = vpack.c.b16 %v877, %v872
        %v978 = vpack.c.b16 %v878, %v873
        %v979 = vpack.c.b16 %v879, %v874
        %v980 = vpack.c.b16 %v880, %v875
        %v981 = vpack.c.b16 %v881, %v876
        %v982 = vpack.c.b16 %v887, %v882
        %v983 = vpack.c.b16 %v888, %v883
        %v984 = vpack.c.b16 %v889, %v884
        %v985 = vpack.c.b16 %v890, %v885
        %v986 = vpack.c.b16 %v891, %v886
        %v987 = vpack.c.b16 %v897, %v892
        %v988 = vpack.c.b16 %v898, %v893
        %v989 = vpack.c.b16 %v899, %v894
        %v990 = vpack.c.b16 %v900, %v895
        %v991 = vpack.c.b16 %v901, %v896
        %v992 = vpack.c.b16 %v907, %v902
        %v993 = vpack.c.b16 %v908, %v903
        %v994 = vpack.c.b16 %v909, %v904
        %v995 = vpack.c.b16 %v910, %v905
        %v996 = vpack.c.b16 %v911, %v906
        %v997 = vpack.c.b16 %v917, %v912
        %v998 = vpack.c.b16 %v918, %v913
        %v999 = vpack.c.b16 %v919, %v914
        %v1000 = vpack.c.b16 %v920, %v915
        %v1001 = vpack.c.b16 %v921, %v916
        %v1002 = vpack.c.b16 %v927, %v922
        %v1003 = vpack.c.b16 %v928, %v923
        %v1004 = vpack.c.b16 %v929, %v924
        %v1005 = vpack.c.b16 %v930, %v925
        %v1006 = vpack.c.b16 %v931, %v926
        %v1007 = vpack.c.b16 %v937, %v932
        %v1008 = vpack.c.b16 %v938, %v933
        %v1009 = vpack.c.b16 %v939, %v934
        %v1010 = vpack.c.b16 %v940, %v935
        %v1011 = vpack.c.b16 %v941, %v936
        %v1012 = vpack.c.b16 %v947, %v942
        %v1013 = vpack.c.b16 %v948, %v943
        %v1014 = vpack.c.b16 %v949, %v944
        %v1015 = vpack.c.b16 %v950, %v945
        %v1016 = vpack.c.b16 %v951, %v946
        %v1017 = vpack.c.b16 %v957, %v952
        %v1018 = vpack.c.b16 %v958, %v953
        %v1019 = vpack.c.b16 %v959, %v954
        %v1020 = vpack.c.b16 %v960, %v955
        %v1021 = vpack.c.b16 %v961, %v956
        %vm1082 = vcmask 523264
        %v1084 = vsel %vm1082, %v685, 0
        %1086 = vmatpush.bf16.msra.mxu0 %v997
        %1087 = vmatpush.bf16.msra.mxu0 %v992
        %1088 = vmatpush.bf16.msra.mxu0 %v987
        %1089 = vmatpush.bf16.msra.mxu0 %v982
        %1090 = vmatpush.bf16.msra.mxu0 %v977
        %1091 = vmatpush.bf16.msra.mxu0 %v972
        %1092 = vmatpush.bf16.msra.mxu0 %v967
        %1093 = vmatpush.bf16.msra.mxu0 %v962
        %1094 = vmatmul.bf16.gmra.mxu0 %v684
        %v1095 = vpop.f32.mrf.mxu0
        %v1096 = vadd.f32 %v760, %v1095
        %v1097 = vpop.f32.mrf.mxu0
        %v1098 = vadd.f32 %v760, %v1097
        %1099 = vdwg.mxu0
        %1100 = vmatpush.bf16.msra.mxu0 0
        %1101 = vmatpush.bf16.msra.mxu0 0
        %1102 = vmatpush.bf16.msra.mxu0 0
        %1103 = vmatpush.bf16.msra.mxu0 0
        %1104 = vmatpush.bf16.msra.mxu0 %v1017
        %1105 = vmatpush.bf16.msra.mxu0 %v1012
        %1106 = vmatpush.bf16.msra.mxu0 %v1007
        %1107 = vmatpush.bf16.msra.mxu0 %v1002
        %1108 = vmatmul.bf16.gmra.mxu0 %v1084
        %v1109 = vpop.f32.mrf.mxu0
        %v1110 = vadd.f32 %v1096, %v1109
        %v1111 = vpop.f32.mrf.mxu0
        %v1112 = vadd.f32 %v1098, %v1111
        %1113 = vdwg.mxu0
        %1114 = vmatpush.bf16.msra.mxu0 %v998
        %1115 = vmatpush.bf16.msra.mxu0 %v993
        %1116 = vmatpush.bf16.msra.mxu0 %v988
        %1117 = vmatpush.bf16.msra.mxu0 %v983
        %1118 = vmatpush.bf16.msra.mxu0 %v978
        %1119 = vmatpush.bf16.msra.mxu0 %v973
        %1120 = vmatpush.bf16.msra.mxu0 %v968
        %1121 = vmatpush.bf16.msra.mxu0 %v963
        %1122 = vmatmul.bf16.gmra.mxu0 %v684
        %v1123 = vpop.f32.mrf.mxu0
        %v1124 = vadd.f32 %v761, %v1123
        %v1125 = vpop.f32.mrf.mxu0
        %v1126 = vadd.f32 %v761, %v1125
        %1127 = vdwg.mxu0
        %1128 = vmatpush.bf16.msra.mxu0 0
        %1129 = vmatpush.bf16.msra.mxu0 0
        %1130 = vmatpush.bf16.msra.mxu0 0
        %1131 = vmatpush.bf16.msra.mxu0 0
        %1132 = vmatpush.bf16.msra.mxu0 %v1018
        %1133 = vmatpush.bf16.msra.mxu0 %v1013
        %1134 = vmatpush.bf16.msra.mxu0 %v1008
        %1135 = vmatpush.bf16.msra.mxu0 %v1003
        %1136 = vmatmul.bf16.gmra.mxu0 %v1084
        %v1137 = vpop.f32.mrf.mxu0
        %v1138 = vadd.f32 %v1124, %v1137
        %v1139 = vpop.f32.mrf.mxu0
        %v1140 = vadd.f32 %v1126, %v1139
        %1141 = vdwg.mxu0
        %1142 = vmatpush.bf16.msra.mxu0 %v999
        %1143 = vmatpush.bf16.msra.mxu0 %v994
        %1144 = vmatpush.bf16.msra.mxu0 %v989
        %1145 = vmatpush.bf16.msra.mxu0 %v984
        %1146 = vmatpush.bf16.msra.mxu0 %v979
        %1147 = vmatpush.bf16.msra.mxu0 %v974
        %1148 = vmatpush.bf16.msra.mxu0 %v969
        %1149 = vmatpush.bf16.msra.mxu0 %v964
        %1150 = vmatmul.bf16.gmra.mxu0 %v684
        %v1151 = vpop.f32.mrf.mxu0
        %v1152 = vadd.f32 %v762, %v1151
        %v1153 = vpop.f32.mrf.mxu0
        %v1154 = vadd.f32 %v762, %v1153
        %1155 = vdwg.mxu0
        %1156 = vmatpush.bf16.msra.mxu0 0
        %1157 = vmatpush.bf16.msra.mxu0 0
        %1158 = vmatpush.bf16.msra.mxu0 0
        %1159 = vmatpush.bf16.msra.mxu0 0
        %1160 = vmatpush.bf16.msra.mxu0 %v1019
        %1161 = vmatpush.bf16.msra.mxu0 %v1014
        %1162 = vmatpush.bf16.msra.mxu0 %v1009
        %1163 = vmatpush.bf16.msra.mxu0 %v1004
        %1164 = vmatmul.bf16.gmra.mxu0 %v1084
        %v1165 = vpop.f32.mrf.mxu0
        %v1166 = vadd.f32 %v1152, %v1165
        %v1167 = vpop.f32.mrf.mxu0
        %v1168 = vadd.f32 %v1154, %v1167
        %1169 = vdwg.mxu0
        %1170 = vmatpush.bf16.msra.mxu0 %v1000
        %1171 = vmatpush.bf16.msra.mxu0 %v995
        %1172 = vmatpush.bf16.msra.mxu0 %v990
        %1173 = vmatpush.bf16.msra.mxu0 %v985
        %1174 = vmatpush.bf16.msra.mxu0 %v980
        %1175 = vmatpush.bf16.msra.mxu0 %v975
        %1176 = vmatpush.bf16.msra.mxu0 %v970
        %1177 = vmatpush.bf16.msra.mxu0 %v965
        %1178 = vmatmul.bf16.gmra.mxu0 %v684
        %v1179 = vpop.f32.mrf.mxu0
        %v1180 = vadd.f32 %v763, %v1179
        %v1181 = vpop.f32.mrf.mxu0
        %v1182 = vadd.f32 %v763, %v1181
        %1183 = vdwg.mxu0
        %1184 = vmatpush.bf16.msra.mxu0 0
        %1185 = vmatpush.bf16.msra.mxu0 0
        %1186 = vmatpush.bf16.msra.mxu0 0
        %1187 = vmatpush.bf16.msra.mxu0 0
        %1188 = vmatpush.bf16.msra.mxu0 %v1020
        %1189 = vmatpush.bf16.msra.mxu0 %v1015
        %1190 = vmatpush.bf16.msra.mxu0 %v1010
        %1191 = vmatpush.bf16.msra.mxu0 %v1005
        %1192 = vmatmul.bf16.gmra.mxu0 %v1084
        %v1193 = vpop.f32.mrf.mxu0
        %v1194 = vadd.f32 %v1180, %v1193
        %v1195 = vpop.f32.mrf.mxu0
        %v1196 = vadd.f32 %v1182, %v1195
        %1197 = vdwg.mxu0
        %1198 = vmatpush.bf16.msra.mxu0 %v1001
        %1199 = vmatpush.bf16.msra.mxu0 %v996
        %1200 = vmatpush.bf16.msra.mxu0 %v991
        %1201 = vmatpush.bf16.msra.mxu0 %v986
        %1202 = vmatpush.bf16.msra.mxu0 %v981
        %1203 = vmatpush.bf16.msra.mxu0 %v976
        %1204 = vmatpush.bf16.msra.mxu0 %v971
        %1205 = vmatpush.bf16.msra.mxu0 %v966
        %1206 = vmatmul.bf16.gmra.mxu0 %v684
        %v1207 = vpop.f32.mrf.mxu0
        %v1208 = vadd.f32 %v764, %v1207
        %v1209 = vpop.f32.mrf.mxu0
        %v1210 = vadd.f32 %v764, %v1209
        %1211 = vdwg.mxu0
        %1212 = vmatpush.bf16.msra.mxu0 0
        %1213 = vmatpush.bf16.msra.mxu0 0
        %1214 = vmatpush.bf16.msra.mxu0 0
        %1215 = vmatpush.bf16.msra.mxu0 0
        %1216 = vmatpush.bf16.msra.mxu0 %v1021
        %1217 = vmatpush.bf16.msra.mxu0 %v1016
        %1218 = vmatpush.bf16.msra.mxu0 %v1011
        %1219 = vmatpush.bf16.msra.mxu0 %v1006
        %1220 = vmatmul.bf16.gmra.mxu0 %v1084
        %v1221 = vpop.f32.mrf.mxu0
        %v1222 = vadd.f32 %v1208, %v1221
        %v1223 = vpop.f32.mrf.mxu0
        %v1224 = vadd.f32 %v1210, %v1223
        %1225 = vdwg.mxu0
        %v1226 = vmul.f32 %v1110, 0.20412415
        %v1227 = vmul.f32 %v1112, 0.20412415
        %v1228 = vpack.c.bf16 %v1226, %v1226
        %v1229 = vpack.c.bf16 %v1227, %v1227
        %v1230 = vpack.c.bf16 %v1138, %v1138
        %v1231 = vpack.c.bf16 %v1140, %v1140
        %v1232 = vpack.c.bf16 %v1194, %v1194
        %v1233 = vpack.c.bf16 %v1196, %v1196
        %v1235 = vunpack.c.l.b16 %v1230
        %v1236 = vpack.c.b16 %v1235, %v1235
        %1237 = vrot.lane.b32.xlu0 %v1236, 64
        %v1238 = vpop.permute.xlu0 %1237
        %vm1239 = vcmask 195584
        %v1241 = vsel %vm1239, %v1228, 0
        %v1244 = vsel %vm1239, %v1238, 0
        %1246 = vmatpush.bf16.xpose.msra.mxu0 0
        %1247 = vmatpush.bf16.xpose.msra.mxu0 0
        %1248 = vmatpush.bf16.xpose.msra.mxu0 0
        %1249 = vmatpush.bf16.xpose.msra.mxu0 0
        %1250 = vmatpush.bf16.xpose.msra.mxu0 0
        %1251 = vmatpush.bf16.xpose.msra.mxu0 0
        %1252 = vmatpush.bf16.xpose.msra.mxu0 0
        %1253 = vmatpush.bf16.xpose.msra.mxu0 %v1244
        %1254 = vmatmul.bf16.gmra.mxu0 %v1241
        %v1255 = vpop.f32.mrf.mxu0
        %v1256 = vadd.f32 0.0, %v1255
        %v1257 = vpop.f32.mrf.mxu0
        %1258 = vdwg.mxu0
        %v1260 = vunpack.c.l.b16 %v1231
        %v1261 = vpack.c.b16 %v1260, %v1260
        %1262 = vrot.lane.b32.xlu0 %v1261, 64
        %v1263 = vpop.permute.xlu0 %1262
        %v1265 = vsel %vm1239, %v1229, 0
        %v1268 = vsel %vm1239, %v1263, 0
        %1270 = vmatpush.bf16.xpose.msra.mxu0 0
        %1271 = vmatpush.bf16.xpose.msra.mxu0 0
        %1272 = vmatpush.bf16.xpose.msra.mxu0 0
        %1273 = vmatpush.bf16.xpose.msra.mxu0 0
        %1274 = vmatpush.bf16.xpose.msra.mxu0 0
        %1275 = vmatpush.bf16.xpose.msra.mxu0 0
        %1276 = vmatpush.bf16.xpose.msra.mxu0 0
        %1277 = vmatpush.bf16.xpose.msra.mxu0 %v1268
        %1278 = vmatmul.bf16.gmra.mxu0 %v1265
        %v1279 = vpop.f32.mrf.mxu0
        %v1280 = vadd.f32 0.0, %v1279
        %v1281 = vpop.f32.mrf.mxu0
        %1282 = vdwg.mxu0
        %vm1283 = vcmask 64512
        %v1284 = vsel %vm1283, %v1256, -inf
        %1285 = vmax.xlane.f32.xlu0 %v1284
        %v1286 = vpop.xlane.xlu0 %1285
        %v1287 = vsel %vm1283, %v1280, -inf
        %1288 = vmax.xlane.f32.xlu0 %v1287
        %v1289 = vpop.xlane.xlu0 %1288
        %v1290 = vsub.f32 %v1256, %v1286
        %v1291 = vsub.f32 %v1280, %v1289
        %v1292 = vmul.f32 %v1290, 1.442695
        %v1293 = vpow.pop %v1292
        %v1294 = vmul.f32 %v1291, 1.442695
        %v1295 = vpow.pop %v1294
        %v1296 = vsel %vm1283, %v1293, 0.0
        %1297 = vadd.xlane.f32.xlu0 %v1296
        %v1298 = vpop.xlane.xlu0 %1297
        %v1299 = vsel %vm1283, %v1295, 0.0
        %1300 = vadd.xlane.f32.xlu0 %v1299
        %v1301 = vpop.xlane.xlu0 %1300
        %v1302 = vrcp.pop %v1298
        %v1303 = vrcp.pop %v1301
        %v1304 = vmul.f32 %v1293, %v1302
        %v1305 = vmul.f32 %v1295, %v1303
        %v1306 = vpack.c.bf16 %v1304, %v1304
        %v1307 = vpack.c.bf16 %v1305, %v1305
        %v1309 = vsel %vm1283, %v1306, 0
        %vm1311 = vcmask 1043456
        %v1313 = vsel %vm1311, %v1232, 0
        %1315 = vmatpush.bf16.msra.mxu0 0
        %1316 = vmatpush.bf16.msra.mxu0 0
        %1317 = vmatpush.bf16.msra.mxu0 0
        %1318 = vmatpush.bf16.msra.mxu0 0
        %1319 = vmatpush.bf16.msra.mxu0 0
        %1320 = vmatpush.bf16.msra.mxu0 0
        %1321 = vmatpush.bf16.msra.mxu0 0
        %1322 = vmatpush.bf16.msra.mxu0 %v1313
        %1323 = vmatmul.bf16.gmra.mxu0 %v1309
        %v1324 = vpop.f32.mrf.mxu0
        %v1325 = vadd.f32 0.0, %v1324
        %v1326 = vpop.f32.mrf.mxu0
        %1327 = vdwg.mxu0
        %v1329 = vsel %vm1283, %v1307, 0
        %v1332 = vsel %vm1311, %v1233, 0
        %1334 = vmatpush.bf16.msra.mxu0 0
        %1335 = vmatpush.bf16.msra.mxu0 0
        %1336 = vmatpush.bf16.msra.mxu0 0
        %1337 = vmatpush.bf16.msra.mxu0 0
        %1338 = vmatpush.bf16.msra.mxu0 0
        %1339 = vmatpush.bf16.msra.mxu0 0
        %1340 = vmatpush.bf16.msra.mxu0 0
        %1341 = vmatpush.bf16.msra.mxu0 %v1332
        %1342 = vmatmul.bf16.gmra.mxu0 %v1329
        %v1343 = vpop.f32.mrf.mxu0
        %v1344 = vadd.f32 0.0, %v1343
        %v1345 = vpop.f32.mrf.mxu0
        %1346 = vdwg.mxu0
        %v1348 = vunpack.c.l.b16 %v1228
        %v1349 = vpack.c.b16 %v1348, %v1348
        %1350 = vrot.lane.b32.xlu0 %v1349, 104
        %v1351 = vpop.permute.xlu0 %1350
        %1352 = vrot.lane.b32.xlu0 %v1236, 40
        %v1353 = vpop.permute.xlu0 %1352
        %v1355 = vsel %vm1239, %v1351, 0
        %v1358 = vsel %vm1239, %v1353, 0
        %1360 = vmatpush.bf16.xpose.msra.mxu0 0
        %1361 = vmatpush.bf16.xpose.msra.mxu0 0
        %1362 = vmatpush.bf16.xpose.msra.mxu0 0
        %1363 = vmatpush.bf16.xpose.msra.mxu0 0
        %1364 = vmatpush.bf16.xpose.msra.mxu0 0
        %1365 = vmatpush.bf16.xpose.msra.mxu0 0
        %1366 = vmatpush.bf16.xpose.msra.mxu0 0
        %1367 = vmatpush.bf16.xpose.msra.mxu0 %v1358
        %1368 = vmatmul.bf16.gmra.mxu0 %v1355
        %v1369 = vpop.f32.mrf.mxu0
        %v1370 = vadd.f32 0.0, %v1369
        %v1371 = vpop.f32.mrf.mxu0
        %1372 = vdwg.mxu0
        %v1374 = vunpack.c.l.b16 %v1229
        %v1375 = vpack.c.b16 %v1374, %v1374
        %1376 = vrot.lane.b32.xlu0 %v1375, 104
        %v1377 = vpop.permute.xlu0 %1376
        %1378 = vrot.lane.b32.xlu0 %v1261, 40
        %v1379 = vpop.permute.xlu0 %1378
        %v1381 = vsel %vm1239, %v1377, 0
        %v1384 = vsel %vm1239, %v1379, 0
        %1386 = vmatpush.bf16.xpose.msra.mxu0 0
        %1387 = vmatpush.bf16.xpose.msra.mxu0 0
        %1388 = vmatpush.bf16.xpose.msra.mxu0 0
        %1389 = vmatpush.bf16.xpose.msra.mxu0 0
        %1390 = vmatpush.bf16.xpose.msra.mxu0 0
        %1391 = vmatpush.bf16.xpose.msra.mxu0 0
        %1392 = vmatpush.bf16.xpose.msra.mxu0 0
        %1393 = vmatpush.bf16.xpose.msra.mxu0 %v1384
        %1394 = vmatmul.bf16.gmra.mxu0 %v1381
        %v1395 = vpop.f32.mrf.mxu0
        %v1396 = vadd.f32 0.0, %v1395
        %v1397 = vpop.f32.mrf.mxu0
        %1398 = vdwg.mxu0
        %v1399 = vsel %vm1283, %v1370, -inf
        %1400 = vmax.xlane.f32.xlu0 %v1399
        %v1401 = vpop.xlane.xlu0 %1400
        %v1402 = vsel %vm1283, %v1396, -inf
        %1403 = vmax.xlane.f32.xlu0 %v1402
        %v1404 = vpop.xlane.xlu0 %1403
        %v1405 = vsub.f32 %v1370, %v1401
        %v1406 = vsub.f32 %v1396, %v1404
        %v1407 = vmul.f32 %v1405, 1.442695
        %v1408 = vpow.pop %v1407
        %v1409 = vmul.f32 %v1406, 1.442695
        %v1410 = vpow.pop %v1409
        %v1411 = vsel %vm1283, %v1408, 0.0
        %1412 = vadd.xlane.f32.xlu0 %v1411
        %v1413 = vpop.xlane.xlu0 %1412
        %v1414 = vsel %vm1283, %v1410, 0.0
        %1415 = vadd.xlane.f32.xlu0 %v1414
        %v1416 = vpop.xlane.xlu0 %1415
        %v1417 = vrcp.pop %v1413
        %v1418 = vrcp.pop %v1416
        %v1419 = vmul.f32 %v1408, %v1417
        %v1420 = vmul.f32 %v1410, %v1418
        %v1421 = vpack.c.bf16 %v1419, %v1419
        %v1422 = vpack.c.bf16 %v1420, %v1420
        %v1424 = vunpack.c.l.b16 %v1232
        %v1425 = vpack.c.b16 %v1424, %v1424
        %1426 = vrot.lane.b32.xlu0 %v1425, 104
        %v1427 = vpop.permute.xlu0 %1426
        %v1429 = vsel %vm1283, %v1421, 0
        %v1432 = vsel %vm1311, %v1427, 0
        %1434 = vmatpush.bf16.msra.mxu0 0
        %1435 = vmatpush.bf16.msra.mxu0 0
        %1436 = vmatpush.bf16.msra.mxu0 0
        %1437 = vmatpush.bf16.msra.mxu0 0
        %1438 = vmatpush.bf16.msra.mxu0 0
        %1439 = vmatpush.bf16.msra.mxu0 0
        %1440 = vmatpush.bf16.msra.mxu0 0
        %1441 = vmatpush.bf16.msra.mxu0 %v1432
        %1442 = vmatmul.bf16.gmra.mxu0 %v1429
        %v1443 = vpop.f32.mrf.mxu0
        %v1444 = vadd.f32 0.0, %v1443
        %v1445 = vpop.f32.mrf.mxu0
        %1446 = vdwg.mxu0
        %v1448 = vunpack.c.l.b16 %v1233
        %v1449 = vpack.c.b16 %v1448, %v1448
        %1450 = vrot.lane.b32.xlu0 %v1449, 104
        %v1451 = vpop.permute.xlu0 %1450
        %v1453 = vsel %vm1283, %v1422, 0
        %v1456 = vsel %vm1311, %v1451, 0
        %1458 = vmatpush.bf16.msra.mxu0 0
        %1459 = vmatpush.bf16.msra.mxu0 0
        %1460 = vmatpush.bf16.msra.mxu0 0
        %1461 = vmatpush.bf16.msra.mxu0 0
        %1462 = vmatpush.bf16.msra.mxu0 0
        %1463 = vmatpush.bf16.msra.mxu0 0
        %1464 = vmatpush.bf16.msra.mxu0 0
        %1465 = vmatpush.bf16.msra.mxu0 %v1456
        %1466 = vmatmul.bf16.gmra.mxu0 %v1453
        %v1467 = vpop.f32.mrf.mxu0
        %v1468 = vadd.f32 0.0, %v1467
        %v1469 = vpop.f32.mrf.mxu0
        %1470 = vdwg.mxu0
        %v1471 = vpack.c.bf16 %v1166, %v1138
        %v1472 = vpack.c.bf16 %v1168, %v1140
        %1473 = vrot.lane.b32.xlu0 %v1349, 80
        %v1474 = vpop.permute.xlu0 %1473
        %v1476 = vunpack.c.l.b16 %v1471
        %v1477 = vunpack.c.h.b16 %v1471
        %v1478 = vpack.c.b16 %v1476, %v1476
        %v1479 = vpack.c.b16 %v1477, %v1477
        %1480 = vrot.lane.b32.xlu0 %v1478, 16
        %v1481 = vpop.permute.xlu0 %1480
        %1482 = vrot.lane.b32.xlu0 %v1479, 16
        %v1483 = vpop.permute.xlu0 %1482
        %vm1484 = vcmask 130048
        %v1485 = vsel %vm1484, %v1481, %v1483
        %v1487 = vsel %vm1239, %v1474, 0
        %v1490 = vsel %vm1239, %v1485, 0
        %1492 = vmatpush.bf16.xpose.msra.mxu0 0
        %1493 = vmatpush.bf16.xpose.msra.mxu0 0
        %1494 = vmatpush.bf16.xpose.msra.mxu0 0
        %1495 = vmatpush.bf16.xpose.msra.mxu0 0
        %1496 = vmatpush.bf16.xpose.msra.mxu0 0
        %1497 = vmatpush.bf16.xpose.msra.mxu0 0
        %1498 = vmatpush.bf16.xpose.msra.mxu0 0
        %1499 = vmatpush.bf16.xpose.msra.mxu0 %v1490
        %1500 = vmatmul.bf16.gmra.mxu0 %v1487
        %v1501 = vpop.f32.mrf.mxu0
        %v1502 = vadd.f32 0.0, %v1501
        %v1503 = vpop.f32.mrf.mxu0
        %1504 = vdwg.mxu0
        %1505 = vrot.lane.b32.xlu0 %v1375, 80
        %v1506 = vpop.permute.xlu0 %1505
        %v1508 = vunpack.c.l.b16 %v1472
        %v1509 = vunpack.c.h.b16 %v1472
        %v1510 = vpack.c.b16 %v1508, %v1508
        %v1511 = vpack.c.b16 %v1509, %v1509
        %1512 = vrot.lane.b32.xlu0 %v1510, 16
        %v1513 = vpop.permute.xlu0 %1512
        %1514 = vrot.lane.b32.xlu0 %v1511, 16
        %v1515 = vpop.permute.xlu0 %1514
        %v1516 = vsel %vm1484, %v1513, %v1515
        %v1518 = vsel %vm1239, %v1506, 0
        %v1521 = vsel %vm1239, %v1516, 0
        %1523 = vmatpush.bf16.xpose.msra.mxu0 0
        %1524 = vmatpush.bf16.xpose.msra.mxu0 0
        %1525 = vmatpush.bf16.xpose.msra.mxu0 0
        %1526 = vmatpush.bf16.xpose.msra.mxu0 0
        %1527 = vmatpush.bf16.xpose.msra.mxu0 0
        %1528 = vmatpush.bf16.xpose.msra.mxu0 0
        %1529 = vmatpush.bf16.xpose.msra.mxu0 0
        %1530 = vmatpush.bf16.xpose.msra.mxu0 %v1521
        %1531 = vmatmul.bf16.gmra.mxu0 %v1518
        %v1532 = vpop.f32.mrf.mxu0
        %v1533 = vadd.f32 0.0, %v1532
        %v1534 = vpop.f32.mrf.mxu0
        %1535 = vdwg.mxu0
        %v1536 = vsel %vm1283, %v1502, -inf
        %1537 = vmax.xlane.f32.xlu0 %v1536
        %v1538 = vpop.xlane.xlu0 %1537
        %v1539 = vsel %vm1283, %v1533, -inf
        %1540 = vmax.xlane.f32.xlu0 %v1539
        %v1541 = vpop.xlane.xlu0 %1540
        %v1542 = vsub.f32 %v1502, %v1538
        %v1543 = vsub.f32 %v1533, %v1541
        %v1544 = vmul.f32 %v1542, 1.442695
        %v1545 = vpow.pop %v1544
        %v1546 = vmul.f32 %v1543, 1.442695
        %v1547 = vpow.pop %v1546
        %v1548 = vsel %vm1283, %v1545, 0.0
        %1549 = vadd.xlane.f32.xlu0 %v1548
        %v1550 = vpop.xlane.xlu0 %1549
        %v1551 = vsel %vm1283, %v1547, 0.0
        %1552 = vadd.xlane.f32.xlu0 %v1551
        %v1553 = vpop.xlane.xlu0 %1552
        %v1554 = vrcp.pop %v1550
        %v1555 = vrcp.pop %v1553
        %v1556 = vmul.f32 %v1545, %v1554
        %v1557 = vmul.f32 %v1547, %v1555
        %v1558 = vpack.c.bf16 %v1556, %v1556
        %v1559 = vpack.c.bf16 %v1557, %v1557
        %1560 = vrot.lane.b32.xlu0 %v1425, 80
        %v1561 = vpop.permute.xlu0 %1560
        %v1563 = vsel %vm1283, %v1558, 0
        %v1566 = vsel %vm1311, %v1561, 0
        %1568 = vmatpush.bf16.msra.mxu0 0
        %1569 = vmatpush.bf16.msra.mxu0 0
        %1570 = vmatpush.bf16.msra.mxu0 0
        %1571 = vmatpush.bf16.msra.mxu0 0
        %1572 = vmatpush.bf16.msra.mxu0 0
        %1573 = vmatpush.bf16.msra.mxu0 0
        %1574 = vmatpush.bf16.msra.mxu0 0
        %1575 = vmatpush.bf16.msra.mxu0 %v1566
        %1576 = vmatmul.bf16.gmra.mxu0 %v1563
        %v1577 = vpop.f32.mrf.mxu0
        %v1578 = vadd.f32 0.0, %v1577
        %v1579 = vpop.f32.mrf.mxu0
        %1580 = vdwg.mxu0
        %1581 = vrot.lane.b32.xlu0 %v1449, 80
        %v1582 = vpop.permute.xlu0 %1581
        %v1584 = vsel %vm1283, %v1559, 0
        %v1587 = vsel %vm1311, %v1582, 0
        %1589 = vmatpush.bf16.msra.mxu0 0
        %1590 = vmatpush.bf16.msra.mxu0 0
        %1591 = vmatpush.bf16.msra.mxu0 0
        %1592 = vmatpush.bf16.msra.mxu0 0
        %1593 = vmatpush.bf16.msra.mxu0 0
        %1594 = vmatpush.bf16.msra.mxu0 0
        %1595 = vmatpush.bf16.msra.mxu0 0
        %1596 = vmatpush.bf16.msra.mxu0 %v1587
        %1597 = vmatmul.bf16.gmra.mxu0 %v1584
        %v1598 = vpop.f32.mrf.mxu0
        %v1599 = vadd.f32 0.0, %v1598
        %v1600 = vpop.f32.mrf.mxu0
        %1601 = vdwg.mxu0
        %v1602 = vpack.c.bf16 %v1166, %v1166
        %v1603 = vpack.c.bf16 %v1168, %v1168
        %1604 = vrot.lane.b32.xlu0 %v1349, 56
        %v1605 = vpop.permute.xlu0 %1604
        %v1607 = vunpack.c.l.b16 %v1602
        %v1608 = vpack.c.b16 %v1607, %v1607
        %1609 = vrot.lane.b32.xlu0 %v1608, 120
        %v1610 = vpop.permute.xlu0 %1609
        %v1612 = vsel %vm1239, %v1605, 0
        %v1615 = vsel %vm1239, %v1610, 0
        %1617 = vmatpush.bf16.xpose.msra.mxu0 0
        %1618 = vmatpush.bf16.xpose.msra.mxu0 0
        %1619 = vmatpush.bf16.xpose.msra.mxu0 0
        %1620 = vmatpush.bf16.xpose.msra.mxu0 0
        %1621 = vmatpush.bf16.xpose.msra.mxu0 0
        %1622 = vmatpush.bf16.xpose.msra.mxu0 0
        %1623 = vmatpush.bf16.xpose.msra.mxu0 0
        %1624 = vmatpush.bf16.xpose.msra.mxu0 %v1615
        %1625 = vmatmul.bf16.gmra.mxu0 %v1612
        %v1626 = vpop.f32.mrf.mxu0
        %v1627 = vadd.f32 0.0, %v1626
        %v1628 = vpop.f32.mrf.mxu0
        %1629 = vdwg.mxu0
        %1630 = vrot.lane.b32.xlu0 %v1375, 56
        %v1631 = vpop.permute.xlu0 %1630
        %v1633 = vunpack.c.l.b16 %v1603
        %v1634 = vpack.c.b16 %v1633, %v1633
        %1635 = vrot.lane.b32.xlu0 %v1634, 120
        %v1636 = vpop.permute.xlu0 %1635
        %v1638 = vsel %vm1239, %v1631, 0
        %v1641 = vsel %vm1239, %v1636, 0
        %1643 = vmatpush.bf16.xpose.msra.mxu0 0
        %1644 = vmatpush.bf16.xpose.msra.mxu0 0
        %1645 = vmatpush.bf16.xpose.msra.mxu0 0
        %1646 = vmatpush.bf16.xpose.msra.mxu0 0
        %1647 = vmatpush.bf16.xpose.msra.mxu0 0
        %1648 = vmatpush.bf16.xpose.msra.mxu0 0
        %1649 = vmatpush.bf16.xpose.msra.mxu0 0
        %1650 = vmatpush.bf16.xpose.msra.mxu0 %v1641
        %1651 = vmatmul.bf16.gmra.mxu0 %v1638
        %v1652 = vpop.f32.mrf.mxu0
        %v1653 = vadd.f32 0.0, %v1652
        %v1654 = vpop.f32.mrf.mxu0
        %1655 = vdwg.mxu0
        %v1656 = vsel %vm1283, %v1627, -inf
        %1657 = vmax.xlane.f32.xlu0 %v1656
        %v1658 = vpop.xlane.xlu0 %1657
        %v1659 = vsel %vm1283, %v1653, -inf
        %1660 = vmax.xlane.f32.xlu0 %v1659
        %v1661 = vpop.xlane.xlu0 %1660
        %v1662 = vsub.f32 %v1627, %v1658
        %v1663 = vsub.f32 %v1653, %v1661
        %v1664 = vmul.f32 %v1662, 1.442695
        %v1665 = vpow.pop %v1664
        %v1666 = vmul.f32 %v1663, 1.442695
        %v1667 = vpow.pop %v1666
        %v1668 = vsel %vm1283, %v1665, 0.0
        %1669 = vadd.xlane.f32.xlu0 %v1668
        %v1670 = vpop.xlane.xlu0 %1669
        %v1671 = vsel %vm1283, %v1667, 0.0
        %1672 = vadd.xlane.f32.xlu0 %v1671
        %v1673 = vpop.xlane.xlu0 %1672
        %v1674 = vrcp.pop %v1670
        %v1675 = vrcp.pop %v1673
        %v1676 = vmul.f32 %v1665, %v1674
        %v1677 = vmul.f32 %v1667, %v1675
        %v1678 = vpack.c.bf16 %v1676, %v1676
        %v1679 = vpack.c.bf16 %v1677, %v1677
        %1680 = vrot.lane.b32.xlu0 %v1425, 56
        %v1681 = vpop.permute.xlu0 %1680
        %v1683 = vsel %vm1283, %v1678, 0
        %v1686 = vsel %vm1311, %v1681, 0
        %1688 = vmatpush.bf16.msra.mxu0 0
        %1689 = vmatpush.bf16.msra.mxu0 0
        %1690 = vmatpush.bf16.msra.mxu0 0
        %1691 = vmatpush.bf16.msra.mxu0 0
        %1692 = vmatpush.bf16.msra.mxu0 0
        %1693 = vmatpush.bf16.msra.mxu0 0
        %1694 = vmatpush.bf16.msra.mxu0 0
        %1695 = vmatpush.bf16.msra.mxu0 %v1686
        %1696 = vmatmul.bf16.gmra.mxu0 %v1683
        %v1697 = vpop.f32.mrf.mxu0
        %v1698 = vadd.f32 0.0, %v1697
        %v1699 = vpop.f32.mrf.mxu0
        %1700 = vdwg.mxu0
        %1701 = vrot.lane.b32.xlu0 %v1449, 56
        %v1702 = vpop.permute.xlu0 %1701
        %v1704 = vsel %vm1283, %v1679, 0
        %v1707 = vsel %vm1311, %v1702, 0
        %1709 = vmatpush.bf16.msra.mxu0 0
        %1710 = vmatpush.bf16.msra.mxu0 0
        %1711 = vmatpush.bf16.msra.mxu0 0
        %1712 = vmatpush.bf16.msra.mxu0 0
        %1713 = vmatpush.bf16.msra.mxu0 0
        %1714 = vmatpush.bf16.msra.mxu0 0
        %1715 = vmatpush.bf16.msra.mxu0 0
        %1716 = vmatpush.bf16.msra.mxu0 %v1707
        %1717 = vmatmul.bf16.gmra.mxu0 %v1704
        %v1718 = vpop.f32.mrf.mxu0
        %v1719 = vadd.f32 0.0, %v1718
        %v1720 = vpop.f32.mrf.mxu0
        %1721 = vdwg.mxu0
        %1722 = vrot.lane.b32.xlu0 %v1349, 32
        %v1723 = vpop.permute.xlu0 %1722
        %1724 = vrot.lane.b32.xlu0 %v1608, 96
        %v1725 = vpop.permute.xlu0 %1724
        %v1727 = vsel %vm1239, %v1723, 0
        %v1730 = vsel %vm1239, %v1725, 0
        %1732 = vmatpush.bf16.xpose.msra.mxu0 0
        %1733 = vmatpush.bf16.xpose.msra.mxu0 0
        %1734 = vmatpush.bf16.xpose.msra.mxu0 0
        %1735 = vmatpush.bf16.xpose.msra.mxu0 0
        %1736 = vmatpush.bf16.xpose.msra.mxu0 0
        %1737 = vmatpush.bf16.xpose.msra.mxu0 0
        %1738 = vmatpush.bf16.xpose.msra.mxu0 0
        %1739 = vmatpush.bf16.xpose.msra.mxu0 %v1730
        %1740 = vmatmul.bf16.gmra.mxu0 %v1727
        %v1741 = vpop.f32.mrf.mxu0
        %v1742 = vadd.f32 0.0, %v1741
        %v1743 = vpop.f32.mrf.mxu0
        %1744 = vdwg.mxu0
        %1745 = vrot.lane.b32.xlu0 %v1375, 32
        %v1746 = vpop.permute.xlu0 %1745
        %1747 = vrot.lane.b32.xlu0 %v1634, 96
        %v1748 = vpop.permute.xlu0 %1747
        %v1750 = vsel %vm1239, %v1746, 0
        %v1753 = vsel %vm1239, %v1748, 0
        %1755 = vmatpush.bf16.xpose.msra.mxu0 0
        %1756 = vmatpush.bf16.xpose.msra.mxu0 0
        %1757 = vmatpush.bf16.xpose.msra.mxu0 0
        %1758 = vmatpush.bf16.xpose.msra.mxu0 0
        %1759 = vmatpush.bf16.xpose.msra.mxu0 0
        %1760 = vmatpush.bf16.xpose.msra.mxu0 0
        %1761 = vmatpush.bf16.xpose.msra.mxu0 0
        %1762 = vmatpush.bf16.xpose.msra.mxu0 %v1753
        %1763 = vmatmul.bf16.gmra.mxu0 %v1750
        %v1764 = vpop.f32.mrf.mxu0
        %v1765 = vadd.f32 0.0, %v1764
        %v1766 = vpop.f32.mrf.mxu0
        %1767 = vdwg.mxu0
        %v1768 = vsel %vm1283, %v1742, -inf
        %1769 = vmax.xlane.f32.xlu0 %v1768
        %v1770 = vpop.xlane.xlu0 %1769
        %v1771 = vsel %vm1283, %v1765, -inf
        %1772 = vmax.xlane.f32.xlu0 %v1771
        %v1773 = vpop.xlane.xlu0 %1772
        %v1774 = vsub.f32 %v1742, %v1770
        %v1775 = vsub.f32 %v1765, %v1773
        %v1776 = vmul.f32 %v1774, 1.442695
        %v1777 = vpow.pop %v1776
        %v1778 = vmul.f32 %v1775, 1.442695
        %v1779 = vpow.pop %v1778
        %v1780 = vsel %vm1283, %v1777, 0.0
        %1781 = vadd.xlane.f32.xlu0 %v1780
        %v1782 = vpop.xlane.xlu0 %1781
        %v1783 = vsel %vm1283, %v1779, 0.0
        %1784 = vadd.xlane.f32.xlu0 %v1783
        %v1785 = vpop.xlane.xlu0 %1784
        %v1786 = vrcp.pop %v1782
        %v1787 = vrcp.pop %v1785
        %v1788 = vmul.f32 %v1777, %v1786
        %v1789 = vmul.f32 %v1779, %v1787
        %v1790 = vpack.c.bf16 %v1788, %v1788
        %v1791 = vpack.c.bf16 %v1789, %v1789
        %1792 = vrot.lane.b32.xlu0 %v1425, 32
        %v1793 = vpop.permute.xlu0 %1792
        %v1795 = vsel %vm1283, %v1790, 0
        %v1798 = vsel %vm1311, %v1793, 0
        %1800 = vmatpush.bf16.msra.mxu0 0
        %1801 = vmatpush.bf16.msra.mxu0 0
        %1802 = vmatpush.bf16.msra.mxu0 0
        %1803 = vmatpush.bf16.msra.mxu0 0
        %1804 = vmatpush.bf16.msra.mxu0 0
        %1805 = vmatpush.bf16.msra.mxu0 0
        %1806 = vmatpush.bf16.msra.mxu0 0
        %1807 = vmatpush.bf16.msra.mxu0 %v1798
        %1808 = vmatmul.bf16.gmra.mxu0 %v1795
        %v1809 = vpop.f32.mrf.mxu0
        %v1810 = vadd.f32 0.0, %v1809
        %v1811 = vpop.f32.mrf.mxu0
        %1812 = vdwg.mxu0
        %1813 = vrot.lane.b32.xlu0 %v1449, 32
        %v1814 = vpop.permute.xlu0 %1813
        %v1816 = vsel %vm1283, %v1791, 0
        %v1819 = vsel %vm1311, %v1814, 0
        %1821 = vmatpush.bf16.msra.mxu0 0
        %1822 = vmatpush.bf16.msra.mxu0 0
        %1823 = vmatpush.bf16.msra.mxu0 0
        %1824 = vmatpush.bf16.msra.mxu0 0
        %1825 = vmatpush.bf16.msra.mxu0 0
        %1826 = vmatpush.bf16.msra.mxu0 0
        %1827 = vmatpush.bf16.msra.mxu0 0
        %1828 = vmatpush.bf16.msra.mxu0 %v1819
        %1829 = vmatmul.bf16.gmra.mxu0 %v1816
        %v1830 = vpop.f32.mrf.mxu0
        %v1831 = vadd.f32 0.0, %v1830
        %v1832 = vpop.f32.mrf.mxu0
        %1833 = vdwg.mxu0
        %v1834 = vmul.f32 %v1138, 0.20412415
        %v1835 = vmul.f32 %v1140, 0.20412415
        %v1836 = vpack.c.bf16 %v1834, %v1226
        %v1837 = vpack.c.bf16 %v1835, %v1227
        %v1838 = vpack.c.bf16 %v1222, %v1194
        %v1839 = vpack.c.bf16 %v1224, %v1196
        %v1841 = vunpack.c.l.b16 %v1836
        %v1842 = vunpack.c.h.b16 %v1836
        %v1843 = vpack.c.b16 %v1841, %v1841
        %v1844 = vpack.c.b16 %v1842, %v1842
        %1845 = vrot.lane.b32.xlu0 %v1843, 8
        %v1846 = vpop.permute.xlu0 %1845
        %1847 = vrot.lane.b32.xlu0 %v1844, 8
        %v1848 = vpop.permute.xlu0 %1847
        %vm1849 = vcmask 64512
        %v1850 = vsel %vm1849, %v1846, %v1848
        %1851 = vrot.lane.b32.xlu0 %v1608, 72
        %v1852 = vpop.permute.xlu0 %1851
        %v1854 = vsel %vm1239, %v1850, 0
        %v1857 = vsel %vm1239, %v1852, 0
        %1859 = vmatpush.bf16.xpose.msra.mxu0 0
        %1860 = vmatpush.bf16.xpose.msra.mxu0 0
        %1861 = vmatpush.bf16.xpose.msra.mxu0 0
        %1862 = vmatpush.bf16.xpose.msra.mxu0 0
        %1863 = vmatpush.bf16.xpose.msra.mxu0 0
        %1864 = vmatpush.bf16.xpose.msra.mxu0 0
        %1865 = vmatpush.bf16.xpose.msra.mxu0 0
        %1866 = vmatpush.bf16.xpose.msra.mxu0 %v1857
        %1867 = vmatmul.bf16.gmra.mxu0 %v1854
        %v1868 = vpop.f32.mrf.mxu0
        %v1869 = vadd.f32 0.0, %v1868
        %v1870 = vpop.f32.mrf.mxu0
        %1871 = vdwg.mxu0
        %v1873 = vunpack.c.l.b16 %v1837
        %v1874 = vunpack.c.h.b16 %v1837
        %v1875 = vpack.c.b16 %v1873, %v1873
        %v1876 = vpack.c.b16 %v1874, %v1874
        %1877 = vrot.lane.b32.xlu0 %v1875, 8
        %v1878 = vpop.permute.xlu0 %1877
        %1879 = vrot.lane.b32.xlu0 %v1876, 8
        %v1880 = vpop.permute.xlu0 %1879
        %v1881 = vsel %vm1849, %v1878, %v1880
        %1882 = vrot.lane.b32.xlu0 %v1634, 72
        %v1883 = vpop.permute.xlu0 %1882
        %v1885 = vsel %vm1239, %v1881, 0
        %v1888 = vsel %vm1239, %v1883, 0
        %1890 = vmatpush.bf16.xpose.msra.mxu0 0
        %1891 = vmatpush.bf16.xpose.msra.mxu0 0
        %1892 = vmatpush.bf16.xpose.msra.mxu0 0
        %1893 = vmatpush.bf16.xpose.msra.mxu0 0
        %1894 = vmatpush.bf16.xpose.msra.mxu0 0
        %1895 = vmatpush.bf16.xpose.msra.mxu0 0
        %1896 = vmatpush.bf16.xpose.msra.mxu0 0
        %1897 = vmatpush.bf16.xpose.msra.mxu0 %v1888
        %1898 = vmatmul.bf16.gmra.mxu0 %v1885
        %v1899 = vpop.f32.mrf.mxu0
        %v1900 = vadd.f32 0.0, %v1899
        %v1901 = vpop.f32.mrf.mxu0
        %1902 = vdwg.mxu0
        %v1903 = vsel %vm1283, %v1869, -inf
        %1904 = vmax.xlane.f32.xlu0 %v1903
        %v1905 = vpop.xlane.xlu0 %1904
        %v1906 = vsel %vm1283, %v1900, -inf
        %1907 = vmax.xlane.f32.xlu0 %v1906
        %v1908 = vpop.xlane.xlu0 %1907
        %v1909 = vsub.f32 %v1869, %v1905
        %v1910 = vsub.f32 %v1900, %v1908
        %v1911 = vmul.f32 %v1909, 1.442695
        %v1912 = vpow.pop %v1911
        %v1913 = vmul.f32 %v1910, 1.442695
        %v1914 = vpow.pop %v1913
        %v1915 = vsel %vm1283, %v1912, 0.0
        %1916 = vadd.xlane.f32.xlu0 %v1915
        %v1917 = vpop.xlane.xlu0 %1916
        %v1918 = vsel %vm1283, %v1914, 0.0
        %1919 = vadd.xlane.f32.xlu0 %v1918
        %v1920 = vpop.xlane.xlu0 %1919
        %v1921 = vrcp.pop %v1917
        %v1922 = vrcp.pop %v1920
        %v1923 = vmul.f32 %v1912, %v1921
        %v1924 = vmul.f32 %v1914, %v1922
        %v1925 = vpack.c.bf16 %v1923, %v1923
        %v1926 = vpack.c.bf16 %v1924, %v1924
        %v1928 = vunpack.c.l.b16 %v1838
        %v1929 = vunpack.c.h.b16 %v1838
        %v1930 = vpack.c.b16 %v1928, %v1928
        %v1931 = vpack.c.b16 %v1929, %v1929
        %1932 = vrot.lane.b32.xlu0 %v1930, 8
        %v1933 = vpop.permute.xlu0 %1932
        %1934 = vrot.lane.b32.xlu0 %v1931, 8
        %v1935 = vpop.permute.xlu0 %1934
        %v1936 = vsel %vm1849, %v1933, %v1935
        %v1938 = vsel %vm1283, %v1925, 0
        %v1941 = vsel %vm1311, %v1936, 0
        %1943 = vmatpush.bf16.msra.mxu0 0
        %1944 = vmatpush.bf16.msra.mxu0 0
        %1945 = vmatpush.bf16.msra.mxu0 0
        %1946 = vmatpush.bf16.msra.mxu0 0
        %1947 = vmatpush.bf16.msra.mxu0 0
        %1948 = vmatpush.bf16.msra.mxu0 0
        %1949 = vmatpush.bf16.msra.mxu0 0
        %1950 = vmatpush.bf16.msra.mxu0 %v1941
        %1951 = vmatmul.bf16.gmra.mxu0 %v1938
        %v1952 = vpop.f32.mrf.mxu0
        %v1953 = vadd.f32 0.0, %v1952
        %v1954 = vpop.f32.mrf.mxu0
        %1955 = vdwg.mxu0
        %v1957 = vunpack.c.l.b16 %v1839
        %v1958 = vunpack.c.h.b16 %v1839
        %v1959 = vpack.c.b16 %v1957, %v1957
        %v1960 = vpack.c.b16 %v1958, %v1958
        %1961 = vrot.lane.b32.xlu0 %v1959, 8
        %v1962 = vpop.permute.xlu0 %1961
        %1963 = vrot.lane.b32.xlu0 %v1960, 8
        %v1964 = vpop.permute.xlu0 %1963
        %v1965 = vsel %vm1849, %v1962, %v1964
        %v1967 = vsel %vm1283, %v1926, 0
        %v1970 = vsel %vm1311, %v1965, 0
        %1972 = vmatpush.bf16.msra.mxu0 0
        %1973 = vmatpush.bf16.msra.mxu0 0
        %1974 = vmatpush.bf16.msra.mxu0 0
        %1975 = vmatpush.bf16.msra.mxu0 0
        %1976 = vmatpush.bf16.msra.mxu0 0
        %1977 = vmatpush.bf16.msra.mxu0 0
        %1978 = vmatpush.bf16.msra.mxu0 0
        %1979 = vmatpush.bf16.msra.mxu0 %v1970
        %1980 = vmatmul.bf16.gmra.mxu0 %v1967
        %v1981 = vpop.f32.mrf.mxu0
        %v1982 = vadd.f32 0.0, %v1981
        %v1983 = vpop.f32.mrf.mxu0
        %1984 = vdwg.mxu0
        %v1985 = vpack.c.bf16 %v1834, %v1834
        %v1986 = vpack.c.bf16 %v1835, %v1835
        %v1987 = vpack.c.bf16 %v1222, %v1222
        %v1988 = vpack.c.bf16 %v1224, %v1224
        %v1990 = vunpack.c.l.b16 %v1985
        %v1991 = vpack.c.b16 %v1990, %v1990
        %1992 = vrot.lane.b32.xlu0 %v1991, 112
        %v1993 = vpop.permute.xlu0 %1992
        %1994 = vrot.lane.b32.xlu0 %v1608, 48
        %v1995 = vpop.permute.xlu0 %1994
        %v1997 = vsel %vm1239, %v1993, 0
        %v2000 = vsel %vm1239, %v1995, 0
        %2002 = vmatpush.bf16.xpose.msra.mxu0 0
        %2003 = vmatpush.bf16.xpose.msra.mxu0 0
        %2004 = vmatpush.bf16.xpose.msra.mxu0 0
        %2005 = vmatpush.bf16.xpose.msra.mxu0 0
        %2006 = vmatpush.bf16.xpose.msra.mxu0 0
        %2007 = vmatpush.bf16.xpose.msra.mxu0 0
        %2008 = vmatpush.bf16.xpose.msra.mxu0 0
        %2009 = vmatpush.bf16.xpose.msra.mxu0 %v2000
        %2010 = vmatmul.bf16.gmra.mxu0 %v1997
        %v2011 = vpop.f32.mrf.mxu0
        %v2012 = vadd.f32 0.0, %v2011
        %v2013 = vpop.f32.mrf.mxu0
        %2014 = vdwg.mxu0
        %v2016 = vunpack.c.l.b16 %v1986
        %v2017 = vpack.c.b16 %v2016, %v2016
        %2018 = vrot.lane.b32.xlu0 %v2017, 112
        %v2019 = vpop.permute.xlu0 %2018
        %2020 = vrot.lane.b32.xlu0 %v1634, 48
        %v2021 = vpop.permute.xlu0 %2020
        %v2023 = vsel %vm1239, %v2019, 0
        %v2026 = vsel %vm1239, %v2021, 0
        %2028 = vmatpush.bf16.xpose.msra.mxu0 0
        %2029 = vmatpush.bf16.xpose.msra.mxu0 0
        %2030 = vmatpush.bf16.xpose.msra.mxu0 0
        %2031 = vmatpush.bf16.xpose.msra.mxu0 0
        %2032 = vmatpush.bf16.xpose.msra.mxu0 0
        %2033 = vmatpush.bf16.xpose.msra.mxu0 0
        %2034 = vmatpush.bf16.xpose.msra.mxu0 0
        %2035 = vmatpush.bf16.xpose.msra.mxu0 %v2026
        %2036 = vmatmul.bf16.gmra.mxu0 %v2023
        %v2037 = vpop.f32.mrf.mxu0
        %v2038 = vadd.f32 0.0, %v2037
        %v2039 = vpop.f32.mrf.mxu0
        %2040 = vdwg.mxu0
        %v2041 = vsel %vm1283, %v2012, -inf
        %2042 = vmax.xlane.f32.xlu0 %v2041
        %v2043 = vpop.xlane.xlu0 %2042
        %v2044 = vsel %vm1283, %v2038, -inf
        %2045 = vmax.xlane.f32.xlu0 %v2044
        %v2046 = vpop.xlane.xlu0 %2045
        %v2047 = vsub.f32 %v2012, %v2043
        %v2048 = vsub.f32 %v2038, %v2046
        %v2049 = vmul.f32 %v2047, 1.442695
        %v2050 = vpow.pop %v2049
        %v2051 = vmul.f32 %v2048, 1.442695
        %v2052 = vpow.pop %v2051
        %v2053 = vsel %vm1283, %v2050, 0.0
        %2054 = vadd.xlane.f32.xlu0 %v2053
        %v2055 = vpop.xlane.xlu0 %2054
        %v2056 = vsel %vm1283, %v2052, 0.0
        %2057 = vadd.xlane.f32.xlu0 %v2056
        %v2058 = vpop.xlane.xlu0 %2057
        %v2059 = vrcp.pop %v2055
        %v2060 = vrcp.pop %v2058
        %v2061 = vmul.f32 %v2050, %v2059
        %v2062 = vmul.f32 %v2052, %v2060
        %v2063 = vpack.c.bf16 %v2061, %v2061
        %v2064 = vpack.c.bf16 %v2062, %v2062
        %v2066 = vunpack.c.l.b16 %v1987
        %v2067 = vpack.c.b16 %v2066, %v2066
        %2068 = vrot.lane.b32.xlu0 %v2067, 112
        %v2069 = vpop.permute.xlu0 %2068
        %v2071 = vsel %vm1283, %v2063, 0
        %v2074 = vsel %vm1311, %v2069, 0
        %2076 = vmatpush.bf16.msra.mxu0 0
        %2077 = vmatpush.bf16.msra.mxu0 0
        %2078 = vmatpush.bf16.msra.mxu0 0
        %2079 = vmatpush.bf16.msra.mxu0 0
        %2080 = vmatpush.bf16.msra.mxu0 0
        %2081 = vmatpush.bf16.msra.mxu0 0
        %2082 = vmatpush.bf16.msra.mxu0 0
        %2083 = vmatpush.bf16.msra.mxu0 %v2074
        %2084 = vmatmul.bf16.gmra.mxu0 %v2071
        %v2085 = vpop.f32.mrf.mxu0
        %v2086 = vadd.f32 0.0, %v2085
        %v2087 = vpop.f32.mrf.mxu0
        %2088 = vdwg.mxu0
        %v2090 = vunpack.c.l.b16 %v1988
        %v2091 = vpack.c.b16 %v2090, %v2090
        %2092 = vrot.lane.b32.xlu0 %v2091, 112
        %v2093 = vpop.permute.xlu0 %2092
        %v2095 = vsel %vm1283, %v2064, 0
        %v2098 = vsel %vm1311, %v2093, 0
        %2100 = vmatpush.bf16.msra.mxu0 0
        %2101 = vmatpush.bf16.msra.mxu0 0
        %2102 = vmatpush.bf16.msra.mxu0 0
        %2103 = vmatpush.bf16.msra.mxu0 0
        %2104 = vmatpush.bf16.msra.mxu0 0
        %2105 = vmatpush.bf16.msra.mxu0 0
        %2106 = vmatpush.bf16.msra.mxu0 0
        %2107 = vmatpush.bf16.msra.mxu0 %v2098
        %2108 = vmatmul.bf16.gmra.mxu0 %v2095
        %v2109 = vpop.f32.mrf.mxu0
        %v2110 = vadd.f32 0.0, %v2109
        %v2111 = vpop.f32.mrf.mxu0
        %2112 = vdwg.mxu0
        %2113 = vrot.lane.b32.xlu0 %v1991, 88
        %v2114 = vpop.permute.xlu0 %2113
        %2115 = vrot.lane.b32.xlu0 %v1608, 24
        %v2116 = vpop.permute.xlu0 %2115
        %v2118 = vsel %vm1239, %v2114, 0
        %v2121 = vsel %vm1239, %v2116, 0
        %2123 = vmatpush.bf16.xpose.msra.mxu0 0
        %2124 = vmatpush.bf16.xpose.msra.mxu0 0
        %2125 = vmatpush.bf16.xpose.msra.mxu0 0
        %2126 = vmatpush.bf16.xpose.msra.mxu0 0
        %2127 = vmatpush.bf16.xpose.msra.mxu0 0
        %2128 = vmatpush.bf16.xpose.msra.mxu0 0
        %2129 = vmatpush.bf16.xpose.msra.mxu0 0
        %2130 = vmatpush.bf16.xpose.msra.mxu0 %v2121
        %2131 = vmatmul.bf16.gmra.mxu0 %v2118
        %v2132 = vpop.f32.mrf.mxu0
        %v2133 = vadd.f32 0.0, %v2132
        %v2134 = vpop.f32.mrf.mxu0
        %2135 = vdwg.mxu0
        %2136 = vrot.lane.b32.xlu0 %v2017, 88
        %v2137 = vpop.permute.xlu0 %2136
        %2138 = vrot.lane.b32.xlu0 %v1634, 24
        %v2139 = vpop.permute.xlu0 %2138
        %v2141 = vsel %vm1239, %v2137, 0
        %v2144 = vsel %vm1239, %v2139, 0
        %2146 = vmatpush.bf16.xpose.msra.mxu0 0
        %2147 = vmatpush.bf16.xpose.msra.mxu0 0
        %2148 = vmatpush.bf16.xpose.msra.mxu0 0
        %2149 = vmatpush.bf16.xpose.msra.mxu0 0
        %2150 = vmatpush.bf16.xpose.msra.mxu0 0
        %2151 = vmatpush.bf16.xpose.msra.mxu0 0
        %2152 = vmatpush.bf16.xpose.msra.mxu0 0
        %2153 = vmatpush.bf16.xpose.msra.mxu0 %v2144
        %2154 = vmatmul.bf16.gmra.mxu0 %v2141
        %v2155 = vpop.f32.mrf.mxu0
        %v2156 = vadd.f32 0.0, %v2155
        %v2157 = vpop.f32.mrf.mxu0
        %2158 = vdwg.mxu0
        %v2159 = vsel %vm1283, %v2133, -inf
        %2160 = vmax.xlane.f32.xlu0 %v2159
        %v2161 = vpop.xlane.xlu0 %2160
        %v2162 = vsel %vm1283, %v2156, -inf
        %2163 = vmax.xlane.f32.xlu0 %v2162
        %v2164 = vpop.xlane.xlu0 %2163
        %v2165 = vsub.f32 %v2133, %v2161
        %v2166 = vsub.f32 %v2156, %v2164
        %v2167 = vmul.f32 %v2165, 1.442695
        %v2168 = vpow.pop %v2167
        %v2169 = vmul.f32 %v2166, 1.442695
        %v2170 = vpow.pop %v2169
        %v2171 = vsel %vm1283, %v2168, 0.0
        %2172 = vadd.xlane.f32.xlu0 %v2171
        %v2173 = vpop.xlane.xlu0 %2172
        %v2174 = vsel %vm1283, %v2170, 0.0
        %2175 = vadd.xlane.f32.xlu0 %v2174
        %v2176 = vpop.xlane.xlu0 %2175
        %v2177 = vrcp.pop %v2173
        %v2178 = vrcp.pop %v2176
        %v2179 = vmul.f32 %v2168, %v2177
        %v2180 = vmul.f32 %v2170, %v2178
        %v2181 = vpack.c.bf16 %v2179, %v2179
        %v2182 = vpack.c.bf16 %v2180, %v2180
        %2183 = vrot.lane.b32.xlu0 %v2067, 88
        %v2184 = vpop.permute.xlu0 %2183
        %v2186 = vsel %vm1283, %v2181, 0
        %v2189 = vsel %vm1311, %v2184, 0
        %2191 = vmatpush.bf16.msra.mxu0 0
        %2192 = vmatpush.bf16.msra.mxu0 0
        %2193 = vmatpush.bf16.msra.mxu0 0
        %2194 = vmatpush.bf16.msra.mxu0 0
        %2195 = vmatpush.bf16.msra.mxu0 0
        %2196 = vmatpush.bf16.msra.mxu0 0
        %2197 = vmatpush.bf16.msra.mxu0 0
        %2198 = vmatpush.bf16.msra.mxu0 %v2189
        %2199 = vmatmul.bf16.gmra.mxu0 %v2186
        %v2200 = vpop.f32.mrf.mxu0
        %v2201 = vadd.f32 0.0, %v2200
        %v2202 = vpop.f32.mrf.mxu0
        %2203 = vdwg.mxu0
        %2204 = vrot.lane.b32.xlu0 %v2091, 88
        %v2205 = vpop.permute.xlu0 %2204
        %v2207 = vsel %vm1283, %v2182, 0
        %v2210 = vsel %vm1311, %v2205, 0
        %2212 = vmatpush.bf16.msra.mxu0 0
        %2213 = vmatpush.bf16.msra.mxu0 0
        %2214 = vmatpush.bf16.msra.mxu0 0
        %2215 = vmatpush.bf16.msra.mxu0 0
        %2216 = vmatpush.bf16.msra.mxu0 0
        %2217 = vmatpush.bf16.msra.mxu0 0
        %2218 = vmatpush.bf16.msra.mxu0 0
        %2219 = vmatpush.bf16.msra.mxu0 %v2210
        %2220 = vmatmul.bf16.gmra.mxu0 %v2207
        %v2221 = vpop.f32.mrf.mxu0
        %v2222 = vadd.f32 0.0, %v2221
        %v2223 = vpop.f32.mrf.mxu0
        %2224 = vdwg.mxu0
        %2227 = vrot.lane.b32.xlu0 %v1444, 24
        %v2228 = vpop.permute.xlu0 %2227
        %2229 = vrot.lane.b32.xlu0 %v1468, 24
        %v2230 = vpop.permute.xlu0 %2229
        %2235 = vrot.lane.b32.xlu0 %v1578, 48
        %v2236 = vpop.permute.xlu0 %2235
        %2237 = vrot.lane.b32.xlu0 %v1599, 48
        %v2238 = vpop.permute.xlu0 %2237
        %2243 = vrot.lane.b32.xlu0 %v1698, 72
        %v2244 = vpop.permute.xlu0 %2243
        %2245 = vrot.lane.b32.xlu0 %v1719, 72
        %v2246 = vpop.permute.xlu0 %2245
        %2251 = vrot.lane.b32.xlu0 %v1810, 96
        %v2252 = vpop.permute.xlu0 %2251
        %2253 = vrot.lane.b32.xlu0 %v1831, 96
        %v2254 = vpop.permute.xlu0 %2253
        %2259 = vrot.lane.b32.xlu0 %v1953, 120
        %v2260 = vpop.permute.xlu0 %2259
        %2261 = vrot.lane.b32.xlu0 %v1982, 120
        %v2262 = vpop.permute.xlu0 %2261
        %2267 = vrot.lane.b32.xlu0 %v2086, 16
        %v2268 = vpop.permute.xlu0 %2267
        %2269 = vrot.lane.b32.xlu0 %v2110, 16
        %v2270 = vpop.permute.xlu0 %2269
        %2275 = vrot.lane.b32.xlu0 %v2201, 40
        %v2276 = vpop.permute.xlu0 %2275
        %2277 = vrot.lane.b32.xlu0 %v2222, 40
        %v2278 = vpop.permute.xlu0 %2277
        %v2281 = vsel %vm1239, %v1325, %v2228
        %v2282 = vsel %vm1239, %v1344, %v2230
        %vm2283 = vcmask 392192
        %v2284 = vsel %vm2283, %v2281, %v2236
        %v2285 = vsel %vm2283, %v2282, %v2238
        %vm2286 = vcmask 588800
        %v2287 = vsel %vm2286, %v2284, %v2244
        %v2288 = vsel %vm2286, %v2285, %v2246
        %vm2289 = vcmask 785408
        %v2290 = vsel %vm2289, %v2287, %v2252
        %v2291 = vsel %vm2289, %v2288, %v2254
        %vm2292 = vcmask 982016
        %v2293 = vsel %vm2292, %v2290, %v2260
        %v2294 = vsel %vm2292, %v2291, %v2262
        %vm2295 = vcmask 130048
        %v2296 = vsel %vm2295, %v2260, %v2268
        %v2297 = vsel %vm2295, %v2262, %v2270
        %vm2298 = vcmask 326656
        %v2299 = vsel %vm2298, %v2296, %v2276
        %v2300 = vsel %vm2298, %v2297, %v2278
        %v2301 = vpack.c.bf16 %v2294, %v2293
        %v2302 = vpack.c.bf16 %v2300, %v2299
        %v2303 = vld [vmem:[%s626] sm:$0xff]
        %v2304 = vld [vmem:[%s626 + $0x8] sm:$0xff]
        %v2305 = vld [vmem:[%s626 + $0x10] sm:$0xff]
        %v2306 = vld [vmem:[%s626 + $0x18] sm:$0xff]
        %v2307 = vld [vmem:[%s626 + $0x20] sm:$0xff]
        %v2308 = vld [vmem:[%s626 + $0x28] sm:$0xff]
        %v2309 = vld [vmem:[%s626 + $0x30] sm:$0xff]
        %v2310 = vld [vmem:[%s626 + $0x38] sm:$0xff]
        %v2311 = vld [vmem:[%s626 + $0x40] sm:$0xff]
        %v2312 = vld [vmem:[%s626 + $0x48] sm:$0xff]
        %v2313 = vld [vmem:[%s626 + $0x50] sm:$0xff]
        %v2314 = vld [vmem:[%s626 + $0x58] sm:$0xff]
        %v2315 = vld [vmem:[%s626 + $0x60] sm:$0xff]
        %v2316 = vld [vmem:[%s626 + $0x68] sm:$0xff]
        %v2317 = vld [vmem:[%s626 + $0x70] sm:$0xff]
        %v2318 = vld [vmem:[%s626 + $0x78] sm:$0xff]
        %v2319 = vld [vmem:[%s626 + $0x80] sm:$0xff]
        %v2320 = vld [vmem:[%s626 + $0x88] sm:$0xff]
        %v2321 = vld [vmem:[%s626 + $0x90] sm:$0xff]
        %v2322 = vld [vmem:[%s626 + $0x98] sm:$0xff]
        %v2323 = vld [vmem:[%s626 + $0xa0] sm:$0xff]
        %v2324 = vld [vmem:[%s626 + $0xa8] sm:$0xff]
        %v2325 = vld [vmem:[%s626 + $0xb0] sm:$0xff]
        %v2326 = vld [vmem:[%s626 + $0xb8] sm:$0xff]
        %v2327 = vld [vmem:[%s630] sm:$0x3]
        %v2329 = vperm.slane %v2327, 0
        %v2330 = vperm.slane %v2327, 1
        %v2357 = vunpack.c.l.b16 %v2303
        %v2358 = vunpack.c.h.b16 %v2303
        %v2359 = vunpack.c.l.b16 %v2304
        %v2360 = vunpack.c.h.b16 %v2304
        %v2361 = vunpack.c.l.b16 %v2305
        %v2362 = vunpack.c.h.b16 %v2305
        %v2363 = vunpack.c.l.b16 %v2306
        %v2364 = vunpack.c.h.b16 %v2306
        %v2365 = vunpack.c.l.b16 %v2307
        %v2366 = vunpack.c.h.b16 %v2307
        %v2367 = vunpack.c.l.b16 %v2308
        %v2368 = vunpack.c.h.b16 %v2308
        %v2369 = vunpack.c.l.b16 %v2309
        %v2370 = vunpack.c.h.b16 %v2309
        %v2371 = vunpack.c.l.b16 %v2310
        %v2372 = vunpack.c.h.b16 %v2310
        %v2373 = vunpack.c.l.b16 %v2311
        %v2374 = vunpack.c.h.b16 %v2311
        %v2375 = vunpack.c.l.b16 %v2312
        %v2376 = vunpack.c.h.b16 %v2312
        %v2377 = vunpack.c.l.b16 %v2313
        %v2378 = vunpack.c.h.b16 %v2313
        %v2379 = vunpack.c.l.b16 %v2314
        %v2380 = vunpack.c.h.b16 %v2314
        %v2381 = vunpack.c.l.b16 %v2315
        %v2382 = vunpack.c.h.b16 %v2315
        %v2383 = vunpack.c.l.b16 %v2316
        %v2384 = vunpack.c.h.b16 %v2316
        %v2385 = vunpack.c.l.b16 %v2317
        %v2386 = vunpack.c.h.b16 %v2317
        %v2387 = vunpack.c.l.b16 %v2318
        %v2388 = vunpack.c.h.b16 %v2318
        %v2389 = vunpack.c.l.b16 %v2319
        %v2390 = vunpack.c.h.b16 %v2319
        %v2391 = vunpack.c.l.b16 %v2320
        %v2392 = vunpack.c.h.b16 %v2320
        %v2393 = vunpack.c.l.b16 %v2321
        %v2394 = vunpack.c.h.b16 %v2321
        %v2395 = vunpack.c.l.b16 %v2322
        %v2396 = vunpack.c.h.b16 %v2322
        %v2397 = vunpack.c.l.b16 %v2323
        %v2398 = vunpack.c.h.b16 %v2323
        %v2399 = vunpack.c.l.b16 %v2324
        %v2400 = vunpack.c.h.b16 %v2324
        %v2401 = vunpack.c.l.b16 %v2325
        %v2402 = vunpack.c.h.b16 %v2325
        %v2403 = vunpack.c.l.b16 %v2326
        %v2404 = vunpack.c.h.b16 %v2326
        %v2405 = vpack.c.b16 %v2359, %v2357
        %v2406 = vpack.c.b16 %v2360, %v2358
        %v2407 = vpack.c.b16 %v2363, %v2361
        %v2408 = vpack.c.b16 %v2364, %v2362
        %v2409 = vpack.c.b16 %v2367, %v2365
        %v2410 = vpack.c.b16 %v2368, %v2366
        %v2411 = vpack.c.b16 %v2371, %v2369
        %v2412 = vpack.c.b16 %v2372, %v2370
        %v2413 = vpack.c.b16 %v2375, %v2373
        %v2414 = vpack.c.b16 %v2376, %v2374
        %v2415 = vpack.c.b16 %v2379, %v2377
        %v2416 = vpack.c.b16 %v2380, %v2378
        %v2417 = vpack.c.b16 %v2383, %v2381
        %v2418 = vpack.c.b16 %v2384, %v2382
        %v2419 = vpack.c.b16 %v2387, %v2385
        %v2420 = vpack.c.b16 %v2388, %v2386
        %v2421 = vpack.c.b16 %v2391, %v2389
        %v2422 = vpack.c.b16 %v2392, %v2390
        %v2423 = vpack.c.b16 %v2395, %v2393
        %v2424 = vpack.c.b16 %v2396, %v2394
        %v2425 = vpack.c.b16 %v2399, %v2397
        %v2426 = vpack.c.b16 %v2400, %v2398
        %v2427 = vpack.c.b16 %v2403, %v2401
        %v2428 = vpack.c.b16 %v2404, %v2402
        %v2454 = vsel %vm1082, %v2302, 0
        %2456 = vmatpush.bf16.msra.mxu0 %v2419
        %2457 = vmatpush.bf16.msra.mxu0 %v2417
        %2458 = vmatpush.bf16.msra.mxu0 %v2415
        %2459 = vmatpush.bf16.msra.mxu0 %v2413
        %2460 = vmatpush.bf16.msra.mxu0 %v2411
        %2461 = vmatpush.bf16.msra.mxu0 %v2409
        %2462 = vmatpush.bf16.msra.mxu0 %v2407
        %2463 = vmatpush.bf16.msra.mxu0 %v2405
        %2464 = vmatmul.bf16.gmra.mxu0 %v2301
        %v2465 = vpop.f32.mrf.mxu0
        %v2466 = vadd.f32 %v2329, %v2465
        %v2467 = vpop.f32.mrf.mxu0
        %v2468 = vadd.f32 %v2329, %v2467
        %2469 = vdwg.mxu0
        %2470 = vmatpush.bf16.msra.mxu0 0
        %2471 = vmatpush.bf16.msra.mxu0 0
        %2472 = vmatpush.bf16.msra.mxu0 0
        %2473 = vmatpush.bf16.msra.mxu0 0
        %2474 = vmatpush.bf16.msra.mxu0 %v2427
        %2475 = vmatpush.bf16.msra.mxu0 %v2425
        %2476 = vmatpush.bf16.msra.mxu0 %v2423
        %2477 = vmatpush.bf16.msra.mxu0 %v2421
        %2478 = vmatmul.bf16.gmra.mxu0 %v2454
        %v2479 = vpop.f32.mrf.mxu0
        %v2480 = vadd.f32 %v2466, %v2479
        %v2481 = vpop.f32.mrf.mxu0
        %v2482 = vadd.f32 %v2468, %v2481
        %2483 = vdwg.mxu0
        %2484 = vmatpush.bf16.msra.mxu0 %v2420
        %2485 = vmatpush.bf16.msra.mxu0 %v2418
        %2486 = vmatpush.bf16.msra.mxu0 %v2416
        %2487 = vmatpush.bf16.msra.mxu0 %v2414
        %2488 = vmatpush.bf16.msra.mxu0 %v2412
        %2489 = vmatpush.bf16.msra.mxu0 %v2410
        %2490 = vmatpush.bf16.msra.mxu0 %v2408
        %2491 = vmatpush.bf16.msra.mxu0 %v2406
        %2492 = vmatmul.bf16.gmra.mxu0 %v2301
        %v2493 = vpop.f32.mrf.mxu0
        %v2494 = vadd.f32 %v2330, %v2493
        %v2495 = vpop.f32.mrf.mxu0
        %v2496 = vadd.f32 %v2330, %v2495
        %2497 = vdwg.mxu0
        %2498 = vmatpush.bf16.msra.mxu0 0
        %2499 = vmatpush.bf16.msra.mxu0 0
        %2500 = vmatpush.bf16.msra.mxu0 0
        %2501 = vmatpush.bf16.msra.mxu0 0
        %2502 = vmatpush.bf16.msra.mxu0 %v2428
        %2503 = vmatpush.bf16.msra.mxu0 %v2426
        %2504 = vmatpush.bf16.msra.mxu0 %v2424
        %2505 = vmatpush.bf16.msra.mxu0 %v2422
        %2506 = vmatmul.bf16.gmra.mxu0 %v2454
        %v2507 = vpop.f32.mrf.mxu0
        %v2508 = vadd.f32 %v2494, %v2507
        %v2509 = vpop.f32.mrf.mxu0
        %v2510 = vadd.f32 %v2496, %v2509
        %2511 = vdwg.mxu0
        %v2512 = vadd.f32 %v680, %v2480
        %v2513 = vadd.f32 %v681, %v2508
        %v2514 = vadd.f32 %v682, %v2482
        %v2515 = vadd.f32 %v683, %v2510
        %v2516 = vsel %vm1082, %v2513, 0.0
        %v2517 = vadd.f32 %v2512, %v2516
        %2518 = vadd.xlane.f32.xlu0 %v2517
        %v2519 = vpop.xlane.xlu0 %2518
        %v2520 = vsel %vm1082, %v2515, 0.0
        %v2521 = vadd.f32 %v2514, %v2520
        %2522 = vadd.xlane.f32.xlu0 %v2521
        %v2523 = vpop.xlane.xlu0 %2522
        %v2524 = vrcp.pop 192.0
        %v2525 = vmul.f32 192.0, %v2524
        %v2526 = vsub.f32 1.0, %v2525
        %v2527 = vmul.f32 %v2524, %v2526
        %v2528 = vadd.f32 %v2524, %v2527
        %vm2529 = vweird.f32 %v2524
        %v2530 = vsel %vm2529, %v2524, %v2528
        %v2531 = vmul.f32 %v2519, %v2530
        %v2532 = vmul.f32 %v2523, %v2530
        %v2533 = vsub.f32 %v2512, %v2531
        %v2534 = vsub.f32 %v2513, %v2531
        %v2535 = vsub.f32 %v2514, %v2532
        %v2536 = vsub.f32 %v2515, %v2532
        %v2537 = vmul.f32 %v2533, %v2533
        %v2538 = vmul.f32 %v2534, %v2534
        %v2539 = vmul.f32 %v2535, %v2535
        %v2540 = vmul.f32 %v2536, %v2536
        %v2541 = vsel %vm1082, %v2538, 0.0
        %v2542 = vadd.f32 %v2537, %v2541
        %2543 = vadd.xlane.f32.xlu0 %v2542
        %v2544 = vpop.xlane.xlu0 %2543
        %v2545 = vsel %vm1082, %v2540, 0.0
        %v2546 = vadd.f32 %v2539, %v2545
        %2547 = vadd.xlane.f32.xlu0 %v2546
        %v2548 = vpop.xlane.xlu0 %2547
        %v2549 = vmul.f32 %v2544, %v2530
        %v2550 = vmul.f32 %v2548, %v2530
        %v2551 = vadd.f32 %v2549, 1e-05
        %v2552 = vadd.f32 %v2550, 1e-05
        %v2553 = vrsqrt.pop %v2551
        %v2554 = vmul.f32 %v2553, %v2551
        %v2555 = vmul.f32 %v2554, %v2553
        %v2556 = vmul.f32 0.5, %v2555
        %v2557 = vsub.f32 1.5, %v2556
        %v2558 = vmul.f32 %v2553, %v2557
        %vm2559 = vweird.f32 %v2551
        %vm2560 = vweird.f32 %v2553
        %vm2561 = vmor %vm2559, %vm2560
        %v2562 = vsel %vm2561, %v2553, %v2558
        %v2563 = vrsqrt.pop %v2552
        %v2564 = vmul.f32 %v2563, %v2552
        %v2565 = vmul.f32 %v2564, %v2563
        %v2566 = vmul.f32 0.5, %v2565
        %v2567 = vsub.f32 1.5, %v2566
        %v2568 = vmul.f32 %v2563, %v2567
        %vm2569 = vweird.f32 %v2552
        %vm2570 = vweird.f32 %v2563
        %vm2571 = vmor %vm2569, %vm2570
        %v2572 = vsel %vm2571, %v2563, %v2568
        %v2573 = vmul.f32 %v2533, %v2562
        %v2574 = vmul.f32 %v2534, %v2562
        %v2575 = vmul.f32 %v2535, %v2572
        %v2576 = vmul.f32 %v2536, %v2572
        %v2577 = vld [vmem:[%s634] sm:$0x3]
        %v2579 = vperm.slane %v2577, 0
        %v2580 = vperm.slane %v2577, 1
        %v2583 = vmul.f32 %v2573, %v2579
        %v2584 = vmul.f32 %v2574, %v2580
        %v2585 = vmul.f32 %v2575, %v2579
        %v2586 = vmul.f32 %v2576, %v2580
        %v2587 = vld [vmem:[%s638] sm:$0x3]
        %v2589 = vperm.slane %v2587, 0
        %v2590 = vperm.slane %v2587, 1
        %v2593 = vadd.f32 %v2583, %v2589
        %v2594 = vadd.f32 %v2584, %v2590
        %v2595 = vadd.f32 %v2585, %v2589
        %v2596 = vadd.f32 %v2586, %v2590
        %v2597 = vpack.c.bf16 %v2595, %v2593
        %v2598 = vpack.c.bf16 %v2596, %v2594
        %v2599 = vld [vmem:[%s643] sm:$0xff]
        %v2600 = vld [vmem:[%s643 + $0x8] sm:$0xff]
        %v2601 = vld [vmem:[%s643 + $0x10] sm:$0xff]
        %v2602 = vld [vmem:[%s643 + $0x18] sm:$0xff]
        %v2603 = vld [vmem:[%s643 + $0x20] sm:$0xff]
        %v2604 = vld [vmem:[%s643 + $0x28] sm:$0xff]
        %v2605 = vld [vmem:[%s643 + $0x30] sm:$0xff]
        %v2606 = vld [vmem:[%s643 + $0x38] sm:$0xff]
        %v2607 = vld [vmem:[%s643 + $0x40] sm:$0xff]
        %v2608 = vld [vmem:[%s643 + $0x48] sm:$0xff]
        %v2609 = vld [vmem:[%s643 + $0x50] sm:$0xff]
        %v2610 = vld [vmem:[%s643 + $0x58] sm:$0xff]
        %v2611 = vld [vmem:[%s643 + $0x60] sm:$0xff]
        %v2612 = vld [vmem:[%s643 + $0x68] sm:$0xff]
        %v2613 = vld [vmem:[%s643 + $0x70] sm:$0xff]
        %v2614 = vld [vmem:[%s643 + $0x78] sm:$0xff]
        %v2615 = vld [vmem:[%s643 + $0x80] sm:$0xff]
        %v2616 = vld [vmem:[%s643 + $0x88] sm:$0xff]
        %v2617 = vld [vmem:[%s643 + $0x90] sm:$0xff]
        %v2618 = vld [vmem:[%s643 + $0x98] sm:$0xff]
        %v2619 = vld [vmem:[%s643 + $0xa0] sm:$0xff]
        %v2620 = vld [vmem:[%s643 + $0xa8] sm:$0xff]
        %v2621 = vld [vmem:[%s643 + $0xb0] sm:$0xff]
        %v2622 = vld [vmem:[%s643 + $0xb8] sm:$0xff]
        %v2623 = vld [vmem:[%s643 + $0xc0] sm:$0xff]
        %v2624 = vld [vmem:[%s643 + $0xc8] sm:$0xff]
        %v2625 = vld [vmem:[%s643 + $0xd0] sm:$0xff]
        %v2626 = vld [vmem:[%s643 + $0xd8] sm:$0xff]
        %v2627 = vld [vmem:[%s643 + $0xe0] sm:$0xff]
        %v2628 = vld [vmem:[%s643 + $0xe8] sm:$0xff]
        %v2629 = vld [vmem:[%s643 + $0xf0] sm:$0xff]
        %v2630 = vld [vmem:[%s643 + $0xf8] sm:$0xff]
        %v2631 = vld [vmem:[%s643 + $0x100] sm:$0xff]
        %v2632 = vld [vmem:[%s643 + $0x108] sm:$0xff]
        %v2633 = vld [vmem:[%s643 + $0x110] sm:$0xff]
        %v2634 = vld [vmem:[%s643 + $0x118] sm:$0xff]
        %v2635 = vld [vmem:[%s643 + $0x120] sm:$0xff]
        %v2636 = vld [vmem:[%s643 + $0x128] sm:$0xff]
        %v2637 = vld [vmem:[%s643 + $0x130] sm:$0xff]
        %v2638 = vld [vmem:[%s643 + $0x138] sm:$0xff]
        %v2639 = vld [vmem:[%s643 + $0x140] sm:$0xff]
        %v2640 = vld [vmem:[%s643 + $0x148] sm:$0xff]
        %v2641 = vld [vmem:[%s643 + $0x150] sm:$0xff]
        %v2642 = vld [vmem:[%s643 + $0x158] sm:$0xff]
        %v2643 = vld [vmem:[%s643 + $0x160] sm:$0xff]
        %v2644 = vld [vmem:[%s643 + $0x168] sm:$0xff]
        %v2645 = vld [vmem:[%s643 + $0x170] sm:$0xff]
        %v2646 = vld [vmem:[%s643 + $0x178] sm:$0xff]
        %v2647 = vld [vmem:[%s643 + $0x180] sm:$0xff]
        %v2648 = vld [vmem:[%s643 + $0x188] sm:$0xff]
        %v2649 = vld [vmem:[%s643 + $0x190] sm:$0xff]
        %v2650 = vld [vmem:[%s643 + $0x198] sm:$0xff]
        %v2651 = vld [vmem:[%s643 + $0x1a0] sm:$0xff]
        %v2652 = vld [vmem:[%s643 + $0x1a8] sm:$0xff]
        %v2653 = vld [vmem:[%s643 + $0x1b0] sm:$0xff]
        %v2654 = vld [vmem:[%s643 + $0x1b8] sm:$0xff]
        %v2655 = vld [vmem:[%s643 + $0x1c0] sm:$0xff]
        %v2656 = vld [vmem:[%s643 + $0x1c8] sm:$0xff]
        %v2657 = vld [vmem:[%s643 + $0x1d0] sm:$0xff]
        %v2658 = vld [vmem:[%s643 + $0x1d8] sm:$0xff]
        %v2659 = vld [vmem:[%s643 + $0x1e0] sm:$0xff]
        %v2660 = vld [vmem:[%s643 + $0x1e8] sm:$0xff]
        %v2661 = vld [vmem:[%s643 + $0x1f0] sm:$0xff]
        %v2662 = vld [vmem:[%s643 + $0x1f8] sm:$0xff]
        %v2663 = vld [vmem:[%s643 + $0x200] sm:$0xff]
        %v2664 = vld [vmem:[%s643 + $0x208] sm:$0xff]
        %v2665 = vld [vmem:[%s643 + $0x210] sm:$0xff]
        %v2666 = vld [vmem:[%s643 + $0x218] sm:$0xff]
        %v2667 = vld [vmem:[%s643 + $0x220] sm:$0xff]
        %v2668 = vld [vmem:[%s643 + $0x228] sm:$0xff]
        %v2669 = vld [vmem:[%s643 + $0x230] sm:$0xff]
        %v2670 = vld [vmem:[%s643 + $0x238] sm:$0xff]
        %v2671 = vld [vmem:[%s647] sm:$0x3f]
        %v2673 = vperm.slane %v2671, 0
        %v2674 = vperm.slane %v2671, 1
        %v2675 = vperm.slane %v2671, 2
        %v2676 = vperm.slane %v2671, 3
        %v2677 = vperm.slane %v2671, 4
        %v2678 = vperm.slane %v2671, 5
        %v2757 = vunpack.c.l.b16 %v2599
        %v2758 = vunpack.c.h.b16 %v2599
        %v2759 = vunpack.c.l.b16 %v2600
        %v2760 = vunpack.c.h.b16 %v2600
        %v2761 = vunpack.c.l.b16 %v2601
        %v2762 = vunpack.c.h.b16 %v2601
        %v2763 = vunpack.c.l.b16 %v2602
        %v2764 = vunpack.c.h.b16 %v2602
        %v2765 = vunpack.c.l.b16 %v2603
        %v2766 = vunpack.c.h.b16 %v2603
        %v2767 = vunpack.c.l.b16 %v2604
        %v2768 = vunpack.c.h.b16 %v2604
        %v2769 = vunpack.c.l.b16 %v2605
        %v2770 = vunpack.c.h.b16 %v2605
        %v2771 = vunpack.c.l.b16 %v2606
        %v2772 = vunpack.c.h.b16 %v2606
        %v2773 = vunpack.c.l.b16 %v2607
        %v2774 = vunpack.c.h.b16 %v2607
        %v2775 = vunpack.c.l.b16 %v2608
        %v2776 = vunpack.c.h.b16 %v2608
        %v2777 = vunpack.c.l.b16 %v2609
        %v2778 = vunpack.c.h.b16 %v2609
        %v2779 = vunpack.c.l.b16 %v2610
        %v2780 = vunpack.c.h.b16 %v2610
        %v2781 = vunpack.c.l.b16 %v2611
        %v2782 = vunpack.c.h.b16 %v2611
        %v2783 = vunpack.c.l.b16 %v2612
        %v2784 = vunpack.c.h.b16 %v2612
        %v2785 = vunpack.c.l.b16 %v2613
        %v2786 = vunpack.c.h.b16 %v2613
        %v2787 = vunpack.c.l.b16 %v2614
        %v2788 = vunpack.c.h.b16 %v2614
        %v2789 = vunpack.c.l.b16 %v2615
        %v2790 = vunpack.c.h.b16 %v2615
        %v2791 = vunpack.c.l.b16 %v2616
        %v2792 = vunpack.c.h.b16 %v2616
        %v2793 = vunpack.c.l.b16 %v2617
        %v2794 = vunpack.c.h.b16 %v2617
        %v2795 = vunpack.c.l.b16 %v2618
        %v2796 = vunpack.c.h.b16 %v2618
        %v2797 = vunpack.c.l.b16 %v2619
        %v2798 = vunpack.c.h.b16 %v2619
        %v2799 = vunpack.c.l.b16 %v2620
        %v2800 = vunpack.c.h.b16 %v2620
        %v2801 = vunpack.c.l.b16 %v2621
        %v2802 = vunpack.c.h.b16 %v2621
        %v2803 = vunpack.c.l.b16 %v2622
        %v2804 = vunpack.c.h.b16 %v2622
        %v2805 = vunpack.c.l.b16 %v2623
        %v2806 = vunpack.c.h.b16 %v2623
        %v2807 = vunpack.c.l.b16 %v2624
        %v2808 = vunpack.c.h.b16 %v2624
        %v2809 = vunpack.c.l.b16 %v2625
        %v2810 = vunpack.c.h.b16 %v2625
        %v2811 = vunpack.c.l.b16 %v2626
        %v2812 = vunpack.c.h.b16 %v2626
        %v2813 = vunpack.c.l.b16 %v2627
        %v2814 = vunpack.c.h.b16 %v2627
        %v2815 = vunpack.c.l.b16 %v2628
        %v2816 = vunpack.c.h.b16 %v2628
        %v2817 = vunpack.c.l.b16 %v2629
        %v2818 = vunpack.c.h.b16 %v2629
        %v2819 = vunpack.c.l.b16 %v2630
        %v2820 = vunpack.c.h.b16 %v2630
        %v2821 = vunpack.c.l.b16 %v2631
        %v2822 = vunpack.c.h.b16 %v2631
        %v2823 = vunpack.c.l.b16 %v2632
        %v2824 = vunpack.c.h.b16 %v2632
        %v2825 = vunpack.c.l.b16 %v2633
        %v2826 = vunpack.c.h.b16 %v2633
        %v2827 = vunpack.c.l.b16 %v2634
        %v2828 = vunpack.c.h.b16 %v2634
        %v2829 = vunpack.c.l.b16 %v2635
        %v2830 = vunpack.c.h.b16 %v2635
        %v2831 = vunpack.c.l.b16 %v2636
        %v2832 = vunpack.c.h.b16 %v2636
        %v2833 = vunpack.c.l.b16 %v2637
        %v2834 = vunpack.c.h.b16 %v2637
        %v2835 = vunpack.c.l.b16 %v2638
        %v2836 = vunpack.c.h.b16 %v2638
        %v2837 = vunpack.c.l.b16 %v2639
        %v2838 = vunpack.c.h.b16 %v2639
        %v2839 = vunpack.c.l.b16 %v2640
        %v2840 = vunpack.c.h.b16 %v2640
        %v2841 = vunpack.c.l.b16 %v2641
        %v2842 = vunpack.c.h.b16 %v2641
        %v2843 = vunpack.c.l.b16 %v2642
        %v2844 = vunpack.c.h.b16 %v2642
        %v2845 = vunpack.c.l.b16 %v2643
        %v2846 = vunpack.c.h.b16 %v2643
        %v2847 = vunpack.c.l.b16 %v2644
        %v2848 = vunpack.c.h.b16 %v2644
        %v2849 = vunpack.c.l.b16 %v2645
        %v2850 = vunpack.c.h.b16 %v2645
        %v2851 = vunpack.c.l.b16 %v2646
        %v2852 = vunpack.c.h.b16 %v2646
        %v2853 = vunpack.c.l.b16 %v2647
        %v2854 = vunpack.c.h.b16 %v2647
        %v2855 = vunpack.c.l.b16 %v2648
        %v2856 = vunpack.c.h.b16 %v2648
        %v2857 = vunpack.c.l.b16 %v2649
        %v2858 = vunpack.c.h.b16 %v2649
        %v2859 = vunpack.c.l.b16 %v2650
        %v2860 = vunpack.c.h.b16 %v2650
        %v2861 = vunpack.c.l.b16 %v2651
        %v2862 = vunpack.c.h.b16 %v2651
        %v2863 = vunpack.c.l.b16 %v2652
        %v2864 = vunpack.c.h.b16 %v2652
        %v2865 = vunpack.c.l.b16 %v2653
        %v2866 = vunpack.c.h.b16 %v2653
        %v2867 = vunpack.c.l.b16 %v2654
        %v2868 = vunpack.c.h.b16 %v2654
        %v2869 = vunpack.c.l.b16 %v2655
        %v2870 = vunpack.c.h.b16 %v2655
        %v2871 = vunpack.c.l.b16 %v2656
        %v2872 = vunpack.c.h.b16 %v2656
        %v2873 = vunpack.c.l.b16 %v2657
        %v2874 = vunpack.c.h.b16 %v2657
        %v2875 = vunpack.c.l.b16 %v2658
        %v2876 = vunpack.c.h.b16 %v2658
        %v2877 = vunpack.c.l.b16 %v2659
        %v2878 = vunpack.c.h.b16 %v2659
        %v2879 = vunpack.c.l.b16 %v2660
        %v2880 = vunpack.c.h.b16 %v2660
        %v2881 = vunpack.c.l.b16 %v2661
        %v2882 = vunpack.c.h.b16 %v2661
        %v2883 = vunpack.c.l.b16 %v2662
        %v2884 = vunpack.c.h.b16 %v2662
        %v2885 = vunpack.c.l.b16 %v2663
        %v2886 = vunpack.c.h.b16 %v2663
        %v2887 = vunpack.c.l.b16 %v2664
        %v2888 = vunpack.c.h.b16 %v2664
        %v2889 = vunpack.c.l.b16 %v2665
        %v2890 = vunpack.c.h.b16 %v2665
        %v2891 = vunpack.c.l.b16 %v2666
        %v2892 = vunpack.c.h.b16 %v2666
        %v2893 = vunpack.c.l.b16 %v2667
        %v2894 = vunpack.c.h.b16 %v2667
        %v2895 = vunpack.c.l.b16 %v2668
        %v2896 = vunpack.c.h.b16 %v2668
        %v2897 = vunpack.c.l.b16 %v2669
        %v2898 = vunpack.c.h.b16 %v2669
        %v2899 = vunpack.c.l.b16 %v2670
        %v2900 = vunpack.c.h.b16 %v2670
        %v2901 = vpack.c.b16 %v2763, %v2757
        %v2902 = vpack.c.b16 %v2764, %v2758
        %v2903 = vpack.c.b16 %v2765, %v2759
        %v2904 = vpack.c.b16 %v2766, %v2760
        %v2905 = vpack.c.b16 %v2767, %v2761
        %v2906 = vpack.c.b16 %v2768, %v2762
        %v2907 = vpack.c.b16 %v2775, %v2769
        %v2908 = vpack.c.b16 %v2776, %v2770
        %v2909 = vpack.c.b16 %v2777, %v2771
        %v2910 = vpack.c.b16 %v2778, %v2772
        %v2911 = vpack.c.b16 %v2779, %v2773
        %v2912 = vpack.c.b16 %v2780, %v2774
        %v2913 = vpack.c.b16 %v2787, %v2781
        %v2914 = vpack.c.b16 %v2788, %v2782
        %v2915 = vpack.c.b16 %v2789, %v2783
        %v2916 = vpack.c.b16 %v2790, %v2784
        %v2917 = vpack.c.b16 %v2791, %v2785
        %v2918 = vpack.c.b16 %v2792, %v2786
        %v2919 = vpack.c.b16 %v2799, %v2793
        %v2920 = vpack.c.b16 %v2800, %v2794
        %v2921 = vpack.c.b16 %v2801, %v2795
        %v2922 = vpack.c.b16 %v2802, %v2796
        %v2923 = vpack.c.b16 %v2803, %v2797
        %v2924 = vpack.c.b16 %v2804, %v2798
        %v2925 = vpack.c.b16 %v2811, %v2805
        %v2926 = vpack.c.b16 %v2812, %v2806
        %v2927 = vpack.c.b16 %v2813, %v2807
        %v2928 = vpack.c.b16 %v2814, %v2808
        %v2929 = vpack.c.b16 %v2815, %v2809
        %v2930 = vpack.c.b16 %v2816, %v2810
        %v2931 = vpack.c.b16 %v2823, %v2817
        %v2932 = vpack.c.b16 %v2824, %v2818
        %v2933 = vpack.c.b16 %v2825, %v2819
        %v2934 = vpack.c.b16 %v2826, %v2820
        %v2935 = vpack.c.b16 %v2827, %v2821
        %v2936 = vpack.c.b16 %v2828, %v2822
        %v2937 = vpack.c.b16 %v2835, %v2829
        %v2938 = vpack.c.b16 %v2836, %v2830
        %v2939 = vpack.c.b16 %v2837, %v2831
        %v2940 = vpack.c.b16 %v2838, %v2832
        %v2941 = vpack.c.b16 %v2839, %v2833
        %v2942 = vpack.c.b16 %v2840, %v2834
        %v2943 = vpack.c.b16 %v2847, %v2841
        %v2944 = vpack.c.b16 %v2848, %v2842
        %v2945 = vpack.c.b16 %v2849, %v2843
        %v2946 = vpack.c.b16 %v2850, %v2844
        %v2947 = vpack.c.b16 %v2851, %v2845
        %v2948 = vpack.c.b16 %v2852, %v2846
        %v2949 = vpack.c.b16 %v2859, %v2853
        %v2950 = vpack.c.b16 %v2860, %v2854
        %v2951 = vpack.c.b16 %v2861, %v2855
        %v2952 = vpack.c.b16 %v2862, %v2856
        %v2953 = vpack.c.b16 %v2863, %v2857
        %v2954 = vpack.c.b16 %v2864, %v2858
        %v2955 = vpack.c.b16 %v2871, %v2865
        %v2956 = vpack.c.b16 %v2872, %v2866
        %v2957 = vpack.c.b16 %v2873, %v2867
        %v2958 = vpack.c.b16 %v2874, %v2868
        %v2959 = vpack.c.b16 %v2875, %v2869
        %v2960 = vpack.c.b16 %v2876, %v2870
        %v2961 = vpack.c.b16 %v2883, %v2877
        %v2962 = vpack.c.b16 %v2884, %v2878
        %v2963 = vpack.c.b16 %v2885, %v2879
        %v2964 = vpack.c.b16 %v2886, %v2880
        %v2965 = vpack.c.b16 %v2887, %v2881
        %v2966 = vpack.c.b16 %v2888, %v2882
        %v2967 = vpack.c.b16 %v2895, %v2889
        %v2968 = vpack.c.b16 %v2896, %v2890
        %v2969 = vpack.c.b16 %v2897, %v2891
        %v2970 = vpack.c.b16 %v2898, %v2892
        %v2971 = vpack.c.b16 %v2899, %v2893
        %v2972 = vpack.c.b16 %v2900, %v2894
        %v3046 = vsel %vm1082, %v2598, 0
        %3048 = vmatpush.bf16.msra.mxu0 %v2943
        %3049 = vmatpush.bf16.msra.mxu0 %v2937
        %3050 = vmatpush.bf16.msra.mxu0 %v2931
        %3051 = vmatpush.bf16.msra.mxu0 %v2925
        %3052 = vmatpush.bf16.msra.mxu0 %v2919
        %3053 = vmatpush.bf16.msra.mxu0 %v2913
        %3054 = vmatpush.bf16.msra.mxu0 %v2907
        %3055 = vmatpush.bf16.msra.mxu0 %v2901
        %3056 = vmatmul.bf16.gmra.mxu0 %v2597
        %v3057 = vpop.f32.mrf.mxu0
        %v3058 = vadd.f32 %v2673, %v3057
        %v3059 = vpop.f32.mrf.mxu0
        %v3060 = vadd.f32 %v2673, %v3059
        %3061 = vdwg.mxu0
        %3062 = vmatpush.bf16.msra.mxu0 0
        %3063 = vmatpush.bf16.msra.mxu0 0
        %3064 = vmatpush.bf16.msra.mxu0 0
        %3065 = vmatpush.bf16.msra.mxu0 0
        %3066 = vmatpush.bf16.msra.mxu0 %v2967
        %3067 = vmatpush.bf16.msra.mxu0 %v2961
        %3068 = vmatpush.bf16.msra.mxu0 %v2955
        %3069 = vmatpush.bf16.msra.mxu0 %v2949
        %3070 = vmatmul.bf16.gmra.mxu0 %v3046
        %v3071 = vpop.f32.mrf.mxu0
        %v3072 = vadd.f32 %v3058, %v3071
        %v3073 = vpop.f32.mrf.mxu0
        %v3074 = vadd.f32 %v3060, %v3073
        %3075 = vdwg.mxu0
        %3076 = vmatpush.bf16.msra.mxu0 %v2944
        %3077 = vmatpush.bf16.msra.mxu0 %v2938
        %3078 = vmatpush.bf16.msra.mxu0 %v2932
        %3079 = vmatpush.bf16.msra.mxu0 %v2926
        %3080 = vmatpush.bf16.msra.mxu0 %v2920
        %3081 = vmatpush.bf16.msra.mxu0 %v2914
        %3082 = vmatpush.bf16.msra.mxu0 %v2908
        %3083 = vmatpush.bf16.msra.mxu0 %v2902
        %3084 = vmatmul.bf16.gmra.mxu0 %v2597
        %v3085 = vpop.f32.mrf.mxu0
        %v3086 = vadd.f32 %v2674, %v3085
        %v3087 = vpop.f32.mrf.mxu0
        %v3088 = vadd.f32 %v2674, %v3087
        %3089 = vdwg.mxu0
        %3090 = vmatpush.bf16.msra.mxu0 0
        %3091 = vmatpush.bf16.msra.mxu0 0
        %3092 = vmatpush.bf16.msra.mxu0 0
        %3093 = vmatpush.bf16.msra.mxu0 0
        %3094 = vmatpush.bf16.msra.mxu0 %v2968
        %3095 = vmatpush.bf16.msra.mxu0 %v2962
        %3096 = vmatpush.bf16.msra.mxu0 %v2956
        %3097 = vmatpush.bf16.msra.mxu0 %v2950
        %3098 = vmatmul.bf16.gmra.mxu0 %v3046
        %v3099 = vpop.f32.mrf.mxu0
        %v3100 = vadd.f32 %v3086, %v3099
        %v3101 = vpop.f32.mrf.mxu0
        %v3102 = vadd.f32 %v3088, %v3101
        %3103 = vdwg.mxu0
        %3104 = vmatpush.bf16.msra.mxu0 %v2945
        %3105 = vmatpush.bf16.msra.mxu0 %v2939
        %3106 = vmatpush.bf16.msra.mxu0 %v2933
        %3107 = vmatpush.bf16.msra.mxu0 %v2927
        %3108 = vmatpush.bf16.msra.mxu0 %v2921
        %3109 = vmatpush.bf16.msra.mxu0 %v2915
        %3110 = vmatpush.bf16.msra.mxu0 %v2909
        %3111 = vmatpush.bf16.msra.mxu0 %v2903
        %3112 = vmatmul.bf16.gmra.mxu0 %v2597
        %v3113 = vpop.f32.mrf.mxu0
        %v3114 = vadd.f32 %v2675, %v3113
        %v3115 = vpop.f32.mrf.mxu0
        %v3116 = vadd.f32 %v2675, %v3115
        %3117 = vdwg.mxu0
        %3118 = vmatpush.bf16.msra.mxu0 0
        %3119 = vmatpush.bf16.msra.mxu0 0
        %3120 = vmatpush.bf16.msra.mxu0 0
        %3121 = vmatpush.bf16.msra.mxu0 0
        %3122 = vmatpush.bf16.msra.mxu0 %v2969
        %3123 = vmatpush.bf16.msra.mxu0 %v2963
        %3124 = vmatpush.bf16.msra.mxu0 %v2957
        %3125 = vmatpush.bf16.msra.mxu0 %v2951
        %3126 = vmatmul.bf16.gmra.mxu0 %v3046
        %v3127 = vpop.f32.mrf.mxu0
        %v3128 = vadd.f32 %v3114, %v3127
        %v3129 = vpop.f32.mrf.mxu0
        %v3130 = vadd.f32 %v3116, %v3129
        %3131 = vdwg.mxu0
        %3132 = vmatpush.bf16.msra.mxu0 %v2946
        %3133 = vmatpush.bf16.msra.mxu0 %v2940
        %3134 = vmatpush.bf16.msra.mxu0 %v2934
        %3135 = vmatpush.bf16.msra.mxu0 %v2928
        %3136 = vmatpush.bf16.msra.mxu0 %v2922
        %3137 = vmatpush.bf16.msra.mxu0 %v2916
        %3138 = vmatpush.bf16.msra.mxu0 %v2910
        %3139 = vmatpush.bf16.msra.mxu0 %v2904
        %3140 = vmatmul.bf16.gmra.mxu0 %v2597
        %v3141 = vpop.f32.mrf.mxu0
        %v3142 = vadd.f32 %v2676, %v3141
        %v3143 = vpop.f32.mrf.mxu0
        %v3144 = vadd.f32 %v2676, %v3143
        %3145 = vdwg.mxu0
        %3146 = vmatpush.bf16.msra.mxu0 0
        %3147 = vmatpush.bf16.msra.mxu0 0
        %3148 = vmatpush.bf16.msra.mxu0 0
        %3149 = vmatpush.bf16.msra.mxu0 0
        %3150 = vmatpush.bf16.msra.mxu0 %v2970
        %3151 = vmatpush.bf16.msra.mxu0 %v2964
        %3152 = vmatpush.bf16.msra.mxu0 %v2958
        %3153 = vmatpush.bf16.msra.mxu0 %v2952
        %3154 = vmatmul.bf16.gmra.mxu0 %v3046
        %v3155 = vpop.f32.mrf.mxu0
        %v3156 = vadd.f32 %v3142, %v3155
        %v3157 = vpop.f32.mrf.mxu0
        %v3158 = vadd.f32 %v3144, %v3157
        %3159 = vdwg.mxu0
        %3160 = vmatpush.bf16.msra.mxu0 %v2947
        %3161 = vmatpush.bf16.msra.mxu0 %v2941
        %3162 = vmatpush.bf16.msra.mxu0 %v2935
        %3163 = vmatpush.bf16.msra.mxu0 %v2929
        %3164 = vmatpush.bf16.msra.mxu0 %v2923
        %3165 = vmatpush.bf16.msra.mxu0 %v2917
        %3166 = vmatpush.bf16.msra.mxu0 %v2911
        %3167 = vmatpush.bf16.msra.mxu0 %v2905
        %3168 = vmatmul.bf16.gmra.mxu0 %v2597
        %v3169 = vpop.f32.mrf.mxu0
        %v3170 = vadd.f32 %v2677, %v3169
        %v3171 = vpop.f32.mrf.mxu0
        %v3172 = vadd.f32 %v2677, %v3171
        %3173 = vdwg.mxu0
        %3174 = vmatpush.bf16.msra.mxu0 0
        %3175 = vmatpush.bf16.msra.mxu0 0
        %3176 = vmatpush.bf16.msra.mxu0 0
        %3177 = vmatpush.bf16.msra.mxu0 0
        %3178 = vmatpush.bf16.msra.mxu0 %v2971
        %3179 = vmatpush.bf16.msra.mxu0 %v2965
        %3180 = vmatpush.bf16.msra.mxu0 %v2959
        %3181 = vmatpush.bf16.msra.mxu0 %v2953
        %3182 = vmatmul.bf16.gmra.mxu0 %v3046
        %v3183 = vpop.f32.mrf.mxu0
        %v3184 = vadd.f32 %v3170, %v3183
        %v3185 = vpop.f32.mrf.mxu0
        %v3186 = vadd.f32 %v3172, %v3185
        %3187 = vdwg.mxu0
        %3188 = vmatpush.bf16.msra.mxu0 %v2948
        %3189 = vmatpush.bf16.msra.mxu0 %v2942
        %3190 = vmatpush.bf16.msra.mxu0 %v2936
        %3191 = vmatpush.bf16.msra.mxu0 %v2930
        %3192 = vmatpush.bf16.msra.mxu0 %v2924
        %3193 = vmatpush.bf16.msra.mxu0 %v2918
        %3194 = vmatpush.bf16.msra.mxu0 %v2912
        %3195 = vmatpush.bf16.msra.mxu0 %v2906
        %3196 = vmatmul.bf16.gmra.mxu0 %v2597
        %v3197 = vpop.f32.mrf.mxu0
        %v3198 = vadd.f32 %v2678, %v3197
        %v3199 = vpop.f32.mrf.mxu0
        %v3200 = vadd.f32 %v2678, %v3199
        %3201 = vdwg.mxu0
        %3202 = vmatpush.bf16.msra.mxu0 0
        %3203 = vmatpush.bf16.msra.mxu0 0
        %3204 = vmatpush.bf16.msra.mxu0 0
        %3205 = vmatpush.bf16.msra.mxu0 0
        %3206 = vmatpush.bf16.msra.mxu0 %v2972
        %3207 = vmatpush.bf16.msra.mxu0 %v2966
        %3208 = vmatpush.bf16.msra.mxu0 %v2960
        %3209 = vmatpush.bf16.msra.mxu0 %v2954
        %3210 = vmatmul.bf16.gmra.mxu0 %v3046
        %v3211 = vpop.f32.mrf.mxu0
        %v3212 = vadd.f32 %v3198, %v3211
        %v3213 = vpop.f32.mrf.mxu0
        %v3214 = vadd.f32 %v3200, %v3213
        %3215 = vdwg.mxu0
        %v3216 = vmax.f32 %v3072, 0.0
        %v3217 = vmax.f32 %v3100, 0.0
        %v3218 = vmax.f32 %v3128, 0.0
        %v3219 = vmax.f32 %v3156, 0.0
        %v3220 = vmax.f32 %v3184, 0.0
        %v3221 = vmax.f32 %v3212, 0.0
        %v3222 = vmax.f32 %v3074, 0.0
        %v3223 = vmax.f32 %v3102, 0.0
        %v3224 = vmax.f32 %v3130, 0.0
        %v3225 = vmax.f32 %v3158, 0.0
        %v3226 = vmax.f32 %v3186, 0.0
        %v3227 = vmax.f32 %v3214, 0.0
        %v3228 = vpack.c.bf16 %v3222, %v3216
        %v3229 = vpack.c.bf16 %v3223, %v3217
        %v3230 = vpack.c.bf16 %v3224, %v3218
        %v3231 = vpack.c.bf16 %v3225, %v3219
        %v3232 = vpack.c.bf16 %v3226, %v3220
        %v3233 = vpack.c.bf16 %v3227, %v3221
        %v3234 = vld [vmem:[%s652] sm:$0xff]
        %v3235 = vld [vmem:[%s652 + $0x8] sm:$0xff]
        %v3236 = vld [vmem:[%s652 + $0x10] sm:$0xff]
        %v3237 = vld [vmem:[%s652 + $0x18] sm:$0xff]
        %v3238 = vld [vmem:[%s652 + $0x20] sm:$0xff]
        %v3239 = vld [vmem:[%s652 + $0x28] sm:$0xff]
        %v3240 = vld [vmem:[%s652 + $0x30] sm:$0xff]
        %v3241 = vld [vmem:[%s652 + $0x38] sm:$0xff]
        %v3242 = vld [vmem:[%s652 + $0x40] sm:$0xff]
        %v3243 = vld [vmem:[%s652 + $0x48] sm:$0xff]
        %v3244 = vld [vmem:[%s652 + $0x50] sm:$0xff]
        %v3245 = vld [vmem:[%s652 + $0x58] sm:$0xff]
        %v3246 = vld [vmem:[%s652 + $0x60] sm:$0xff]
        %v3247 = vld [vmem:[%s652 + $0x68] sm:$0xff]
        %v3248 = vld [vmem:[%s652 + $0x70] sm:$0xff]
        %v3249 = vld [vmem:[%s652 + $0x78] sm:$0xff]
        %v3250 = vld [vmem:[%s652 + $0x80] sm:$0xff]
        %v3251 = vld [vmem:[%s652 + $0x88] sm:$0xff]
        %v3252 = vld [vmem:[%s652 + $0x90] sm:$0xff]
        %v3253 = vld [vmem:[%s652 + $0x98] sm:$0xff]
        %v3254 = vld [vmem:[%s652 + $0xa0] sm:$0xff]
        %v3255 = vld [vmem:[%s652 + $0xa8] sm:$0xff]
        %v3256 = vld [vmem:[%s652 + $0xb0] sm:$0xff]
        %v3257 = vld [vmem:[%s652 + $0xb8] sm:$0xff]
        %v3258 = vld [vmem:[%s652 + $0xc0] sm:$0xff]
        %v3259 = vld [vmem:[%s652 + $0xc8] sm:$0xff]
        %v3260 = vld [vmem:[%s652 + $0xd0] sm:$0xff]
        %v3261 = vld [vmem:[%s652 + $0xd8] sm:$0xff]
        %v3262 = vld [vmem:[%s652 + $0xe0] sm:$0xff]
        %v3263 = vld [vmem:[%s652 + $0xe8] sm:$0xff]
        %v3264 = vld [vmem:[%s652 + $0xf0] sm:$0xff]
        %v3265 = vld [vmem:[%s652 + $0xf8] sm:$0xff]
        %v3266 = vld [vmem:[%s652 + $0x100] sm:$0xff]
        %v3267 = vld [vmem:[%s652 + $0x108] sm:$0xff]
        %v3268 = vld [vmem:[%s652 + $0x110] sm:$0xff]
        %v3269 = vld [vmem:[%s652 + $0x118] sm:$0xff]
        %v3270 = vld [vmem:[%s652 + $0x120] sm:$0xff]
        %v3271 = vld [vmem:[%s652 + $0x128] sm:$0xff]
        %v3272 = vld [vmem:[%s652 + $0x130] sm:$0xff]
        %v3273 = vld [vmem:[%s652 + $0x138] sm:$0xff]
        %v3274 = vld [vmem:[%s652 + $0x140] sm:$0xff]
        %v3275 = vld [vmem:[%s652 + $0x148] sm:$0xff]
        %v3276 = vld [vmem:[%s652 + $0x150] sm:$0xff]
        %v3277 = vld [vmem:[%s652 + $0x158] sm:$0xff]
        %v3278 = vld [vmem:[%s652 + $0x160] sm:$0xff]
        %v3279 = vld [vmem:[%s652 + $0x168] sm:$0xff]
        %v3280 = vld [vmem:[%s652 + $0x170] sm:$0xff]
        %v3281 = vld [vmem:[%s652 + $0x178] sm:$0xff]
        %v3282 = vld [vmem:[%s652 + $0x180] sm:$0xff]
        %v3283 = vld [vmem:[%s652 + $0x188] sm:$0xff]
        %v3284 = vld [vmem:[%s652 + $0x190] sm:$0xff]
        %v3285 = vld [vmem:[%s652 + $0x198] sm:$0xff]
        %v3286 = vld [vmem:[%s652 + $0x1a0] sm:$0xff]
        %v3287 = vld [vmem:[%s652 + $0x1a8] sm:$0xff]
        %v3288 = vld [vmem:[%s652 + $0x1b0] sm:$0xff]
        %v3289 = vld [vmem:[%s652 + $0x1b8] sm:$0xff]
        %v3290 = vld [vmem:[%s652 + $0x1c0] sm:$0xff]
        %v3291 = vld [vmem:[%s652 + $0x1c8] sm:$0xff]
        %v3292 = vld [vmem:[%s652 + $0x1d0] sm:$0xff]
        %v3293 = vld [vmem:[%s652 + $0x1d8] sm:$0xff]
        %v3294 = vld [vmem:[%s652 + $0x1e0] sm:$0xff]
        %v3295 = vld [vmem:[%s652 + $0x1e8] sm:$0xff]
        %v3296 = vld [vmem:[%s652 + $0x1f0] sm:$0xff]
        %v3297 = vld [vmem:[%s652 + $0x1f8] sm:$0xff]
        %v3298 = vld [vmem:[%s652 + $0x200] sm:$0xff]
        %v3299 = vld [vmem:[%s652 + $0x208] sm:$0xff]
        %v3300 = vld [vmem:[%s652 + $0x210] sm:$0xff]
        %v3301 = vld [vmem:[%s652 + $0x218] sm:$0xff]
        %v3302 = vld [vmem:[%s652 + $0x220] sm:$0xff]
        %v3303 = vld [vmem:[%s652 + $0x228] sm:$0xff]
        %v3304 = vld [vmem:[%s652 + $0x230] sm:$0xff]
        %v3305 = vld [vmem:[%s652 + $0x238] sm:$0xff]
        %v3306 = vld [vmem:[%s652 + $0x240] sm:$0xff]
        %v3307 = vld [vmem:[%s652 + $0x248] sm:$0xff]
        %v3308 = vld [vmem:[%s652 + $0x250] sm:$0xff]
        %v3309 = vld [vmem:[%s652 + $0x258] sm:$0xff]
        %v3310 = vld [vmem:[%s652 + $0x260] sm:$0xff]
        %v3311 = vld [vmem:[%s652 + $0x268] sm:$0xff]
        %v3312 = vld [vmem:[%s652 + $0x270] sm:$0xff]
        %v3313 = vld [vmem:[%s652 + $0x278] sm:$0xff]
        %v3314 = vld [vmem:[%s652 + $0x280] sm:$0xff]
        %v3315 = vld [vmem:[%s652 + $0x288] sm:$0xff]
        %v3316 = vld [vmem:[%s652 + $0x290] sm:$0xff]
        %v3317 = vld [vmem:[%s652 + $0x298] sm:$0xff]
        %v3318 = vld [vmem:[%s652 + $0x2a0] sm:$0xff]
        %v3319 = vld [vmem:[%s652 + $0x2a8] sm:$0xff]
        %v3320 = vld [vmem:[%s652 + $0x2b0] sm:$0xff]
        %v3321 = vld [vmem:[%s652 + $0x2b8] sm:$0xff]
        %v3322 = vld [vmem:[%s652 + $0x2c0] sm:$0xff]
        %v3323 = vld [vmem:[%s652 + $0x2c8] sm:$0xff]
        %v3324 = vld [vmem:[%s652 + $0x2d0] sm:$0xff]
        %v3325 = vld [vmem:[%s652 + $0x2d8] sm:$0xff]
        %v3326 = vld [vmem:[%s652 + $0x2e0] sm:$0xff]
        %v3327 = vld [vmem:[%s652 + $0x2e8] sm:$0xff]
        %v3328 = vld [vmem:[%s652 + $0x2f0] sm:$0xff]
        %v3329 = vld [vmem:[%s652 + $0x2f8] sm:$0xff]
        %v3330 = vld [vmem:[%s656] sm:$0x3]
        %v3332 = vperm.slane %v3330, 0
        %v3333 = vperm.slane %v3330, 1
        %v3432 = vunpack.c.l.b16 %v3234
        %v3433 = vunpack.c.h.b16 %v3234
        %v3434 = vunpack.c.l.b16 %v3235
        %v3435 = vunpack.c.h.b16 %v3235
        %v3436 = vunpack.c.l.b16 %v3236
        %v3437 = vunpack.c.h.b16 %v3236
        %v3438 = vunpack.c.l.b16 %v3237
        %v3439 = vunpack.c.h.b16 %v3237
        %v3440 = vunpack.c.l.b16 %v3238
        %v3441 = vunpack.c.h.b16 %v3238
        %v3442 = vunpack.c.l.b16 %v3239
        %v3443 = vunpack.c.h.b16 %v3239
        %v3444 = vunpack.c.l.b16 %v3240
        %v3445 = vunpack.c.h.b16 %v3240
        %v3446 = vunpack.c.l.b16 %v3241
        %v3447 = vunpack.c.h.b16 %v3241
        %v3448 = vunpack.c.l.b16 %v3242
        %v3449 = vunpack.c.h.b16 %v3242
        %v3450 = vunpack.c.l.b16 %v3243
        %v3451 = vunpack.c.h.b16 %v3243
        %v3452 = vunpack.c.l.b16 %v3244
        %v3453 = vunpack.c.h.b16 %v3244
        %v3454 = vunpack.c.l.b16 %v3245
        %v3455 = vunpack.c.h.b16 %v3245
        %v3456 = vunpack.c.l.b16 %v3246
        %v3457 = vunpack.c.h.b16 %v3246
        %v3458 = vunpack.c.l.b16 %v3247
        %v3459 = vunpack.c.h.b16 %v3247
        %v3460 = vunpack.c.l.b16 %v3248
        %v3461 = vunpack.c.h.b16 %v3248
        %v3462 = vunpack.c.l.b16 %v3249
        %v3463 = vunpack.c.h.b16 %v3249
        %v3464 = vunpack.c.l.b16 %v3250
        %v3465 = vunpack.c.h.b16 %v3250
        %v3466 = vunpack.c.l.b16 %v3251
        %v3467 = vunpack.c.h.b16 %v3251
        %v3468 = vunpack.c.l.b16 %v3252
        %v3469 = vunpack.c.h.b16 %v3252
        %v3470 = vunpack.c.l.b16 %v3253
        %v3471 = vunpack.c.h.b16 %v3253
        %v3472 = vunpack.c.l.b16 %v3254
        %v3473 = vunpack.c.h.b16 %v3254
        %v3474 = vunpack.c.l.b16 %v3255
        %v3475 = vunpack.c.h.b16 %v3255
        %v3476 = vunpack.c.l.b16 %v3256
        %v3477 = vunpack.c.h.b16 %v3256
        %v3478 = vunpack.c.l.b16 %v3257
        %v3479 = vunpack.c.h.b16 %v3257
        %v3480 = vunpack.c.l.b16 %v3258
        %v3481 = vunpack.c.h.b16 %v3258
        %v3482 = vunpack.c.l.b16 %v3259
        %v3483 = vunpack.c.h.b16 %v3259
        %v3484 = vunpack.c.l.b16 %v3260
        %v3485 = vunpack.c.h.b16 %v3260
        %v3486 = vunpack.c.l.b16 %v3261
        %v3487 = vunpack.c.h.b16 %v3261
        %v3488 = vunpack.c.l.b16 %v3262
        %v3489 = vunpack.c.h.b16 %v3262
        %v3490 = vunpack.c.l.b16 %v3263
        %v3491 = vunpack.c.h.b16 %v3263
        %v3492 = vunpack.c.l.b16 %v3264
        %v3493 = vunpack.c.h.b16 %v3264
        %v3494 = vunpack.c.l.b16 %v3265
        %v3495 = vunpack.c.h.b16 %v3265
        %v3496 = vunpack.c.l.b16 %v3266
        %v3497 = vunpack.c.h.b16 %v3266
        %v3498 = vunpack.c.l.b16 %v3267
        %v3499 = vunpack.c.h.b16 %v3267
        %v3500 = vunpack.c.l.b16 %v3268
        %v3501 = vunpack.c.h.b16 %v3268
        %v3502 = vunpack.c.l.b16 %v3269
        %v3503 = vunpack.c.h.b16 %v3269
        %v3504 = vunpack.c.l.b16 %v3270
        %v3505 = vunpack.c.h.b16 %v3270
        %v3506 = vunpack.c.l.b16 %v3271
        %v3507 = vunpack.c.h.b16 %v3271
        %v3508 = vunpack.c.l.b16 %v3272
        %v3509 = vunpack.c.h.b16 %v3272
        %v3510 = vunpack.c.l.b16 %v3273
        %v3511 = vunpack.c.h.b16 %v3273
        %v3512 = vunpack.c.l.b16 %v3274
        %v3513 = vunpack.c.h.b16 %v3274
        %v3514 = vunpack.c.l.b16 %v3275
        %v3515 = vunpack.c.h.b16 %v3275
        %v3516 = vunpack.c.l.b16 %v3276
        %v3517 = vunpack.c.h.b16 %v3276
        %v3518 = vunpack.c.l.b16 %v3277
        %v3519 = vunpack.c.h.b16 %v3277
        %v3520 = vunpack.c.l.b16 %v3278
        %v3521 = vunpack.c.h.b16 %v3278
        %v3522 = vunpack.c.l.b16 %v3279
        %v3523 = vunpack.c.h.b16 %v3279
        %v3524 = vunpack.c.l.b16 %v3280
        %v3525 = vunpack.c.h.b16 %v3280
        %v3526 = vunpack.c.l.b16 %v3281
        %v3527 = vunpack.c.h.b16 %v3281
        %v3528 = vunpack.c.l.b16 %v3282
        %v3529 = vunpack.c.h.b16 %v3282
        %v3530 = vunpack.c.l.b16 %v3283
        %v3531 = vunpack.c.h.b16 %v3283
        %v3532 = vunpack.c.l.b16 %v3284
        %v3533 = vunpack.c.h.b16 %v3284
        %v3534 = vunpack.c.l.b16 %v3285
        %v3535 = vunpack.c.h.b16 %v3285
        %v3536 = vunpack.c.l.b16 %v3286
        %v3537 = vunpack.c.h.b16 %v3286
        %v3538 = vunpack.c.l.b16 %v3287
        %v3539 = vunpack.c.h.b16 %v3287
        %v3540 = vunpack.c.l.b16 %v3288
        %v3541 = vunpack.c.h.b16 %v3288
        %v3542 = vunpack.c.l.b16 %v3289
        %v3543 = vunpack.c.h.b16 %v3289
        %v3544 = vunpack.c.l.b16 %v3290
        %v3545 = vunpack.c.h.b16 %v3290
        %v3546 = vunpack.c.l.b16 %v3291
        %v3547 = vunpack.c.h.b16 %v3291
        %v3548 = vunpack.c.l.b16 %v3292
        %v3549 = vunpack.c.h.b16 %v3292
        %v3550 = vunpack.c.l.b16 %v3293
        %v3551 = vunpack.c.h.b16 %v3293
        %v3552 = vunpack.c.l.b16 %v3294
        %v3553 = vunpack.c.h.b16 %v3294
        %v3554 = vunpack.c.l.b16 %v3295
        %v3555 = vunpack.c.h.b16 %v3295
        %v3556 = vunpack.c.l.b16 %v3296
        %v3557 = vunpack.c.h.b16 %v3296
        %v3558 = vunpack.c.l.b16 %v3297
        %v3559 = vunpack.c.h.b16 %v3297
        %v3560 = vunpack.c.l.b16 %v3298
        %v3561 = vunpack.c.h.b16 %v3298
        %v3562 = vunpack.c.l.b16 %v3299
        %v3563 = vunpack.c.h.b16 %v3299
        %v3564 = vunpack.c.l.b16 %v3300
        %v3565 = vunpack.c.h.b16 %v3300
        %v3566 = vunpack.c.l.b16 %v3301
        %v3567 = vunpack.c.h.b16 %v3301
        %v3568 = vunpack.c.l.b16 %v3302
        %v3569 = vunpack.c.h.b16 %v3302
        %v3570 = vunpack.c.l.b16 %v3303
        %v3571 = vunpack.c.h.b16 %v3303
        %v3572 = vunpack.c.l.b16 %v3304
        %v3573 = vunpack.c.h.b16 %v3304
        %v3574 = vunpack.c.l.b16 %v3305
        %v3575 = vunpack.c.h.b16 %v3305
        %v3576 = vunpack.c.l.b16 %v3306
        %v3577 = vunpack.c.h.b16 %v3306
        %v3578 = vunpack.c.l.b16 %v3307
        %v3579 = vunpack.c.h.b16 %v3307
        %v3580 = vunpack.c.l.b16 %v3308
        %v3581 = vunpack.c.h.b16 %v3308
        %v3582 = vunpack.c.l.b16 %v3309
        %v3583 = vunpack.c.h.b16 %v3309
        %v3584 = vunpack.c.l.b16 %v3310
        %v3585 = vunpack.c.h.b16 %v3310
        %v3586 = vunpack.c.l.b16 %v3311
        %v3587 = vunpack.c.h.b16 %v3311
        %v3588 = vunpack.c.l.b16 %v3312
        %v3589 = vunpack.c.h.b16 %v3312
        %v3590 = vunpack.c.l.b16 %v3313
        %v3591 = vunpack.c.h.b16 %v3313
        %v3592 = vunpack.c.l.b16 %v3314
        %v3593 = vunpack.c.h.b16 %v3314
        %v3594 = vunpack.c.l.b16 %v3315
        %v3595 = vunpack.c.h.b16 %v3315
        %v3596 = vunpack.c.l.b16 %v3316
        %v3597 = vunpack.c.h.b16 %v3316
        %v3598 = vunpack.c.l.b16 %v3317
        %v3599 = vunpack.c.h.b16 %v3317
        %v3600 = vunpack.c.l.b16 %v3318
        %v3601 = vunpack.c.h.b16 %v3318
        %v3602 = vunpack.c.l.b16 %v3319
        %v3603 = vunpack.c.h.b16 %v3319
        %v3604 = vunpack.c.l.b16 %v3320
        %v3605 = vunpack.c.h.b16 %v3320
        %v3606 = vunpack.c.l.b16 %v3321
        %v3607 = vunpack.c.h.b16 %v3321
        %v3608 = vunpack.c.l.b16 %v3322
        %v3609 = vunpack.c.h.b16 %v3322
        %v3610 = vunpack.c.l.b16 %v3323
        %v3611 = vunpack.c.h.b16 %v3323
        %v3612 = vunpack.c.l.b16 %v3324
        %v3613 = vunpack.c.h.b16 %v3324
        %v3614 = vunpack.c.l.b16 %v3325
        %v3615 = vunpack.c.h.b16 %v3325
        %v3616 = vunpack.c.l.b16 %v3326
        %v3617 = vunpack.c.h.b16 %v3326
        %v3618 = vunpack.c.l.b16 %v3327
        %v3619 = vunpack.c.h.b16 %v3327
        %v3620 = vunpack.c.l.b16 %v3328
        %v3621 = vunpack.c.h.b16 %v3328
        %v3622 = vunpack.c.l.b16 %v3329
        %v3623 = vunpack.c.h.b16 %v3329
        %v3624 = vpack.c.b16 %v3434, %v3432
        %v3625 = vpack.c.b16 %v3435, %v3433
        %v3626 = vpack.c.b16 %v3438, %v3436
        %v3627 = vpack.c.b16 %v3439, %v3437
        %v3628 = vpack.c.b16 %v3442, %v3440
        %v3629 = vpack.c.b16 %v3443, %v3441
        %v3630 = vpack.c.b16 %v3446, %v3444
        %v3631 = vpack.c.b16 %v3447, %v3445
        %v3632 = vpack.c.b16 %v3450, %v3448
        %v3633 = vpack.c.b16 %v3451, %v3449
        %v3634 = vpack.c.b16 %v3454, %v3452
        %v3635 = vpack.c.b16 %v3455, %v3453
        %v3636 = vpack.c.b16 %v3458, %v3456
        %v3637 = vpack.c.b16 %v3459, %v3457
        %v3638 = vpack.c.b16 %v3462, %v3460
        %v3639 = vpack.c.b16 %v3463, %v3461
        %v3640 = vpack.c.b16 %v3466, %v3464
        %v3641 = vpack.c.b16 %v3467, %v3465
        %v3642 = vpack.c.b16 %v3470, %v3468
        %v3643 = vpack.c.b16 %v3471, %v3469
        %v3644 = vpack.c.b16 %v3474, %v3472
        %v3645 = vpack.c.b16 %v3475, %v3473
        %v3646 = vpack.c.b16 %v3478, %v3476
        %v3647 = vpack.c.b16 %v3479, %v3477
        %v3648 = vpack.c.b16 %v3482, %v3480
        %v3649 = vpack.c.b16 %v3483, %v3481
        %v3650 = vpack.c.b16 %v3486, %v3484
        %v3651 = vpack.c.b16 %v3487, %v3485
        %v3652 = vpack.c.b16 %v3490, %v3488
        %v3653 = vpack.c.b16 %v3491, %v3489
        %v3654 = vpack.c.b16 %v3494, %v3492
        %v3655 = vpack.c.b16 %v3495, %v3493
        %v3656 = vpack.c.b16 %v3498, %v3496
        %v3657 = vpack.c.b16 %v3499, %v3497
        %v3658 = vpack.c.b16 %v3502, %v3500
        %v3659 = vpack.c.b16 %v3503, %v3501
        %v3660 = vpack.c.b16 %v3506, %v3504
        %v3661 = vpack.c.b16 %v3507, %v3505
        %v3662 = vpack.c.b16 %v3510, %v3508
        %v3663 = vpack.c.b16 %v3511, %v3509
        %v3664 = vpack.c.b16 %v3514, %v3512
        %v3665 = vpack.c.b16 %v3515, %v3513
        %v3666 = vpack.c.b16 %v3518, %v3516
        %v3667 = vpack.c.b16 %v3519, %v3517
        %v3668 = vpack.c.b16 %v3522, %v3520
        %v3669 = vpack.c.b16 %v3523, %v3521
        %v3670 = vpack.c.b16 %v3526, %v3524
        %v3671 = vpack.c.b16 %v3527, %v3525
        %v3672 = vpack.c.b16 %v3530, %v3528
        %v3673 = vpack.c.b16 %v3531, %v3529
        %v3674 = vpack.c.b16 %v3534, %v3532
        %v3675 = vpack.c.b16 %v3535, %v3533
        %v3676 = vpack.c.b16 %v3538, %v3536
        %v3677 = vpack.c.b16 %v3539, %v3537
        %v3678 = vpack.c.b16 %v3542, %v3540
        %v3679 = vpack.c.b16 %v3543, %v3541
        %v3680 = vpack.c.b16 %v3546, %v3544
        %v3681 = vpack.c.b16 %v3547, %v3545
        %v3682 = vpack.c.b16 %v3550, %v3548
        %v3683 = vpack.c.b16 %v3551, %v3549
        %v3684 = vpack.c.b16 %v3554, %v3552
        %v3685 = vpack.c.b16 %v3555, %v3553
        %v3686 = vpack.c.b16 %v3558, %v3556
        %v3687 = vpack.c.b16 %v3559, %v3557
        %v3688 = vpack.c.b16 %v3562, %v3560
        %v3689 = vpack.c.b16 %v3563, %v3561
        %v3690 = vpack.c.b16 %v3566, %v3564
        %v3691 = vpack.c.b16 %v3567, %v3565
        %v3692 = vpack.c.b16 %v3570, %v3568
        %v3693 = vpack.c.b16 %v3571, %v3569
        %v3694 = vpack.c.b16 %v3574, %v3572
        %v3695 = vpack.c.b16 %v3575, %v3573
        %v3696 = vpack.c.b16 %v3578, %v3576
        %v3697 = vpack.c.b16 %v3579, %v3577
        %v3698 = vpack.c.b16 %v3582, %v3580
        %v3699 = vpack.c.b16 %v3583, %v3581
        %v3700 = vpack.c.b16 %v3586, %v3584
        %v3701 = vpack.c.b16 %v3587, %v3585
        %v3702 = vpack.c.b16 %v3590, %v3588
        %v3703 = vpack.c.b16 %v3591, %v3589
        %v3704 = vpack.c.b16 %v3594, %v3592
        %v3705 = vpack.c.b16 %v3595, %v3593
        %v3706 = vpack.c.b16 %v3598, %v3596
        %v3707 = vpack.c.b16 %v3599, %v3597
        %v3708 = vpack.c.b16 %v3602, %v3600
        %v3709 = vpack.c.b16 %v3603, %v3601
        %v3710 = vpack.c.b16 %v3606, %v3604
        %v3711 = vpack.c.b16 %v3607, %v3605
        %v3712 = vpack.c.b16 %v3610, %v3608
        %v3713 = vpack.c.b16 %v3611, %v3609
        %v3714 = vpack.c.b16 %v3614, %v3612
        %v3715 = vpack.c.b16 %v3615, %v3613
        %v3716 = vpack.c.b16 %v3618, %v3616
        %v3717 = vpack.c.b16 %v3619, %v3617
        %v3718 = vpack.c.b16 %v3622, %v3620
        %v3719 = vpack.c.b16 %v3623, %v3621
        %3816 = vmatpush.bf16.msra.mxu0 %v3638
        %3817 = vmatpush.bf16.msra.mxu0 %v3636
        %3818 = vmatpush.bf16.msra.mxu0 %v3634
        %3819 = vmatpush.bf16.msra.mxu0 %v3632
        %3820 = vmatpush.bf16.msra.mxu0 %v3630
        %3821 = vmatpush.bf16.msra.mxu0 %v3628
        %3822 = vmatpush.bf16.msra.mxu0 %v3626
        %3823 = vmatpush.bf16.msra.mxu0 %v3624
        %3824 = vmatmul.bf16.gmra.mxu0 %v3228
        %v3825 = vpop.f32.mrf.mxu0
        %v3826 = vadd.f32 %v3332, %v3825
        %v3827 = vpop.f32.mrf.mxu0
        %v3828 = vadd.f32 %v3332, %v3827
        %3829 = vdwg.mxu0
        %3830 = vmatpush.bf16.msra.mxu0 %v3654
        %3831 = vmatpush.bf16.msra.mxu0 %v3652
        %3832 = vmatpush.bf16.msra.mxu0 %v3650
        %3833 = vmatpush.bf16.msra.mxu0 %v3648
        %3834 = vmatpush.bf16.msra.mxu0 %v3646
        %3835 = vmatpush.bf16.msra.mxu0 %v3644
        %3836 = vmatpush.bf16.msra.mxu0 %v3642
        %3837 = vmatpush.bf16.msra.mxu0 %v3640
        %3838 = vmatmul.bf16.gmra.mxu0 %v3229
        %v3839 = vpop.f32.mrf.mxu0
        %v3840 = vadd.f32 %v3826, %v3839
        %v3841 = vpop.f32.mrf.mxu0
        %v3842 = vadd.f32 %v3828, %v3841
        %3843 = vdwg.mxu0
        %3844 = vmatpush.bf16.msra.mxu0 %v3670
        %3845 = vmatpush.bf16.msra.mxu0 %v3668
        %3846 = vmatpush.bf16.msra.mxu0 %v3666
        %3847 = vmatpush.bf16.msra.mxu0 %v3664
        %3848 = vmatpush.bf16.msra.mxu0 %v3662
        %3849 = vmatpush.bf16.msra.mxu0 %v3660
        %3850 = vmatpush.bf16.msra.mxu0 %v3658
        %3851 = vmatpush.bf16.msra.mxu0 %v3656
        %3852 = vmatmul.bf16.gmra.mxu0 %v3230
        %v3853 = vpop.f32.mrf.mxu0
        %v3854 = vadd.f32 %v3840, %v3853
        %v3855 = vpop.f32.mrf.mxu0
        %v3856 = vadd.f32 %v3842, %v3855
        %3857 = vdwg.mxu0
        %3858 = vmatpush.bf16.msra.mxu0 %v3686
        %3859 = vmatpush.bf16.msra.mxu0 %v3684
        %3860 = vmatpush.bf16.msra.mxu0 %v3682
        %3861 = vmatpush.bf16.msra.mxu0 %v3680
        %3862 = vmatpush.bf16.msra.mxu0 %v3678
        %3863 = vmatpush.bf16.msra.mxu0 %v3676
        %3864 = vmatpush.bf16.msra.mxu0 %v3674
        %3865 = vmatpush.bf16.msra.mxu0 %v3672
        %3866 = vmatmul.bf16.gmra.mxu0 %v3231
        %v3867 = vpop.f32.mrf.mxu0
        %v3868 = vadd.f32 %v3854, %v3867
        %v3869 = vpop.f32.mrf.mxu0
        %v3870 = vadd.f32 %v3856, %v3869
        %3871 = vdwg.mxu0
        %3872 = vmatpush.bf16.msra.mxu0 %v3702
        %3873 = vmatpush.bf16.msra.mxu0 %v3700
        %3874 = vmatpush.bf16.msra.mxu0 %v3698
        %3875 = vmatpush.bf16.msra.mxu0 %v3696
        %3876 = vmatpush.bf16.msra.mxu0 %v3694
        %3877 = vmatpush.bf16.msra.mxu0 %v3692
        %3878 = vmatpush.bf16.msra.mxu0 %v3690
        %3879 = vmatpush.bf16.msra.mxu0 %v3688
        %3880 = vmatmul.bf16.gmra.mxu0 %v3232
        %v3881 = vpop.f32.mrf.mxu0
        %v3882 = vadd.f32 %v3868, %v3881
        %v3883 = vpop.f32.mrf.mxu0
        %v3884 = vadd.f32 %v3870, %v3883
        %3885 = vdwg.mxu0
        %3886 = vmatpush.bf16.msra.mxu0 %v3718
        %3887 = vmatpush.bf16.msra.mxu0 %v3716
        %3888 = vmatpush.bf16.msra.mxu0 %v3714
        %3889 = vmatpush.bf16.msra.mxu0 %v3712
        %3890 = vmatpush.bf16.msra.mxu0 %v3710
        %3891 = vmatpush.bf16.msra.mxu0 %v3708
        %3892 = vmatpush.bf16.msra.mxu0 %v3706
        %3893 = vmatpush.bf16.msra.mxu0 %v3704
        %3894 = vmatmul.bf16.gmra.mxu0 %v3233
        %v3895 = vpop.f32.mrf.mxu0
        %v3896 = vadd.f32 %v3882, %v3895
        %v3897 = vpop.f32.mrf.mxu0
        %v3898 = vadd.f32 %v3884, %v3897
        %3899 = vdwg.mxu0
        %3900 = vmatpush.bf16.msra.mxu0 %v3639
        %3901 = vmatpush.bf16.msra.mxu0 %v3637
        %3902 = vmatpush.bf16.msra.mxu0 %v3635
        %3903 = vmatpush.bf16.msra.mxu0 %v3633
        %3904 = vmatpush.bf16.msra.mxu0 %v3631
        %3905 = vmatpush.bf16.msra.mxu0 %v3629
        %3906 = vmatpush.bf16.msra.mxu0 %v3627
        %3907 = vmatpush.bf16.msra.mxu0 %v3625
        %3908 = vmatmul.bf16.gmra.mxu0 %v3228
        %v3909 = vpop.f32.mrf.mxu0
        %v3910 = vadd.f32 %v3333, %v3909
        %v3911 = vpop.f32.mrf.mxu0
        %v3912 = vadd.f32 %v3333, %v3911
        %3913 = vdwg.mxu0
        %3914 = vmatpush.bf16.msra.mxu0 %v3655
        %3915 = vmatpush.bf16.msra.mxu0 %v3653
        %3916 = vmatpush.bf16.msra.mxu0 %v3651
        %3917 = vmatpush.bf16.msra.mxu0 %v3649
        %3918 = vmatpush.bf16.msra.mxu0 %v3647
        %3919 = vmatpush.bf16.msra.mxu0 %v3645
        %3920 = vmatpush.bf16.msra.mxu0 %v3643
        %3921 = vmatpush.bf16.msra.mxu0 %v3641
        %3922 = vmatmul.bf16.gmra.mxu0 %v3229
        %v3923 = vpop.f32.mrf.mxu0
        %v3924 = vadd.f32 %v3910, %v3923
        %v3925 = vpop.f32.mrf.mxu0
        %v3926 = vadd.f32 %v3912, %v3925
        %3927 = vdwg.mxu0
        %3928 = vmatpush.bf16.msra.mxu0 %v3671
        %3929 = vmatpush.bf16.msra.mxu0 %v3669
        %3930 = vmatpush.bf16.msra.mxu0 %v3667
        %3931 = vmatpush.bf16.msra.mxu0 %v3665
        %3932 = vmatpush.bf16.msra.mxu0 %v3663
        %3933 = vmatpush.bf16.msra.mxu0 %v3661
        %3934 = vmatpush.bf16.msra.mxu0 %v3659
        %3935 = vmatpush.bf16.msra.mxu0 %v3657
        %3936 = vmatmul.bf16.gmra.mxu0 %v3230
        %v3937 = vpop.f32.mrf.mxu0
        %v3938 = vadd.f32 %v3924, %v3937
        %v3939 = vpop.f32.mrf.mxu0
        %v3940 = vadd.f32 %v3926, %v3939
        %3941 = vdwg.mxu0
        %3942 = vmatpush.bf16.msra.mxu0 %v3687
        %3943 = vmatpush.bf16.msra.mxu0 %v3685
        %3944 = vmatpush.bf16.msra.mxu0 %v3683
        %3945 = vmatpush.bf16.msra.mxu0 %v3681
        %3946 = vmatpush.bf16.msra.mxu0 %v3679
        %3947 = vmatpush.bf16.msra.mxu0 %v3677
        %3948 = vmatpush.bf16.msra.mxu0 %v3675
        %3949 = vmatpush.bf16.msra.mxu0 %v3673
        %3950 = vmatmul.bf16.gmra.mxu0 %v3231
        %v3951 = vpop.f32.mrf.mxu0
        %v3952 = vadd.f32 %v3938, %v3951
        %v3953 = vpop.f32.mrf.mxu0
        %v3954 = vadd.f32 %v3940, %v3953
        %3955 = vdwg.mxu0
        %3956 = vmatpush.bf16.msra.mxu0 %v3703
        %3957 = vmatpush.bf16.msra.mxu0 %v3701
        %3958 = vmatpush.bf16.msra.mxu0 %v3699
        %3959 = vmatpush.bf16.msra.mxu0 %v3697
        %3960 = vmatpush.bf16.msra.mxu0 %v3695
        %3961 = vmatpush.bf16.msra.mxu0 %v3693
        %3962 = vmatpush.bf16.msra.mxu0 %v3691
        %3963 = vmatpush.bf16.msra.mxu0 %v3689
        %3964 = vmatmul.bf16.gmra.mxu0 %v3232
        %v3965 = vpop.f32.mrf.mxu0
        %v3966 = vadd.f32 %v3952, %v3965
        %v3967 = vpop.f32.mrf.mxu0
        %v3968 = vadd.f32 %v3954, %v3967
        %3969 = vdwg.mxu0
        %3970 = vmatpush.bf16.msra.mxu0 %v3719
        %3971 = vmatpush.bf16.msra.mxu0 %v3717
        %3972 = vmatpush.bf16.msra.mxu0 %v3715
        %3973 = vmatpush.bf16.msra.mxu0 %v3713
        %3974 = vmatpush.bf16.msra.mxu0 %v3711
        %3975 = vmatpush.bf16.msra.mxu0 %v3709
        %3976 = vmatpush.bf16.msra.mxu0 %v3707
        %3977 = vmatpush.bf16.msra.mxu0 %v3705
        %3978 = vmatmul.bf16.gmra.mxu0 %v3233
        %v3979 = vpop.f32.mrf.mxu0
        %v3980 = vadd.f32 %v3966, %v3979
        %v3981 = vpop.f32.mrf.mxu0
        %v3982 = vadd.f32 %v3968, %v3981
        %3983 = vdwg.mxu0
        %v3984 = vadd.f32 %v2593, %v3896
        %v3985 = vadd.f32 %v2594, %v3980
        %v3986 = vadd.f32 %v2595, %v3898
        %v3987 = vadd.f32 %v2596, %v3982
        %v3988 = vsel %vm1082, %v3985, 0.0
        %v3989 = vadd.f32 %v3984, %v3988
        %3990 = vadd.xlane.f32.xlu0 %v3989
        %v3991 = vpop.xlane.xlu0 %3990
        %v3992 = vsel %vm1082, %v3987, 0.0
        %v3993 = vadd.f32 %v3986, %v3992
        %3994 = vadd.xlane.f32.xlu0 %v3993
        %v3995 = vpop.xlane.xlu0 %3994
        %v3996 = vmul.f32 %v3991, %v2530
        %v3997 = vmul.f32 %v3995, %v2530
        %v3998 = vsub.f32 %v3984, %v3996
        %v3999 = vsub.f32 %v3985, %v3996
        %v4000 = vsub.f32 %v3986, %v3997
        %v4001 = vsub.f32 %v3987, %v3997
        %v4002 = vmul.f32 %v3998, %v3998
        %v4003 = vmul.f32 %v3999, %v3999
        %v4004 = vmul.f32 %v4000, %v4000
        %v4005 = vmul.f32 %v4001, %v4001
        %v4006 = vsel %vm1082, %v4003, 0.0
        %v4007 = vadd.f32 %v4002, %v4006
        %4008 = vadd.xlane.f32.xlu0 %v4007
        %v4009 = vpop.xlane.xlu0 %4008
        %v4010 = vsel %vm1082, %v4005, 0.0
        %v4011 = vadd.f32 %v4004, %v4010
        %4012 = vadd.xlane.f32.xlu0 %v4011
        %v4013 = vpop.xlane.xlu0 %4012
        %v4014 = vmul.f32 %v4009, %v2530
        %v4015 = vmul.f32 %v4013, %v2530
        %v4016 = vadd.f32 %v4014, 1e-05
        %v4017 = vadd.f32 %v4015, 1e-05
        %v4018 = vrsqrt.pop %v4016
        %v4019 = vmul.f32 %v4018, %v4016
        %v4020 = vmul.f32 %v4019, %v4018
        %v4021 = vmul.f32 0.5, %v4020
        %v4022 = vsub.f32 1.5, %v4021
        %v4023 = vmul.f32 %v4018, %v4022
        %vm4024 = vweird.f32 %v4016
        %vm4025 = vweird.f32 %v4018
        %vm4026 = vmor %vm4024, %vm4025
        %v4027 = vsel %vm4026, %v4018, %v4023
        %v4028 = vrsqrt.pop %v4017
        %v4029 = vmul.f32 %v4028, %v4017
        %v4030 = vmul.f32 %v4029, %v4028
        %v4031 = vmul.f32 0.5, %v4030
        %v4032 = vsub.f32 1.5, %v4031
        %v4033 = vmul.f32 %v4028, %v4032
        %vm4034 = vweird.f32 %v4017
        %vm4035 = vweird.f32 %v4028
        %vm4036 = vmor %vm4034, %vm4035
        %v4037 = vsel %vm4036, %v4028, %v4033
        %v4038 = vmul.f32 %v3998, %v4027
        %v4039 = vmul.f32 %v3999, %v4027
        %v4040 = vmul.f32 %v4000, %v4037
        %v4041 = vmul.f32 %v4001, %v4037
        %v4042 = vld [vmem:[%s660] sm:$0x3]
        %v4044 = vperm.slane %v4042, 0
        %v4045 = vperm.slane %v4042, 1
        %v4048 = vmul.f32 %v4038, %v4044
        %v4049 = vmul.f32 %v4039, %v4045
        %v4050 = vmul.f32 %v4040, %v4044
        %v4051 = vmul.f32 %v4041, %v4045
        %v4052 = vld [vmem:[%s664] sm:$0x3]
        %v4054 = vperm.slane %v4052, 0
        %v4055 = vperm.slane %v4052, 1
        %v4058 = vadd.f32 %v4048, %v4054
        %v4059 = vadd.f32 %v4049, %v4055
        %v4060 = vadd.f32 %v4050, %v4054
        %v4061 = vadd.f32 %v4051, %v4055
        %4062 = vst [vmem:[#allocation2] sm:$0xff] %v4058
        %4063 = vst.msk [vmem:[#allocation2 + $0x8] sm:$0xff] %vm1082, %v4059
        %4064 = vst [vmem:[#allocation2 + $0x10] sm:$0xff] %v4060
        %4065 = vst.msk [vmem:[#allocation2 + $0x18] sm:$0xff] %vm1082, %v4061
        %p4066 = scmp.eq.s32.totalorder %s30, 1
        // Predicated region
        $region77: #{tpu_custom_call.1} parent=71 // pred_check
          %p4067 = pneg %p4066
        $region78: #{tpu_custom_call.1} parent=71 // pred_check_branch
          %4069 = sbr.rel (%p4067) target = $region80
        $region79: #{tpu_custom_call.1} parent=71 // pred_region
          %4070 = vst [vmem:[#allocation3] sm:$0xff] %v4058
          %4071 = vst.msk [vmem:[#allocation3 + $0x8] sm:$0xff] %vm1082, %v4059
          %4072 = vst [vmem:[#allocation3 + $0x10] sm:$0xff] %v4060
          %4073 = vst.msk [vmem:[#allocation3 + $0x18] sm:$0xff] %vm1082, %v4061
        $region80: #{tpu_custom_call.1} parent=71 // pred_fallthru
          _
        // Predicated region
        $region81: #{tpu_custom_call.1} parent=71 // pred_check
          %p4074 = pneg %p393
        $region82: #{tpu_custom_call.1} parent=71 // pred_check_branch
          %4076 = sbr.rel (%p4074) target = $region84
        $region83: #{tpu_custom_call.1} parent=71 // pred_region
          %s4077 = smul.u32 2, %s29
          %4079 = vsyncadd [#allocation4], 0
          %s4080 = smul.addr %s4077, 2
          %s4081 = smul.addr %s4080, 8
          %s4082 = scalar_lea.hbm %s13, %s4081
          %s4083 = sshll.u32 [#allocation3], 4
          %s4084 = int_to_ptr.vmem [resolvable:$true] %s4083
          %s4085 = sshll.u32 %s4082, 4
          %s4086 = int_to_ptr.hbm [resolvable:$true] %s4085
          %4091 = dma.vmem_to_hbm [thread:$0]  %s4084, 512, %s4086, [#allocation4], 256, 256, 16
        $region84: #{tpu_custom_call.1} parent=71 // pred_fallthru
          _
        // Predicated region
        $region85: #{tpu_custom_call.1} parent=71 // pred_check
          %p4092 = pneg %p393
        $region86: #{tpu_custom_call.1} parent=71 // pred_check_branch
          %4094 = sbr.rel (%p4092) target = $region88
        $region87: #{tpu_custom_call.1} parent=71 // pred_region
          %4096 = dma.done [#allocation4], 512
        $region88: #{tpu_custom_call.1} parent=71 // pred_fallthru
          _
      $region72: #{tpu_custom_call.1} parent=5 // pred_fallthru
        _
      %p4097 = scmp.le.s32.totalorder 2, %s20
      // Predicated region
      $region89: #{tpu_custom_call.1} parent=5 // pred_check
        %p4098 = pneg %p4097
      $region90: #{tpu_custom_call.1} parent=5 // pred_check_branch
        %4100 = sbr.rel (%p4098) target = $region92
      $region91: #{tpu_custom_call.1} parent=5 // pred_region
        %s4101 = ssub.s32 %s20, 2
      $region92: #{tpu_custom_call.1} parent=5 // pred_fallthru
        _
    $region6: #{tpu_custom_call.1} parent=1 // loop_footer
      %s24 = sadd.s32 1, %s20
    $region7: #{tpu_custom_call.1} parent=1 // loop_footer_branch
      %19 = sbr.rel target = $region3
    $region8: #{tpu_custom_call.1} parent=1 // loop_exit
      _
    %4102 = vsyncpa [#allocation4], 1
    %s4103 = scalar_lea.sflag [#allocation4], 1
    %4104 = vsyncpa %s4103, 1

</llo_original>
